<compile_context>
chip_gen: v6e
topology: v6e:2x2x1
jax: 0.10.0
libtpu: 0.0.40
codegen_flags: <defaults>
</compile_context>

<pallas_src>
import jax
import jax.numpy as jnp
from jax.experimental import pallas as pl
from jax.experimental.pallas import tpu as pltpu


# ----------------------------------------------------------------------------
# Shared chunk recurrence (traced inline into both kernel bodies).
# ----------------------------------------------------------------------------
def _chunk_recurrence(x_ref, w_ih_ref, w_hh_ref, b_ref, h_scr, c_scr, emit):
    B, Tc, F = x_ref.shape
    H = h_scr.shape[-1]

    # Hoisted input projection for the whole chunk: M = B*Tc rows on the MXU.
    x = x_ref[...].reshape(B * Tc, F).astype(w_ih_ref.dtype)
    xg = jnp.dot(x, w_ih_ref[...], preferred_element_type=jnp.float32)
    xg = xg.reshape(B, Tc, 4 * H) + b_ref[...]          # fold bias once

    w_hh = w_hh_ref[...]                                # resident bf16 weights
    for tt in range(Tc):                                # static, fully unrolled
        gates = xg[:, tt, :] + jnp.dot(
            h_scr[...].astype(w_hh.dtype), w_hh,
            preferred_element_type=jnp.float32)         # (B, 4H) f32
        i_g = jax.nn.sigmoid(gates[:, 0 * H:1 * H])
        f_g = jax.nn.sigmoid(gates[:, 1 * H:2 * H])
        g_g = jnp.tanh(gates[:, 2 * H:3 * H])
        o_g = jax.nn.sigmoid(gates[:, 3 * H:4 * H])
        c_new = f_g * c_scr[...] + i_g * g_g
        h_new = o_g * jnp.tanh(c_new)
        c_scr[...] = c_new
        h_scr[...] = h_new
        emit(tt, h_new)


# ----------------------------------------------------------------------------
# Intermediate layer: emits the full hidden sequence (consumed by next layer).
# ----------------------------------------------------------------------------
def _lstm_seq_kernel(x_ref, w_ih_ref, w_hh_ref, b_ref, h_seq_ref, h_scr, c_scr):
    @pl.when(pl.program_id(0) == 0)
    def _():
        h_scr[...] = jnp.zeros_like(h_scr)
        c_scr[...] = jnp.zeros_like(c_scr)

    def emit(tt, h_new):
        h_seq_ref[:, tt, :] = h_new.astype(h_seq_ref.dtype)

    _chunk_recurrence(x_ref, w_ih_ref, w_hh_ref, b_ref, h_scr, c_scr, emit)


def lstm_seq_layer(x, w_ih, w_hh, b, chunk):
    B, T, F = x.shape
    H = w_hh.shape[0]
    n_chunks = T // chunk
    return pl.pallas_call(
        _lstm_seq_kernel,
        out_shape=jax.ShapeDtypeStruct((B, T, H), jnp.float32),
        grid_spec=pltpu.PrefetchScalarGridSpec(
            num_scalar_prefetch=0,
            grid=(n_chunks,),
            in_specs=[
                pl.BlockSpec((B, chunk, F), lambda c: (0, c, 0)),   # x chunk
                pl.BlockSpec((F, 4 * H), lambda c: (0, 0)),          # W_ih^T
                pl.BlockSpec((H, 4 * H), lambda c: (0, 0)),          # W_hh^T
                pl.BlockSpec((1, 4 * H), lambda c: (0, 0)),          # b_ih+b_hh
            ],
            out_specs=pl.BlockSpec((B, chunk, H), lambda c: (0, c, 0)),
            scratch_shapes=[
                pltpu.VMEM((B, H), jnp.float32),                    # h carry
                pltpu.VMEM((B, H), jnp.float32),                    # c carry
            ],
        ),
        compiler_params=pltpu.CompilerParams(
            dimension_semantics=("arbitrary",)),
    )(x, w_ih, w_hh, b)


# ----------------------------------------------------------------------------
# Last layer with fused head: no (B,T,H) sequence written; only padded logits.
# ----------------------------------------------------------------------------
def _lstm_head_kernel(x_ref, w_ih_ref, w_hh_ref, b_ref,
                      wl_ref, bl_ref, wf_ref, bf_ref,
                      logits_ref, h_scr, c_scr):
    @pl.when(pl.program_id(0) == 0)
    def _():
        h_scr[...] = jnp.zeros_like(h_scr)
        c_scr[...] = jnp.zeros_like(c_scr)

    _chunk_recurrence(x_ref, w_ih_ref, w_hh_ref, b_ref, h_scr, c_scr,
                      lambda tt, h_new: None)

    @pl.when(pl.program_id(0) == pl.num_programs(0) - 1)
    def _():
        h_last = h_scr[...]                                         # (B, H)
        y = jnp.dot(h_last.astype(wl_ref.dtype), wl_ref[...],
                    preferred_element_type=jnp.float32) + bl_ref[...]
        z = jnp.dot(y.astype(wf_ref.dtype), wf_ref[...],
                    preferred_element_type=jnp.float32) + bf_ref[...]
        logits_ref[...] = z.astype(logits_ref.dtype)                # lane-dense


def lstm_head_layer(x, w_ih, w_hh, b, w_line, b_line, w_fc_pad, b_fc_pad, chunk):
    B, T, F = x.shape
    H = w_hh.shape[0]
    Cp = w_fc_pad.shape[1]
    n_chunks = T // chunk
    return pl.pallas_call(
        _lstm_head_kernel,
        out_shape=jax.ShapeDtypeStruct((B, Cp), jnp.float32),
        grid_spec=pltpu.PrefetchScalarGridSpec(
            num_scalar_prefetch=0,
            grid=(n_chunks,),
            in_specs=[
                pl.BlockSpec((B, chunk, F), lambda c: (0, c, 0)),
                pl.BlockSpec((F, 4 * H), lambda c: (0, 0)),
                pl.BlockSpec((H, 4 * H), lambda c: (0, 0)),
                pl.BlockSpec((1, 4 * H), lambda c: (0, 0)),
                pl.BlockSpec((H, H), lambda c: (0, 0)),              # line W
                pl.BlockSpec((1, H), lambda c: (0, 0)),              # line b
                pl.BlockSpec((H, Cp), lambda c: (0, 0)),             # fc W (padded)
                pl.BlockSpec((1, Cp), lambda c: (0, 0)),             # fc b (padded)
            ],
            out_specs=pl.BlockSpec((B, Cp), lambda c: (0, 0)),
            scratch_shapes=[
                pltpu.VMEM((B, H), jnp.float32),
                pltpu.VMEM((B, H), jnp.float32),
            ],
        ),
        compiler_params=pltpu.CompilerParams(
            dimension_semantics=("arbitrary",)),
    )(x, w_ih, w_hh, b, w_line, b_line, w_fc_pad, b_fc_pad)


# ----------------------------------------------------------------------------
# Parameters + full forward.
# ----------------------------------------------------------------------------
def init_params(key, input_size, hidden_size, num_layers, num_classes):
    feat = input_size * 3
    H = hidden_size
    C = num_classes
    Cp = ((C + 127) // 128) * 128
    scale = float(H) ** -0.5
    params = {"layers": []}
    k = key
    for layer in range(num_layers):
        in_dim = feat if layer == 0 else H
        k, k1, k2, k3, k4 = jax.random.split(k, 5)
        w_ih = jax.random.uniform(k1, (in_dim, 4 * H), jnp.float32, -scale, scale)
        w_hh = jax.random.uniform(k2, (H, 4 * H), jnp.float32, -scale, scale)
        b_ih = jax.random.uniform(k3, (4 * H,), jnp.float32, -scale, scale)
        b_hh = jax.random.uniform(k4, (4 * H,), jnp.float32, -scale, scale)
        params["layers"].append(dict(
            w_ih=w_ih.astype(jnp.bfloat16),           # bf16 MXU operands
            w_hh=w_hh.astype(jnp.bfloat16),
            b=(b_ih + b_hh).reshape(1, -1)))          # fused bias, f32
    k, k1, k2, k3, k4 = jax.random.split(k, 5)
    w_line = jax.random.uniform(k1, (H, H), jnp.float32, -scale, scale)
    b_line = jax.random.uniform(k2, (H,), jnp.float32, -scale, scale)
    w_fc = jax.random.uniform(k3, (H, C), jnp.float32, -scale, scale)
    b_fc = jax.random.uniform(k4, (C,), jnp.float32, -scale, scale)
    params["w_line"] = w_line.astype(jnp.bfloat16)
    params["b_line"] = b_line.reshape(1, -1)
    params["w_fc"] = w_fc.astype(jnp.bfloat16)
    params["b_fc"] = b_fc.reshape(1, -1)
    # Lane-dense (128-wide) padded head for the fused kernel; sliced outside.
    params["w_fc_pad"] = jnp.zeros((H, Cp), jnp.bfloat16).at[:, :C].set(
        w_fc.astype(jnp.bfloat16))
    params["b_fc_pad"] = jnp.zeros((1, Cp), jnp.float32).at[:, :C].set(
        b_fc.reshape(1, -1))
    return params


def _pick_chunk(T, max_chunk=32):
    tc = min(T, max_chunk)
    while T % tc:
        tc -= 1
    return tc


@jax.jit
def lstm_forward(x, params):
    # x: (B, T, F) batch-first, like the PyTorch module. No transpose anywhere.
    x = x.astype(jnp.float32)
    B, T, F = x.shape
    chunk = _pick_chunk(T)
    seq = x
    for layer in params["layers"][:-1]:
        seq = lstm_seq_layer(seq, layer["w_ih"], layer["w_hh"], layer["b"], chunk)
    last = params["layers"][-1]
    logits_p = lstm_head_layer(seq, last["w_ih"], last["w_hh"], last["b"],
                               params["w_line"], params["b_line"],
                               params["w_fc_pad"], params["b_fc_pad"], chunk)
    C = params["b_fc"].shape[-1]
    return logits_p[:, :C]


# ----------------------------------------------------------------------------
# Pure-JAX reference (same bf16-operand / f32-accumulate convention).
# ----------------------------------------------------------------------------
def lstm_forward_ref(x, params):
    seq = x.astype(jnp.float32)                      # (B, T, F)
    B = x.shape[0]
    for layer in params["layers"]:
        w_ih, w_hh, b = layer["w_ih"], layer["w_hh"], layer["b"]
        H = w_hh.shape[0]
        h = jnp.zeros((B, H), jnp.float32)
        c = jnp.zeros((B, H), jnp.float32)
        xs = jnp.transpose(seq, (1, 0, 2))           # time-major for scan

        def step(carry, x_t, w_ih=w_ih, w_hh=w_hh, b=b, H=H):
            h, c = carry
            g = (jnp.dot(x_t.astype(jnp.bfloat16), w_ih,
                         preferred_element_type=jnp.float32)
                 + jnp.dot(h.astype(jnp.bfloat16), w_hh,
                           preferred_element_type=jnp.float32)
                 + b)
            i = jax.nn.sigmoid(g[:, :H])
            f = jax.nn.sigmoid(g[:, H:2 * H])
            gg = jnp.tanh(g[:, 2 * H:3 * H])
            o = jax.nn.sigmoid(g[:, 3 * H:])
            c = f * c + i * gg
            h = o * jnp.tanh(c)
            return (h, c), h

        (_, _), hs = jax.lax.scan(step, (h, c), xs)
        seq = jnp.transpose(hs, (1, 0, 2))           # (B, T, H)
    h_last = seq[:, -1, :]
    y = jnp.dot(h_last.astype(jnp.bfloat16), params["w_line"],
                preferred_element_type=jnp.float32) + params["b_line"]
    z = jnp.dot(y.astype(jnp.bfloat16), params["w_fc"],
                preferred_element_type=jnp.float32) + params["b_fc"]
    return z


if __name__ == "__main__":
    # Small shapes consistent with the module: input_size=16 -> feature=48.
    B, T = 2, 8
    input_size, hidden_size, num_layers, num_classes = 16, 32, 2, 10

    key = jax.random.PRNGKey(0)
    kx, kp = jax.random.split(key)
    x = jax.random.normal(kx, (B, T, input_size * 3), jnp.float32)
    params = init_params(kp, input_size, hidden_size, num_layers, num_classes)

    out = jax.block_until_ready(lstm_forward(x, params))
    ref = jax.block_until_ready(lstm_forward_ref(x, params))

    assert out.shape == (B, num_classes), out.shape
    err = float(jnp.max(jnp.abs(out - ref)))
    assert err < 1e-3, err

    print("KERNEL_OK")
</pallas_src>

<mosaic_0001>
module attributes {stable_mosaic.version = 11 : i64} {
  func.func @_lstm_head_kernel(%arg0: i32, %arg1: memref<2x8x32xf32, #tpu.memory_space<vmem>>, %arg2: memref<32x128xbf16, #tpu.memory_space<vmem>>, %arg3: memref<32x128xbf16, #tpu.memory_space<vmem>>, %arg4: memref<1x128xf32, #tpu.memory_space<vmem>>, %arg5: memref<32x32xbf16, #tpu.memory_space<vmem>>, %arg6: memref<1x32xf32, #tpu.memory_space<vmem>>, %arg7: memref<32x128xbf16, #tpu.memory_space<vmem>>, %arg8: memref<1x128xf32, #tpu.memory_space<vmem>>, %arg9: memref<2x128xf32, #tpu.memory_space<vmem>>, %arg10: memref<2x32xf32, #tpu.memory_space<vmem>>, %arg11: memref<2x32xf32, #tpu.memory_space<vmem>>) attributes {dimension_semantics = [#tpu.dimension_semantics<arbitrary>], iteration_bounds = array<i64: 1>, scalar_prefetch = 0 : i64, scratch_operands = 2 : i64, tpu.core_type = #tpu.core_type<tc>, window_params = [{transform_indices = @transform_0, window_bounds = array<i64: 2, 8, 32>}, {pipeline_mode = #tpu.pipeline_mode<synchronous>, transform_indices = @transform_1, window_bounds = array<i64: 32, 128>}, {pipeline_mode = #tpu.pipeline_mode<synchronous>, transform_indices = @transform_2, window_bounds = array<i64: 32, 128>}, {pipeline_mode = #tpu.pipeline_mode<synchronous>, transform_indices = @transform_3, window_bounds = array<i64: 1, 128>}, {pipeline_mode = #tpu.pipeline_mode<synchronous>, transform_indices = @transform_4, window_bounds = array<i64: 32, 32>}, {pipeline_mode = #tpu.pipeline_mode<synchronous>, transform_indices = @transform_5, window_bounds = array<i64: 1, 32>}, {pipeline_mode = #tpu.pipeline_mode<synchronous>, transform_indices = @transform_6, window_bounds = array<i64: 32, 128>}, {pipeline_mode = #tpu.pipeline_mode<synchronous>, transform_indices = @transform_7, window_bounds = array<i64: 1, 128>}, {pipeline_mode = #tpu.pipeline_mode<synchronous>, transform_indices = @transform_8, window_bounds = array<i64: 2, 128>}]} {
    %c0_i32 = arith.constant 0 : i32
    %0 = arith.cmpi eq, %arg0, %c0_i32 : i32
    %1 = arith.extui %0 : i1 to i32
    %c0_i32_0 = arith.constant 0 : i32
    %2 = arith.cmpi ne, %1, %c0_i32_0 : i32
    scf.if %2 {
      %cst_107 = arith.constant 0.000000e+00 : f32
      %289 = vector.broadcast %cst_107 : f32 to vector<2x32xf32>
      %c0_108 = arith.constant 0 : index
      %c0_109 = arith.constant 0 : index
      %290 = vector.load %arg10[%c0_108, %c0_109] : memref<2x32xf32, #tpu.memory_space<vmem>>, vector<2x32xf32>
      tpu.vector_store %arg10[%c0_108, %c0_109], %289 {strides = array<i32>} : memref<2x32xf32, #tpu.memory_space<vmem>>, vector<2x32xf32>,
      %cst_110 = arith.constant 0.000000e+00 : f32
      %291 = vector.broadcast %cst_110 : f32 to vector<2x32xf32>
      %c0_111 = arith.constant 0 : index
      %c0_112 = arith.constant 0 : index
      %292 = vector.load %arg11[%c0_111, %c0_112] : memref<2x32xf32, #tpu.memory_space<vmem>>, vector<2x32xf32>
      tpu.vector_store %arg11[%c0_111, %c0_112], %291 {strides = array<i32>} : memref<2x32xf32, #tpu.memory_space<vmem>>, vector<2x32xf32>,
    } else {
    }
    %c0 = arith.constant 0 : index
    %c0_1 = arith.constant 0 : index
    %c0_2 = arith.constant 0 : index
    %3 = vector.load %arg1[%c0, %c0_1, %c0_2] : memref<2x8x32xf32, #tpu.memory_space<vmem>>, vector<2x8x32xf32>
    %4 = vector.shape_cast %3 : vector<2x8x32xf32> to vector<16x32xf32>
    %5 = arith.truncf %4 : vector<16x32xf32> to vector<16x32xbf16>
    %c0_3 = arith.constant 0 : index
    %c0_4 = arith.constant 0 : index
    %6 = vector.load %arg2[%c0_3, %c0_4] : memref<32x128xbf16, #tpu.memory_space<vmem>>, vector<32x128xbf16>
    %cst = arith.constant dense<0.000000e+00> : vector<16x128xf32>
    %7 = tpu.matmul %5, %6, %cst {dimension_numbers = #tpu.dot_dimension_numbers<[1], [0], [0], [1], [0, 0, 1, 1], [], []>} : vector<16x32xbf16>, vector<32x128xbf16>, vector<16x128xf32> -> vector<16x128xf32>
    %8 = vector.shape_cast %7 : vector<16x128xf32> to vector<2x8x128xf32>
    %c0_5 = arith.constant 0 : index
    %c0_6 = arith.constant 0 : index
    %9 = vector.load %arg4[%c0_5, %c0_6] : memref<1x128xf32, #tpu.memory_space<vmem>>, vector<1x128xf32>
    %10 = vector.shape_cast %9 : vector<1x128xf32> to vector<1x1x128xf32>
    %11 = vector.broadcast %10 : vector<1x1x128xf32> to vector<2x8x128xf32>
    %12 = arith.addf %8, %11 : vector<2x8x128xf32>
    %c0_7 = arith.constant 0 : index
    %c0_8 = arith.constant 0 : index
    %13 = vector.load %arg3[%c0_7, %c0_8] : memref<32x128xbf16, #tpu.memory_space<vmem>>, vector<32x128xbf16>
    %14 = vector.extract_strided_slice %12 {offsets = [0, 0, 0], sizes = [2, 1, 128], strides = [1, 1, 1]} : vector<2x8x128xf32> to vector<2x1x128xf32>
    %15 = vector.shape_cast %14 : vector<2x1x128xf32> to vector<2x128xf32>
    %c0_9 = arith.constant 0 : index
    %c0_10 = arith.constant 0 : index
    %16 = vector.load %arg10[%c0_9, %c0_10] : memref<2x32xf32, #tpu.memory_space<vmem>>, vector<2x32xf32>
    %17 = arith.truncf %16 : vector<2x32xf32> to vector<2x32xbf16>
    %cst_11 = arith.constant dense<0.000000e+00> : vector<2x128xf32>
    %18 = tpu.matmul %17, %13, %cst_11 {dimension_numbers = #tpu.dot_dimension_numbers<[1], [0], [0], [1], [0, 0, 1, 1], [], []>} : vector<2x32xbf16>, vector<32x128xbf16>, vector<2x128xf32> -> vector<2x128xf32>
    %19 = arith.addf %15, %18 : vector<2x128xf32>
    %20 = vector.extract_strided_slice %19 {offsets = [0, 0], sizes = [2, 32], strides = [1, 1]} : vector<2x128xf32> to vector<2x32xf32>
    %21 = arith.negf %20 : vector<2x32xf32>
    %22 = math.exp %21 : vector<2x32xf32>
    %cst_12 = arith.constant 1.000000e+00 : f32
    %23 = vector.broadcast %cst_12 : f32 to vector<2x32xf32>
    %24 = arith.addf %23, %22 : vector<2x32xf32>
    %25 = arith.divf %23, %24 : vector<2x32xf32>
    %26 = vector.extract_strided_slice %19 {offsets = [0, 32], sizes = [2, 32], strides = [1, 1]} : vector<2x128xf32> to vector<2x32xf32>
    %27 = arith.negf %26 : vector<2x32xf32>
    %28 = math.exp %27 : vector<2x32xf32>
    %cst_13 = arith.constant 1.000000e+00 : f32
    %29 = vector.broadcast %cst_13 : f32 to vector<2x32xf32>
    %30 = arith.addf %29, %28 : vector<2x32xf32>
    %31 = arith.divf %29, %30 : vector<2x32xf32>
    %32 = vector.extract_strided_slice %19 {offsets = [0, 64], sizes = [2, 32], strides = [1, 1]} : vector<2x128xf32> to vector<2x32xf32>
    %33 = math.tanh %32 : vector<2x32xf32>
    %34 = vector.extract_strided_slice %19 {offsets = [0, 96], sizes = [2, 32], strides = [1, 1]} : vector<2x128xf32> to vector<2x32xf32>
    %35 = arith.negf %34 : vector<2x32xf32>
    %36 = math.exp %35 : vector<2x32xf32>
    %cst_14 = arith.constant 1.000000e+00 : f32
    %37 = vector.broadcast %cst_14 : f32 to vector<2x32xf32>
    %38 = arith.addf %37, %36 : vector<2x32xf32>
    %39 = arith.divf %37, %38 : vector<2x32xf32>
    %c0_15 = arith.constant 0 : index
    %c0_16 = arith.constant 0 : index
    %40 = vector.load %arg11[%c0_15, %c0_16] : memref<2x32xf32, #tpu.memory_space<vmem>>, vector<2x32xf32>
    %41 = arith.mulf %31, %40 : vector<2x32xf32>
    %42 = arith.mulf %25, %33 : vector<2x32xf32>
    %43 = arith.addf %41, %42 : vector<2x32xf32>
    %44 = math.tanh %43 : vector<2x32xf32>
    %45 = arith.mulf %39, %44 : vector<2x32xf32>
    %c0_17 = arith.constant 0 : index
    %c0_18 = arith.constant 0 : index
    %46 = vector.load %arg11[%c0_17, %c0_18] : memref<2x32xf32, #tpu.memory_space<vmem>>, vector<2x32xf32>
    tpu.vector_store %arg11[%c0_17, %c0_18], %43 {strides = array<i32>} : memref<2x32xf32, #tpu.memory_space<vmem>>, vector<2x32xf32>,
    %c0_19 = arith.constant 0 : index
    %c0_20 = arith.constant 0 : index
    %47 = vector.load %arg10[%c0_19, %c0_20] : memref<2x32xf32, #tpu.memory_space<vmem>>, vector<2x32xf32>
    tpu.vector_store %arg10[%c0_19, %c0_20], %45 {strides = array<i32>} : memref<2x32xf32, #tpu.memory_space<vmem>>, vector<2x32xf32>,
    %48 = vector.extract_strided_slice %12 {offsets = [0, 1, 0], sizes = [2, 1, 128], strides = [1, 1, 1]} : vector<2x8x128xf32> to vector<2x1x128xf32>
    %49 = vector.shape_cast %48 : vector<2x1x128xf32> to vector<2x128xf32>
    %c0_21 = arith.constant 0 : index
    %c0_22 = arith.constant 0 : index
    %50 = vector.load %arg10[%c0_21, %c0_22] : memref<2x32xf32, #tpu.memory_space<vmem>>, vector<2x32xf32>
    %51 = arith.truncf %50 : vector<2x32xf32> to vector<2x32xbf16>
    %cst_23 = arith.constant dense<0.000000e+00> : vector<2x128xf32>
    %52 = tpu.matmul %51, %13, %cst_23 {dimension_numbers = #tpu.dot_dimension_numbers<[1], [0], [0], [1], [0, 0, 1, 1], [], []>} : vector<2x32xbf16>, vector<32x128xbf16>, vector<2x128xf32> -> vector<2x128xf32>
    %53 = arith.addf %49, %52 : vector<2x128xf32>
    %54 = vector.extract_strided_slice %53 {offsets = [0, 0], sizes = [2, 32], strides = [1, 1]} : vector<2x128xf32> to vector<2x32xf32>
    %55 = arith.negf %54 : vector<2x32xf32>
    %56 = math.exp %55 : vector<2x32xf32>
    %cst_24 = arith.constant 1.000000e+00 : f32
    %57 = vector.broadcast %cst_24 : f32 to vector<2x32xf32>
    %58 = arith.addf %57, %56 : vector<2x32xf32>
    %59 = arith.divf %57, %58 : vector<2x32xf32>
    %60 = vector.extract_strided_slice %53 {offsets = [0, 32], sizes = [2, 32], strides = [1, 1]} : vector<2x128xf32> to vector<2x32xf32>
    %61 = arith.negf %60 : vector<2x32xf32>
    %62 = math.exp %61 : vector<2x32xf32>
    %cst_25 = arith.constant 1.000000e+00 : f32
    %63 = vector.broadcast %cst_25 : f32 to vector<2x32xf32>
    %64 = arith.addf %63, %62 : vector<2x32xf32>
    %65 = arith.divf %63, %64 : vector<2x32xf32>
    %66 = vector.extract_strided_slice %53 {offsets = [0, 64], sizes = [2, 32], strides = [1, 1]} : vector<2x128xf32> to vector<2x32xf32>
    %67 = math.tanh %66 : vector<2x32xf32>
    %68 = vector.extract_strided_slice %53 {offsets = [0, 96], sizes = [2, 32], strides = [1, 1]} : vector<2x128xf32> to vector<2x32xf32>
    %69 = arith.negf %68 : vector<2x32xf32>
    %70 = math.exp %69 : vector<2x32xf32>
    %cst_26 = arith.constant 1.000000e+00 : f32
    %71 = vector.broadcast %cst_26 : f32 to vector<2x32xf32>
    %72 = arith.addf %71, %70 : vector<2x32xf32>
    %73 = arith.divf %71, %72 : vector<2x32xf32>
    %c0_27 = arith.constant 0 : index
    %c0_28 = arith.constant 0 : index
    %74 = vector.load %arg11[%c0_27, %c0_28] : memref<2x32xf32, #tpu.memory_space<vmem>>, vector<2x32xf32>
    %75 = arith.mulf %65, %74 : vector<2x32xf32>
    %76 = arith.mulf %59, %67 : vector<2x32xf32>
    %77 = arith.addf %75, %76 : vector<2x32xf32>
    %78 = math.tanh %77 : vector<2x32xf32>
    %79 = arith.mulf %73, %78 : vector<2x32xf32>
    %c0_29 = arith.constant 0 : index
    %c0_30 = arith.constant 0 : index
    %80 = vector.load %arg11[%c0_29, %c0_30] : memref<2x32xf32, #tpu.memory_space<vmem>>, vector<2x32xf32>
    tpu.vector_store %arg11[%c0_29, %c0_30], %77 {strides = array<i32>} : memref<2x32xf32, #tpu.memory_space<vmem>>, vector<2x32xf32>,
    %c0_31 = arith.constant 0 : index
    %c0_32 = arith.constant 0 : index
    %81 = vector.load %arg10[%c0_31, %c0_32] : memref<2x32xf32, #tpu.memory_space<vmem>>, vector<2x32xf32>
    tpu.vector_store %arg10[%c0_31, %c0_32], %79 {strides = array<i32>} : memref<2x32xf32, #tpu.memory_space<vmem>>, vector<2x32xf32>,
    %82 = vector.extract_strided_slice %12 {offsets = [0, 2, 0], sizes = [2, 1, 128], strides = [1, 1, 1]} : vector<2x8x128xf32> to vector<2x1x128xf32>
    %83 = vector.shape_cast %82 : vector<2x1x128xf32> to vector<2x128xf32>
    %c0_33 = arith.constant 0 : index
    %c0_34 = arith.constant 0 : index
    %84 = vector.load %arg10[%c0_33, %c0_34] : memref<2x32xf32, #tpu.memory_space<vmem>>, vector<2x32xf32>
    %85 = arith.truncf %84 : vector<2x32xf32> to vector<2x32xbf16>
    %cst_35 = arith.constant dense<0.000000e+00> : vector<2x128xf32>
    %86 = tpu.matmul %85, %13, %cst_35 {dimension_numbers = #tpu.dot_dimension_numbers<[1], [0], [0], [1], [0, 0, 1, 1], [], []>} : vector<2x32xbf16>, vector<32x128xbf16>, vector<2x128xf32> -> vector<2x128xf32>
    %87 = arith.addf %83, %86 : vector<2x128xf32>
    %88 = vector.extract_strided_slice %87 {offsets = [0, 0], sizes = [2, 32], strides = [1, 1]} : vector<2x128xf32> to vector<2x32xf32>
    %89 = arith.negf %88 : vector<2x32xf32>
    %90 = math.exp %89 : vector<2x32xf32>
    %cst_36 = arith.constant 1.000000e+00 : f32
    %91 = vector.broadcast %cst_36 : f32 to vector<2x32xf32>
    %92 = arith.addf %91, %90 : vector<2x32xf32>
    %93 = arith.divf %91, %92 : vector<2x32xf32>
    %94 = vector.extract_strided_slice %87 {offsets = [0, 32], sizes = [2, 32], strides = [1, 1]} : vector<2x128xf32> to vector<2x32xf32>
    %95 = arith.negf %94 : vector<2x32xf32>
    %96 = math.exp %95 : vector<2x32xf32>
    %cst_37 = arith.constant 1.000000e+00 : f32
    %97 = vector.broadcast %cst_37 : f32 to vector<2x32xf32>
    %98 = arith.addf %97, %96 : vector<2x32xf32>
    %99 = arith.divf %97, %98 : vector<2x32xf32>
    %100 = vector.extract_strided_slice %87 {offsets = [0, 64], sizes = [2, 32], strides = [1, 1]} : vector<2x128xf32> to vector<2x32xf32>
    %101 = math.tanh %100 : vector<2x32xf32>
    %102 = vector.extract_strided_slice %87 {offsets = [0, 96], sizes = [2, 32], strides = [1, 1]} : vector<2x128xf32> to vector<2x32xf32>
    %103 = arith.negf %102 : vector<2x32xf32>
    %104 = math.exp %103 : vector<2x32xf32>
    %cst_38 = arith.constant 1.000000e+00 : f32
    %105 = vector.broadcast %cst_38 : f32 to vector<2x32xf32>
    %106 = arith.addf %105, %104 : vector<2x32xf32>
    %107 = arith.divf %105, %106 : vector<2x32xf32>
    %c0_39 = arith.constant 0 : index
    %c0_40 = arith.constant 0 : index
    %108 = vector.load %arg11[%c0_39, %c0_40] : memref<2x32xf32, #tpu.memory_space<vmem>>, vector<2x32xf32>
    %109 = arith.mulf %99, %108 : vector<2x32xf32>
    %110 = arith.mulf %93, %101 : vector<2x32xf32>
    %111 = arith.addf %109, %110 : vector<2x32xf32>
    %112 = math.tanh %111 : vector<2x32xf32>
    %113 = arith.mulf %107, %112 : vector<2x32xf32>
    %c0_41 = arith.constant 0 : index
    %c0_42 = arith.constant 0 : index
    %114 = vector.load %arg11[%c0_41, %c0_42] : memref<2x32xf32, #tpu.memory_space<vmem>>, vector<2x32xf32>
    tpu.vector_store %arg11[%c0_41, %c0_42], %111 {strides = array<i32>} : memref<2x32xf32, #tpu.memory_space<vmem>>, vector<2x32xf32>,
    %c0_43 = arith.constant 0 : index
    %c0_44 = arith.constant 0 : index
    %115 = vector.load %arg10[%c0_43, %c0_44] : memref<2x32xf32, #tpu.memory_space<vmem>>, vector<2x32xf32>
    tpu.vector_store %arg10[%c0_43, %c0_44], %113 {strides = array<i32>} : memref<2x32xf32, #tpu.memory_space<vmem>>, vector<2x32xf32>,
    %116 = vector.extract_strided_slice %12 {offsets = [0, 3, 0], sizes = [2, 1, 128], strides = [1, 1, 1]} : vector<2x8x128xf32> to vector<2x1x128xf32>
    %117 = vector.shape_cast %116 : vector<2x1x128xf32> to vector<2x128xf32>
    %c0_45 = arith.constant 0 : index
    %c0_46 = arith.constant 0 : index
    %118 = vector.load %arg10[%c0_45, %c0_46] : memref<2x32xf32, #tpu.memory_space<vmem>>, vector<2x32xf32>
    %119 = arith.truncf %118 : vector<2x32xf32> to vector<2x32xbf16>
    %cst_47 = arith.constant dense<0.000000e+00> : vector<2x128xf32>
    %120 = tpu.matmul %119, %13, %cst_47 {dimension_numbers = #tpu.dot_dimension_numbers<[1], [0], [0], [1], [0, 0, 1, 1], [], []>} : vector<2x32xbf16>, vector<32x128xbf16>, vector<2x128xf32> -> vector<2x128xf32>
    %121 = arith.addf %117, %120 : vector<2x128xf32>
    %122 = vector.extract_strided_slice %121 {offsets = [0, 0], sizes = [2, 32], strides = [1, 1]} : vector<2x128xf32> to vector<2x32xf32>
    %123 = arith.negf %122 : vector<2x32xf32>
    %124 = math.exp %123 : vector<2x32xf32>
    %cst_48 = arith.constant 1.000000e+00 : f32
    %125 = vector.broadcast %cst_48 : f32 to vector<2x32xf32>
    %126 = arith.addf %125, %124 : vector<2x32xf32>
    %127 = arith.divf %125, %126 : vector<2x32xf32>
    %128 = vector.extract_strided_slice %121 {offsets = [0, 32], sizes = [2, 32], strides = [1, 1]} : vector<2x128xf32> to vector<2x32xf32>
    %129 = arith.negf %128 : vector<2x32xf32>
    %130 = math.exp %129 : vector<2x32xf32>
    %cst_49 = arith.constant 1.000000e+00 : f32
    %131 = vector.broadcast %cst_49 : f32 to vector<2x32xf32>
    %132 = arith.addf %131, %130 : vector<2x32xf32>
    %133 = arith.divf %131, %132 : vector<2x32xf32>
    %134 = vector.extract_strided_slice %121 {offsets = [0, 64], sizes = [2, 32], strides = [1, 1]} : vector<2x128xf32> to vector<2x32xf32>
    %135 = math.tanh %134 : vector<2x32xf32>
    %136 = vector.extract_strided_slice %121 {offsets = [0, 96], sizes = [2, 32], strides = [1, 1]} : vector<2x128xf32> to vector<2x32xf32>
    %137 = arith.negf %136 : vector<2x32xf32>
    %138 = math.exp %137 : vector<2x32xf32>
    %cst_50 = arith.constant 1.000000e+00 : f32
    %139 = vector.broadcast %cst_50 : f32 to vector<2x32xf32>
    %140 = arith.addf %139, %138 : vector<2x32xf32>
    %141 = arith.divf %139, %140 : vector<2x32xf32>
    %c0_51 = arith.constant 0 : index
    %c0_52 = arith.constant 0 : index
    %142 = vector.load %arg11[%c0_51, %c0_52] : memref<2x32xf32, #tpu.memory_space<vmem>>, vector<2x32xf32>
    %143 = arith.mulf %133, %142 : vector<2x32xf32>
    %144 = arith.mulf %127, %135 : vector<2x32xf32>
    %145 = arith.addf %143, %144 : vector<2x32xf32>
    %146 = math.tanh %145 : vector<2x32xf32>
    %147 = arith.mulf %141, %146 : vector<2x32xf32>
    %c0_53 = arith.constant 0 : index
    %c0_54 = arith.constant 0 : index
    %148 = vector.load %arg11[%c0_53, %c0_54] : memref<2x32xf32, #tpu.memory_space<vmem>>, vector<2x32xf32>
    tpu.vector_store %arg11[%c0_53, %c0_54], %145 {strides = array<i32>} : memref<2x32xf32, #tpu.memory_space<vmem>>, vector<2x32xf32>,
    %c0_55 = arith.constant 0 : index
    %c0_56 = arith.constant 0 : index
    %149 = vector.load %arg10[%c0_55, %c0_56] : memref<2x32xf32, #tpu.memory_space<vmem>>, vector<2x32xf32>
    tpu.vector_store %arg10[%c0_55, %c0_56], %147 {strides = array<i32>} : memref<2x32xf32, #tpu.memory_space<vmem>>, vector<2x32xf32>,
    %150 = vector.extract_strided_slice %12 {offsets = [0, 4, 0], sizes = [2, 1, 128], strides = [1, 1, 1]} : vector<2x8x128xf32> to vector<2x1x128xf32>
    %151 = vector.shape_cast %150 : vector<2x1x128xf32> to vector<2x128xf32>
    %c0_57 = arith.constant 0 : index
    %c0_58 = arith.constant 0 : index
    %152 = vector.load %arg10[%c0_57, %c0_58] : memref<2x32xf32, #tpu.memory_space<vmem>>, vector<2x32xf32>
    %153 = arith.truncf %152 : vector<2x32xf32> to vector<2x32xbf16>
    %cst_59 = arith.constant dense<0.000000e+00> : vector<2x128xf32>
    %154 = tpu.matmul %153, %13, %cst_59 {dimension_numbers = #tpu.dot_dimension_numbers<[1], [0], [0], [1], [0, 0, 1, 1], [], []>} : vector<2x32xbf16>, vector<32x128xbf16>, vector<2x128xf32> -> vector<2x128xf32>
    %155 = arith.addf %151, %154 : vector<2x128xf32>
    %156 = vector.extract_strided_slice %155 {offsets = [0, 0], sizes = [2, 32], strides = [1, 1]} : vector<2x128xf32> to vector<2x32xf32>
    %157 = arith.negf %156 : vector<2x32xf32>
    %158 = math.exp %157 : vector<2x32xf32>
    %cst_60 = arith.constant 1.000000e+00 : f32
    %159 = vector.broadcast %cst_60 : f32 to vector<2x32xf32>
    %160 = arith.addf %159, %158 : vector<2x32xf32>
    %161 = arith.divf %159, %160 : vector<2x32xf32>
    %162 = vector.extract_strided_slice %155 {offsets = [0, 32], sizes = [2, 32], strides = [1, 1]} : vector<2x128xf32> to vector<2x32xf32>
    %163 = arith.negf %162 : vector<2x32xf32>
    %164 = math.exp %163 : vector<2x32xf32>
    %cst_61 = arith.constant 1.000000e+00 : f32
    %165 = vector.broadcast %cst_61 : f32 to vector<2x32xf32>
    %166 = arith.addf %165, %164 : vector<2x32xf32>
    %167 = arith.divf %165, %166 : vector<2x32xf32>
    %168 = vector.extract_strided_slice %155 {offsets = [0, 64], sizes = [2, 32], strides = [1, 1]} : vector<2x128xf32> to vector<2x32xf32>
    %169 = math.tanh %168 : vector<2x32xf32>
    %170 = vector.extract_strided_slice %155 {offsets = [0, 96], sizes = [2, 32], strides = [1, 1]} : vector<2x128xf32> to vector<2x32xf32>
    %171 = arith.negf %170 : vector<2x32xf32>
    %172 = math.exp %171 : vector<2x32xf32>
    %cst_62 = arith.constant 1.000000e+00 : f32
    %173 = vector.broadcast %cst_62 : f32 to vector<2x32xf32>
    %174 = arith.addf %173, %172 : vector<2x32xf32>
    %175 = arith.divf %173, %174 : vector<2x32xf32>
    %c0_63 = arith.constant 0 : index
    %c0_64 = arith.constant 0 : index
    %176 = vector.load %arg11[%c0_63, %c0_64] : memref<2x32xf32, #tpu.memory_space<vmem>>, vector<2x32xf32>
    %177 = arith.mulf %167, %176 : vector<2x32xf32>
    %178 = arith.mulf %161, %169 : vector<2x32xf32>
    %179 = arith.addf %177, %178 : vector<2x32xf32>
    %180 = math.tanh %179 : vector<2x32xf32>
    %181 = arith.mulf %175, %180 : vector<2x32xf32>
    %c0_65 = arith.constant 0 : index
    %c0_66 = arith.constant 0 : index
    %182 = vector.load %arg11[%c0_65, %c0_66] : memref<2x32xf32, #tpu.memory_space<vmem>>, vector<2x32xf32>
    tpu.vector_store %arg11[%c0_65, %c0_66], %179 {strides = array<i32>} : memref<2x32xf32, #tpu.memory_space<vmem>>, vector<2x32xf32>,
    %c0_67 = arith.constant 0 : index
    %c0_68 = arith.constant 0 : index
    %183 = vector.load %arg10[%c0_67, %c0_68] : memref<2x32xf32, #tpu.memory_space<vmem>>, vector<2x32xf32>
    tpu.vector_store %arg10[%c0_67, %c0_68], %181 {strides = array<i32>} : memref<2x32xf32, #tpu.memory_space<vmem>>, vector<2x32xf32>,
    %184 = vector.extract_strided_slice %12 {offsets = [0, 5, 0], sizes = [2, 1, 128], strides = [1, 1, 1]} : vector<2x8x128xf32> to vector<2x1x128xf32>
    %185 = vector.shape_cast %184 : vector<2x1x128xf32> to vector<2x128xf32>
    %c0_69 = arith.constant 0 : index
    %c0_70 = arith.constant 0 : index
    %186 = vector.load %arg10[%c0_69, %c0_70] : memref<2x32xf32, #tpu.memory_space<vmem>>, vector<2x32xf32>
    %187 = arith.truncf %186 : vector<2x32xf32> to vector<2x32xbf16>
    %cst_71 = arith.constant dense<0.000000e+00> : vector<2x128xf32>
    %188 = tpu.matmul %187, %13, %cst_71 {dimension_numbers = #tpu.dot_dimension_numbers<[1], [0], [0], [1], [0, 0, 1, 1], [], []>} : vector<2x32xbf16>, vector<32x128xbf16>, vector<2x128xf32> -> vector<2x128xf32>
    %189 = arith.addf %185, %188 : vector<2x128xf32>
    %190 = vector.extract_strided_slice %189 {offsets = [0, 0], sizes = [2, 32], strides = [1, 1]} : vector<2x128xf32> to vector<2x32xf32>
    %191 = arith.negf %190 : vector<2x32xf32>
    %192 = math.exp %191 : vector<2x32xf32>
    %cst_72 = arith.constant 1.000000e+00 : f32
    %193 = vector.broadcast %cst_72 : f32 to vector<2x32xf32>
    %194 = arith.addf %193, %192 : vector<2x32xf32>
    %195 = arith.divf %193, %194 : vector<2x32xf32>
    %196 = vector.extract_strided_slice %189 {offsets = [0, 32], sizes = [2, 32], strides = [1, 1]} : vector<2x128xf32> to vector<2x32xf32>
    %197 = arith.negf %196 : vector<2x32xf32>
    %198 = math.exp %197 : vector<2x32xf32>
    %cst_73 = arith.constant 1.000000e+00 : f32
    %199 = vector.broadcast %cst_73 : f32 to vector<2x32xf32>
    %200 = arith.addf %199, %198 : vector<2x32xf32>
    %201 = arith.divf %199, %200 : vector<2x32xf32>
    %202 = vector.extract_strided_slice %189 {offsets = [0, 64], sizes = [2, 32], strides = [1, 1]} : vector<2x128xf32> to vector<2x32xf32>
    %203 = math.tanh %202 : vector<2x32xf32>
    %204 = vector.extract_strided_slice %189 {offsets = [0, 96], sizes = [2, 32], strides = [1, 1]} : vector<2x128xf32> to vector<2x32xf32>
    %205 = arith.negf %204 : vector<2x32xf32>
    %206 = math.exp %205 : vector<2x32xf32>
    %cst_74 = arith.constant 1.000000e+00 : f32
    %207 = vector.broadcast %cst_74 : f32 to vector<2x32xf32>
    %208 = arith.addf %207, %206 : vector<2x32xf32>
    %209 = arith.divf %207, %208 : vector<2x32xf32>
    %c0_75 = arith.constant 0 : index
    %c0_76 = arith.constant 0 : index
    %210 = vector.load %arg11[%c0_75, %c0_76] : memref<2x32xf32, #tpu.memory_space<vmem>>, vector<2x32xf32>
    %211 = arith.mulf %201, %210 : vector<2x32xf32>
    %212 = arith.mulf %195, %203 : vector<2x32xf32>
    %213 = arith.addf %211, %212 : vector<2x32xf32>
    %214 = math.tanh %213 : vector<2x32xf32>
    %215 = arith.mulf %209, %214 : vector<2x32xf32>
    %c0_77 = arith.constant 0 : index
    %c0_78 = arith.constant 0 : index
    %216 = vector.load %arg11[%c0_77, %c0_78] : memref<2x32xf32, #tpu.memory_space<vmem>>, vector<2x32xf32>
    tpu.vector_store %arg11[%c0_77, %c0_78], %213 {strides = array<i32>} : memref<2x32xf32, #tpu.memory_space<vmem>>, vector<2x32xf32>,
    %c0_79 = arith.constant 0 : index
    %c0_80 = arith.constant 0 : index
    %217 = vector.load %arg10[%c0_79, %c0_80] : memref<2x32xf32, #tpu.memory_space<vmem>>, vector<2x32xf32>
    tpu.vector_store %arg10[%c0_79, %c0_80], %215 {strides = array<i32>} : memref<2x32xf32, #tpu.memory_space<vmem>>, vector<2x32xf32>,
    %218 = vector.extract_strided_slice %12 {offsets = [0, 6, 0], sizes = [2, 1, 128], strides = [1, 1, 1]} : vector<2x8x128xf32> to vector<2x1x128xf32>
    %219 = vector.shape_cast %218 : vector<2x1x128xf32> to vector<2x128xf32>
    %c0_81 = arith.constant 0 : index
    %c0_82 = arith.constant 0 : index
    %220 = vector.load %arg10[%c0_81, %c0_82] : memref<2x32xf32, #tpu.memory_space<vmem>>, vector<2x32xf32>
    %221 = arith.truncf %220 : vector<2x32xf32> to vector<2x32xbf16>
    %cst_83 = arith.constant dense<0.000000e+00> : vector<2x128xf32>
    %222 = tpu.matmul %221, %13, %cst_83 {dimension_numbers = #tpu.dot_dimension_numbers<[1], [0], [0], [1], [0, 0, 1, 1], [], []>} : vector<2x32xbf16>, vector<32x128xbf16>, vector<2x128xf32> -> vector<2x128xf32>
    %223 = arith.addf %219, %222 : vector<2x128xf32>
    %224 = vector.extract_strided_slice %223 {offsets = [0, 0], sizes = [2, 32], strides = [1, 1]} : vector<2x128xf32> to vector<2x32xf32>
    %225 = arith.negf %224 : vector<2x32xf32>
    %226 = math.exp %225 : vector<2x32xf32>
    %cst_84 = arith.constant 1.000000e+00 : f32
    %227 = vector.broadcast %cst_84 : f32 to vector<2x32xf32>
    %228 = arith.addf %227, %226 : vector<2x32xf32>
    %229 = arith.divf %227, %228 : vector<2x32xf32>
    %230 = vector.extract_strided_slice %223 {offsets = [0, 32], sizes = [2, 32], strides = [1, 1]} : vector<2x128xf32> to vector<2x32xf32>
    %231 = arith.negf %230 : vector<2x32xf32>
    %232 = math.exp %231 : vector<2x32xf32>
    %cst_85 = arith.constant 1.000000e+00 : f32
    %233 = vector.broadcast %cst_85 : f32 to vector<2x32xf32>
    %234 = arith.addf %233, %232 : vector<2x32xf32>
    %235 = arith.divf %233, %234 : vector<2x32xf32>
    %236 = vector.extract_strided_slice %223 {offsets = [0, 64], sizes = [2, 32], strides = [1, 1]} : vector<2x128xf32> to vector<2x32xf32>
    %237 = math.tanh %236 : vector<2x32xf32>
    %238 = vector.extract_strided_slice %223 {offsets = [0, 96], sizes = [2, 32], strides = [1, 1]} : vector<2x128xf32> to vector<2x32xf32>
    %239 = arith.negf %238 : vector<2x32xf32>
    %240 = math.exp %239 : vector<2x32xf32>
    %cst_86 = arith.constant 1.000000e+00 : f32
    %241 = vector.broadcast %cst_86 : f32 to vector<2x32xf32>
    %242 = arith.addf %241, %240 : vector<2x32xf32>
    %243 = arith.divf %241, %242 : vector<2x32xf32>
    %c0_87 = arith.constant 0 : index
    %c0_88 = arith.constant 0 : index
    %244 = vector.load %arg11[%c0_87, %c0_88] : memref<2x32xf32, #tpu.memory_space<vmem>>, vector<2x32xf32>
    %245 = arith.mulf %235, %244 : vector<2x32xf32>
    %246 = arith.mulf %229, %237 : vector<2x32xf32>
    %247 = arith.addf %245, %246 : vector<2x32xf32>
    %248 = math.tanh %247 : vector<2x32xf32>
    %249 = arith.mulf %243, %248 : vector<2x32xf32>
    %c0_89 = arith.constant 0 : index
    %c0_90 = arith.constant 0 : index
    %250 = vector.load %arg11[%c0_89, %c0_90] : memref<2x32xf32, #tpu.memory_space<vmem>>, vector<2x32xf32>
    tpu.vector_store %arg11[%c0_89, %c0_90], %247 {strides = array<i32>} : memref<2x32xf32, #tpu.memory_space<vmem>>, vector<2x32xf32>,
    %c0_91 = arith.constant 0 : index
    %c0_92 = arith.constant 0 : index
    %251 = vector.load %arg10[%c0_91, %c0_92] : memref<2x32xf32, #tpu.memory_space<vmem>>, vector<2x32xf32>
    tpu.vector_store %arg10[%c0_91, %c0_92], %249 {strides = array<i32>} : memref<2x32xf32, #tpu.memory_space<vmem>>, vector<2x32xf32>,
    %252 = vector.extract_strided_slice %12 {offsets = [0, 7, 0], sizes = [2, 1, 128], strides = [1, 1, 1]} : vector<2x8x128xf32> to vector<2x1x128xf32>
    %253 = vector.shape_cast %252 : vector<2x1x128xf32> to vector<2x128xf32>
    %c0_93 = arith.constant 0 : index
    %c0_94 = arith.constant 0 : index
    %254 = vector.load %arg10[%c0_93, %c0_94] : memref<2x32xf32, #tpu.memory_space<vmem>>, vector<2x32xf32>
    %255 = arith.truncf %254 : vector<2x32xf32> to vector<2x32xbf16>
    %cst_95 = arith.constant dense<0.000000e+00> : vector<2x128xf32>
    %256 = tpu.matmul %255, %13, %cst_95 {dimension_numbers = #tpu.dot_dimension_numbers<[1], [0], [0], [1], [0, 0, 1, 1], [], []>} : vector<2x32xbf16>, vector<32x128xbf16>, vector<2x128xf32> -> vector<2x128xf32>
    %257 = arith.addf %253, %256 : vector<2x128xf32>
    %258 = vector.extract_strided_slice %257 {offsets = [0, 0], sizes = [2, 32], strides = [1, 1]} : vector<2x128xf32> to vector<2x32xf32>
    %259 = arith.negf %258 : vector<2x32xf32>
    %260 = math.exp %259 : vector<2x32xf32>
    %cst_96 = arith.constant 1.000000e+00 : f32
    %261 = vector.broadcast %cst_96 : f32 to vector<2x32xf32>
    %262 = arith.addf %261, %260 : vector<2x32xf32>
    %263 = arith.divf %261, %262 : vector<2x32xf32>
    %264 = vector.extract_strided_slice %257 {offsets = [0, 32], sizes = [2, 32], strides = [1, 1]} : vector<2x128xf32> to vector<2x32xf32>
    %265 = arith.negf %264 : vector<2x32xf32>
    %266 = math.exp %265 : vector<2x32xf32>
    %cst_97 = arith.constant 1.000000e+00 : f32
    %267 = vector.broadcast %cst_97 : f32 to vector<2x32xf32>
    %268 = arith.addf %267, %266 : vector<2x32xf32>
    %269 = arith.divf %267, %268 : vector<2x32xf32>
    %270 = vector.extract_strided_slice %257 {offsets = [0, 64], sizes = [2, 32], strides = [1, 1]} : vector<2x128xf32> to vector<2x32xf32>
    %271 = math.tanh %270 : vector<2x32xf32>
    %272 = vector.extract_strided_slice %257 {offsets = [0, 96], sizes = [2, 32], strides = [1, 1]} : vector<2x128xf32> to vector<2x32xf32>
    %273 = arith.negf %272 : vector<2x32xf32>
    %274 = math.exp %273 : vector<2x32xf32>
    %cst_98 = arith.constant 1.000000e+00 : f32
    %275 = vector.broadcast %cst_98 : f32 to vector<2x32xf32>
    %276 = arith.addf %275, %274 : vector<2x32xf32>
    %277 = arith.divf %275, %276 : vector<2x32xf32>
    %c0_99 = arith.constant 0 : index
    %c0_100 = arith.constant 0 : index
    %278 = vector.load %arg11[%c0_99, %c0_100] : memref<2x32xf32, #tpu.memory_space<vmem>>, vector<2x32xf32>
    %279 = arith.mulf %269, %278 : vector<2x32xf32>
    %280 = arith.mulf %263, %271 : vector<2x32xf32>
    %281 = arith.addf %279, %280 : vector<2x32xf32>
    %282 = math.tanh %281 : vector<2x32xf32>
    %283 = arith.mulf %277, %282 : vector<2x32xf32>
    %c0_101 = arith.constant 0 : index
    %c0_102 = arith.constant 0 : index
    %284 = vector.load %arg11[%c0_101, %c0_102] : memref<2x32xf32, #tpu.memory_space<vmem>>, vector<2x32xf32>
    tpu.vector_store %arg11[%c0_101, %c0_102], %281 {strides = array<i32>} : memref<2x32xf32, #tpu.memory_space<vmem>>, vector<2x32xf32>,
    %c0_103 = arith.constant 0 : index
    %c0_104 = arith.constant 0 : index
    %285 = vector.load %arg10[%c0_103, %c0_104] : memref<2x32xf32, #tpu.memory_space<vmem>>, vector<2x32xf32>
    tpu.vector_store %arg10[%c0_103, %c0_104], %283 {strides = array<i32>} : memref<2x32xf32, #tpu.memory_space<vmem>>, vector<2x32xf32>,
    %c0_i32_105 = arith.constant 0 : i32
    %286 = arith.cmpi eq, %arg0, %c0_i32_105 : i32
    %287 = arith.extui %286 : i1 to i32
    %c0_i32_106 = arith.constant 0 : i32
    %288 = arith.cmpi ne, %287, %c0_i32_106 : i32
    scf.if %288 {
      %c0_107 = arith.constant 0 : index
      %c0_108 = arith.constant 0 : index
      %289 = vector.load %arg10[%c0_107, %c0_108] : memref<2x32xf32, #tpu.memory_space<vmem>>, vector<2x32xf32>
      %290 = arith.truncf %289 : vector<2x32xf32> to vector<2x32xbf16>
      %c0_109 = arith.constant 0 : index
      %c0_110 = arith.constant 0 : index
      %291 = vector.load %arg5[%c0_109, %c0_110] : memref<32x32xbf16, #tpu.memory_space<vmem>>, vector<32x32xbf16>
      %cst_111 = arith.constant dense<0.000000e+00> : vector<2x32xf32>
      %292 = tpu.matmul %290, %291, %cst_111 {dimension_numbers = #tpu.dot_dimension_numbers<[1], [0], [0], [1], [0, 0, 1, 1], [], []>} : vector<2x32xbf16>, vector<32x32xbf16>, vector<2x32xf32> -> vector<2x32xf32>
      %c0_112 = arith.constant 0 : index
      %c0_113 = arith.constant 0 : index
      %293 = vector.load %arg6[%c0_112, %c0_113] : memref<1x32xf32, #tpu.memory_space<vmem>>, vector<1x32xf32>
      %294 = vector.broadcast %293 : vector<1x32xf32> to vector<2x32xf32>
      %295 = arith.addf %292, %294 : vector<2x32xf32>
      %296 = arith.truncf %295 : vector<2x32xf32> to vector<2x32xbf16>
      %c0_114 = arith.constant 0 : index
      %c0_115 = arith.constant 0 : index
      %297 = vector.load %arg7[%c0_114, %c0_115] : memref<32x128xbf16, #tpu.memory_space<vmem>>, vector<32x128xbf16>
      %cst_116 = arith.constant dense<0.000000e+00> : vector<2x128xf32>
      %298 = tpu.matmul %296, %297, %cst_116 {dimension_numbers = #tpu.dot_dimension_numbers<[1], [0], [0], [1], [0, 0, 1, 1], [], []>} : vector<2x32xbf16>, vector<32x128xbf16>, vector<2x128xf32> -> vector<2x128xf32>
      %c0_117 = arith.constant 0 : index
      %c0_118 = arith.constant 0 : index
      %299 = vector.load %arg8[%c0_117, %c0_118] : memref<1x128xf32, #tpu.memory_space<vmem>>, vector<1x128xf32>
      %300 = vector.broadcast %299 : vector<1x128xf32> to vector<2x128xf32>
      %301 = arith.addf %298, %300 : vector<2x128xf32>
      %c0_119 = arith.constant 0 : index
      %c0_120 = arith.constant 0 : index
      %302 = vector.load %arg9[%c0_119, %c0_120] : memref<2x128xf32, #tpu.memory_space<vmem>>, vector<2x128xf32>
      tpu.vector_store %arg9[%c0_119, %c0_120], %301 {strides = array<i32>} : memref<2x128xf32, #tpu.memory_space<vmem>>, vector<2x128xf32>,
    } else {
    }
    return
  }
  func.func @transform_0(%arg0: i32) -> (i32, i32, i32) {
    %c0_i32 = arith.constant 0 : i32
    %c0_i32_0 = arith.constant 0 : i32
    %c0_i32_1 = arith.constant 0 : i32
    return %c0_i32, %arg0, %c0_i32_0 : i32, i32, i32
  }
  func.func @transform_1(%arg0: i32) -> (i32, i32) {
    %c0_i32 = arith.constant 0 : i32
    %c0_i32_0 = arith.constant 0 : i32
    %c0_i32_1 = arith.constant 0 : i32
    return %c0_i32, %c0_i32_0 : i32, i32
  }
  func.func @transform_2(%arg0: i32) -> (i32, i32) {
    %c0_i32 = arith.constant 0 : i32
    %c0_i32_0 = arith.constant 0 : i32
    %c0_i32_1 = arith.constant 0 : i32
    return %c0_i32, %c0_i32_0 : i32, i32
  }
  func.func @transform_3(%arg0: i32) -> (i32, i32) {
    %c0_i32 = arith.constant 0 : i32
    %c0_i32_0 = arith.constant 0 : i32
    %c0_i32_1 = arith.constant 0 : i32
    return %c0_i32, %c0_i32_0 : i32, i32
  }
  func.func @transform_4(%arg0: i32) -> (i32, i32) {
    %c0_i32 = arith.constant 0 : i32
    %c0_i32_0 = arith.constant 0 : i32
    %c0_i32_1 = arith.constant 0 : i32
    return %c0_i32, %c0_i32_0 : i32, i32
  }
  func.func @transform_5(%arg0: i32) -> (i32, i32) {
    %c0_i32 = arith.constant 0 : i32
    %c0_i32_0 = arith.constant 0 : i32
    %c0_i32_1 = arith.constant 0 : i32
    return %c0_i32, %c0_i32_0 : i32, i32
  }
  func.func @transform_6(%arg0: i32) -> (i32, i32) {
    %c0_i32 = arith.constant 0 : i32
    %c0_i32_0 = arith.constant 0 : i32
    %c0_i32_1 = arith.constant 0 : i32
    return %c0_i32, %c0_i32_0 : i32, i32
  }
  func.func @transform_7(%arg0: i32) -> (i32, i32) {
    %c0_i32 = arith.constant 0 : i32
    %c0_i32_0 = arith.constant 0 : i32
    %c0_i32_1 = arith.constant 0 : i32
    return %c0_i32, %c0_i32_0 : i32, i32
  }
  func.func @transform_8(%arg0: i32) -> (i32, i32) {
    %c0_i32 = arith.constant 0 : i32
    %c0_i32_0 = arith.constant 0 : i32
    %c0_i32_1 = arith.constant 0 : i32
    return %c0_i32, %c0_i32_0 : i32, i32
  }
}

module attributes {stable_mosaic.version = 11 : i64} {
  func.func @_lstm_seq_kernel(%arg0: i32, %arg1: memref<2x8x48xf32, #tpu.memory_space<vmem>>, %arg2: memref<48x128xbf16, #tpu.memory_space<vmem>>, %arg3: memref<32x128xbf16, #tpu.memory_space<vmem>>, %arg4: memref<1x128xf32, #tpu.memory_space<vmem>>, %arg5: memref<2x8x32xf32, #tpu.memory_space<vmem>>, %arg6: memref<2x32xf32, #tpu.memory_space<vmem>>, %arg7: memref<2x32xf32, #tpu.memory_space<vmem>>) attributes {dimension_semantics = [#tpu.dimension_semantics<arbitrary>], iteration_bounds = array<i64: 1>, scalar_prefetch = 0 : i64, scratch_operands = 2 : i64, tpu.core_type = #tpu.core_type<tc>, window_params = [{transform_indices = @transform_0, window_bounds = array<i64: 2, 8, 48>}, {pipeline_mode = #tpu.pipeline_mode<synchronous>, transform_indices = @transform_1, window_bounds = array<i64: 48, 128>}, {pipeline_mode = #tpu.pipeline_mode<synchronous>, transform_indices = @transform_2, window_bounds = array<i64: 32, 128>}, {pipeline_mode = #tpu.pipeline_mode<synchronous>, transform_indices = @transform_3, window_bounds = array<i64: 1, 128>}, {transform_indices = @transform_4, window_bounds = array<i64: 2, 8, 32>}]} {
    %c0_i32 = arith.constant 0 : i32
    %0 = arith.cmpi eq, %arg0, %c0_i32 : i32
    %1 = arith.extui %0 : i1 to i32
    %c0_i32_0 = arith.constant 0 : i32
    %2 = arith.cmpi ne, %1, %c0_i32_0 : i32
    scf.if %2 {
      %cst_122 = arith.constant 0.000000e+00 : f32
      %310 = vector.broadcast %cst_122 : f32 to vector<2x32xf32>
      %c0_123 = arith.constant 0 : index
      %c0_124 = arith.constant 0 : index
      %311 = vector.load %arg6[%c0_123, %c0_124] : memref<2x32xf32, #tpu.memory_space<vmem>>, vector<2x32xf32>
      tpu.vector_store %arg6[%c0_123, %c0_124], %310 {strides = array<i32>} : memref<2x32xf32, #tpu.memory_space<vmem>>, vector<2x32xf32>,
      %cst_125 = arith.constant 0.000000e+00 : f32
      %312 = vector.broadcast %cst_125 : f32 to vector<2x32xf32>
      %c0_126 = arith.constant 0 : index
      %c0_127 = arith.constant 0 : index
      %313 = vector.load %arg7[%c0_126, %c0_127] : memref<2x32xf32, #tpu.memory_space<vmem>>, vector<2x32xf32>
      tpu.vector_store %arg7[%c0_126, %c0_127], %312 {strides = array<i32>} : memref<2x32xf32, #tpu.memory_space<vmem>>, vector<2x32xf32>,
    } else {
    }
    %c0 = arith.constant 0 : index
    %c0_1 = arith.constant 0 : index
    %c0_2 = arith.constant 0 : index
    %3 = vector.load %arg1[%c0, %c0_1, %c0_2] : memref<2x8x48xf32, #tpu.memory_space<vmem>>, vector<2x8x48xf32>
    %4 = vector.shape_cast %3 : vector<2x8x48xf32> to vector<16x48xf32>
    %5 = arith.truncf %4 : vector<16x48xf32> to vector<16x48xbf16>
    %c0_3 = arith.constant 0 : index
    %c0_4 = arith.constant 0 : index
    %6 = vector.load %arg2[%c0_3, %c0_4] : memref<48x128xbf16, #tpu.memory_space<vmem>>, vector<48x128xbf16>
    %cst = arith.constant dense<0.000000e+00> : vector<16x128xf32>
    %7 = tpu.matmul %5, %6, %cst {dimension_numbers = #tpu.dot_dimension_numbers<[1], [0], [0], [1], [0, 0, 1, 1], [], []>} : vector<16x48xbf16>, vector<48x128xbf16>, vector<16x128xf32> -> vector<16x128xf32>
    %8 = vector.shape_cast %7 : vector<16x128xf32> to vector<2x8x128xf32>
    %c0_5 = arith.constant 0 : index
    %c0_6 = arith.constant 0 : index
    %9 = vector.load %arg4[%c0_5, %c0_6] : memref<1x128xf32, #tpu.memory_space<vmem>>, vector<1x128xf32>
    %10 = vector.shape_cast %9 : vector<1x128xf32> to vector<1x1x128xf32>
    %11 = vector.broadcast %10 : vector<1x1x128xf32> to vector<2x8x128xf32>
    %12 = arith.addf %8, %11 : vector<2x8x128xf32>
    %c0_7 = arith.constant 0 : index
    %c0_8 = arith.constant 0 : index
    %13 = vector.load %arg3[%c0_7, %c0_8] : memref<32x128xbf16, #tpu.memory_space<vmem>>, vector<32x128xbf16>
    %14 = vector.extract_strided_slice %12 {offsets = [0, 0, 0], sizes = [2, 1, 128], strides = [1, 1, 1]} : vector<2x8x128xf32> to vector<2x1x128xf32>
    %15 = vector.shape_cast %14 : vector<2x1x128xf32> to vector<2x128xf32>
    %c0_9 = arith.constant 0 : index
    %c0_10 = arith.constant 0 : index
    %16 = vector.load %arg6[%c0_9, %c0_10] : memref<2x32xf32, #tpu.memory_space<vmem>>, vector<2x32xf32>
    %17 = arith.truncf %16 : vector<2x32xf32> to vector<2x32xbf16>
    %cst_11 = arith.constant dense<0.000000e+00> : vector<2x128xf32>
    %18 = tpu.matmul %17, %13, %cst_11 {dimension_numbers = #tpu.dot_dimension_numbers<[1], [0], [0], [1], [0, 0, 1, 1], [], []>} : vector<2x32xbf16>, vector<32x128xbf16>, vector<2x128xf32> -> vector<2x128xf32>
    %19 = arith.addf %15, %18 : vector<2x128xf32>
    %20 = vector.extract_strided_slice %19 {offsets = [0, 0], sizes = [2, 32], strides = [1, 1]} : vector<2x128xf32> to vector<2x32xf32>
    %21 = arith.negf %20 : vector<2x32xf32>
    %22 = math.exp %21 : vector<2x32xf32>
    %cst_12 = arith.constant 1.000000e+00 : f32
    %23 = vector.broadcast %cst_12 : f32 to vector<2x32xf32>
    %24 = arith.addf %23, %22 : vector<2x32xf32>
    %25 = arith.divf %23, %24 : vector<2x32xf32>
    %26 = vector.extract_strided_slice %19 {offsets = [0, 32], sizes = [2, 32], strides = [1, 1]} : vector<2x128xf32> to vector<2x32xf32>
    %27 = arith.negf %26 : vector<2x32xf32>
    %28 = math.exp %27 : vector<2x32xf32>
    %cst_13 = arith.constant 1.000000e+00 : f32
    %29 = vector.broadcast %cst_13 : f32 to vector<2x32xf32>
    %30 = arith.addf %29, %28 : vector<2x32xf32>
    %31 = arith.divf %29, %30 : vector<2x32xf32>
    %32 = vector.extract_strided_slice %19 {offsets = [0, 64], sizes = [2, 32], strides = [1, 1]} : vector<2x128xf32> to vector<2x32xf32>
    %33 = math.tanh %32 : vector<2x32xf32>
    %34 = vector.extract_strided_slice %19 {offsets = [0, 96], sizes = [2, 32], strides = [1, 1]} : vector<2x128xf32> to vector<2x32xf32>
    %35 = arith.negf %34 : vector<2x32xf32>
    %36 = math.exp %35 : vector<2x32xf32>
    %cst_14 = arith.constant 1.000000e+00 : f32
    %37 = vector.broadcast %cst_14 : f32 to vector<2x32xf32>
    %38 = arith.addf %37, %36 : vector<2x32xf32>
    %39 = arith.divf %37, %38 : vector<2x32xf32>
    %c0_15 = arith.constant 0 : index
    %c0_16 = arith.constant 0 : index
    %40 = vector.load %arg7[%c0_15, %c0_16] : memref<2x32xf32, #tpu.memory_space<vmem>>, vector<2x32xf32>
    %41 = arith.mulf %31, %40 : vector<2x32xf32>
    %42 = arith.mulf %25, %33 : vector<2x32xf32>
    %43 = arith.addf %41, %42 : vector<2x32xf32>
    %44 = math.tanh %43 : vector<2x32xf32>
    %45 = arith.mulf %39, %44 : vector<2x32xf32>
    %c0_17 = arith.constant 0 : index
    %c0_18 = arith.constant 0 : index
    %46 = vector.load %arg7[%c0_17, %c0_18] : memref<2x32xf32, #tpu.memory_space<vmem>>, vector<2x32xf32>
    tpu.vector_store %arg7[%c0_17, %c0_18], %43 {strides = array<i32>} : memref<2x32xf32, #tpu.memory_space<vmem>>, vector<2x32xf32>,
    %c0_19 = arith.constant 0 : index
    %c0_20 = arith.constant 0 : index
    %47 = vector.load %arg6[%c0_19, %c0_20] : memref<2x32xf32, #tpu.memory_space<vmem>>, vector<2x32xf32>
    tpu.vector_store %arg6[%c0_19, %c0_20], %45 {strides = array<i32>} : memref<2x32xf32, #tpu.memory_space<vmem>>, vector<2x32xf32>,
    %c0_21 = arith.constant 0 : index
    %c0_22 = arith.constant 0 : index
    %c0_23 = arith.constant 0 : index
    %48 = vector.load %arg5[%c0_21, %c0_22, %c0_23] : memref<2x8x32xf32, #tpu.memory_space<vmem>>, vector<2x1x32xf32>
    %49 = vector.shape_cast %48 : vector<2x1x32xf32> to vector<2x32xf32>
    %50 = vector.shape_cast %45 : vector<2x32xf32> to vector<2x1x32xf32>
    tpu.vector_store %arg5[%c0_21, %c0_22, %c0_23], %50 {strides = array<i32>} : memref<2x8x32xf32, #tpu.memory_space<vmem>>, vector<2x1x32xf32>,
    %51 = vector.extract_strided_slice %12 {offsets = [0, 1, 0], sizes = [2, 1, 128], strides = [1, 1, 1]} : vector<2x8x128xf32> to vector<2x1x128xf32>
    %52 = vector.shape_cast %51 : vector<2x1x128xf32> to vector<2x128xf32>
    %c0_24 = arith.constant 0 : index
    %c0_25 = arith.constant 0 : index
    %53 = vector.load %arg6[%c0_24, %c0_25] : memref<2x32xf32, #tpu.memory_space<vmem>>, vector<2x32xf32>
    %54 = arith.truncf %53 : vector<2x32xf32> to vector<2x32xbf16>
    %cst_26 = arith.constant dense<0.000000e+00> : vector<2x128xf32>
    %55 = tpu.matmul %54, %13, %cst_26 {dimension_numbers = #tpu.dot_dimension_numbers<[1], [0], [0], [1], [0, 0, 1, 1], [], []>} : vector<2x32xbf16>, vector<32x128xbf16>, vector<2x128xf32> -> vector<2x128xf32>
    %56 = arith.addf %52, %55 : vector<2x128xf32>
    %57 = vector.extract_strided_slice %56 {offsets = [0, 0], sizes = [2, 32], strides = [1, 1]} : vector<2x128xf32> to vector<2x32xf32>
    %58 = arith.negf %57 : vector<2x32xf32>
    %59 = math.exp %58 : vector<2x32xf32>
    %cst_27 = arith.constant 1.000000e+00 : f32
    %60 = vector.broadcast %cst_27 : f32 to vector<2x32xf32>
    %61 = arith.addf %60, %59 : vector<2x32xf32>
    %62 = arith.divf %60, %61 : vector<2x32xf32>
    %63 = vector.extract_strided_slice %56 {offsets = [0, 32], sizes = [2, 32], strides = [1, 1]} : vector<2x128xf32> to vector<2x32xf32>
    %64 = arith.negf %63 : vector<2x32xf32>
    %65 = math.exp %64 : vector<2x32xf32>
    %cst_28 = arith.constant 1.000000e+00 : f32
    %66 = vector.broadcast %cst_28 : f32 to vector<2x32xf32>
    %67 = arith.addf %66, %65 : vector<2x32xf32>
    %68 = arith.divf %66, %67 : vector<2x32xf32>
    %69 = vector.extract_strided_slice %56 {offsets = [0, 64], sizes = [2, 32], strides = [1, 1]} : vector<2x128xf32> to vector<2x32xf32>
    %70 = math.tanh %69 : vector<2x32xf32>
    %71 = vector.extract_strided_slice %56 {offsets = [0, 96], sizes = [2, 32], strides = [1, 1]} : vector<2x128xf32> to vector<2x32xf32>
    %72 = arith.negf %71 : vector<2x32xf32>
    %73 = math.exp %72 : vector<2x32xf32>
    %cst_29 = arith.constant 1.000000e+00 : f32
    %74 = vector.broadcast %cst_29 : f32 to vector<2x32xf32>
    %75 = arith.addf %74, %73 : vector<2x32xf32>
    %76 = arith.divf %74, %75 : vector<2x32xf32>
    %c0_30 = arith.constant 0 : index
    %c0_31 = arith.constant 0 : index
    %77 = vector.load %arg7[%c0_30, %c0_31] : memref<2x32xf32, #tpu.memory_space<vmem>>, vector<2x32xf32>
    %78 = arith.mulf %68, %77 : vector<2x32xf32>
    %79 = arith.mulf %62, %70 : vector<2x32xf32>
    %80 = arith.addf %78, %79 : vector<2x32xf32>
    %81 = math.tanh %80 : vector<2x32xf32>
    %82 = arith.mulf %76, %81 : vector<2x32xf32>
    %c0_32 = arith.constant 0 : index
    %c0_33 = arith.constant 0 : index
    %83 = vector.load %arg7[%c0_32, %c0_33] : memref<2x32xf32, #tpu.memory_space<vmem>>, vector<2x32xf32>
    tpu.vector_store %arg7[%c0_32, %c0_33], %80 {strides = array<i32>} : memref<2x32xf32, #tpu.memory_space<vmem>>, vector<2x32xf32>,
    %c0_34 = arith.constant 0 : index
    %c0_35 = arith.constant 0 : index
    %84 = vector.load %arg6[%c0_34, %c0_35] : memref<2x32xf32, #tpu.memory_space<vmem>>, vector<2x32xf32>
    tpu.vector_store %arg6[%c0_34, %c0_35], %82 {strides = array<i32>} : memref<2x32xf32, #tpu.memory_space<vmem>>, vector<2x32xf32>,
    %c0_36 = arith.constant 0 : index
    %c1 = arith.constant 1 : index
    %c0_37 = arith.constant 0 : index
    %85 = vector.load %arg5[%c0_36, %c1, %c0_37] : memref<2x8x32xf32, #tpu.memory_space<vmem>>, vector<2x1x32xf32>
    %86 = vector.shape_cast %85 : vector<2x1x32xf32> to vector<2x32xf32>
    %87 = vector.shape_cast %82 : vector<2x32xf32> to vector<2x1x32xf32>
    tpu.vector_store %arg5[%c0_36, %c1, %c0_37], %87 {strides = array<i32>} : memref<2x8x32xf32, #tpu.memory_space<vmem>>, vector<2x1x32xf32>,
    %88 = vector.extract_strided_slice %12 {offsets = [0, 2, 0], sizes = [2, 1, 128], strides = [1, 1, 1]} : vector<2x8x128xf32> to vector<2x1x128xf32>
    %89 = vector.shape_cast %88 : vector<2x1x128xf32> to vector<2x128xf32>
    %c0_38 = arith.constant 0 : index
    %c0_39 = arith.constant 0 : index
    %90 = vector.load %arg6[%c0_38, %c0_39] : memref<2x32xf32, #tpu.memory_space<vmem>>, vector<2x32xf32>
    %91 = arith.truncf %90 : vector<2x32xf32> to vector<2x32xbf16>
    %cst_40 = arith.constant dense<0.000000e+00> : vector<2x128xf32>
    %92 = tpu.matmul %91, %13, %cst_40 {dimension_numbers = #tpu.dot_dimension_numbers<[1], [0], [0], [1], [0, 0, 1, 1], [], []>} : vector<2x32xbf16>, vector<32x128xbf16>, vector<2x128xf32> -> vector<2x128xf32>
    %93 = arith.addf %89, %92 : vector<2x128xf32>
    %94 = vector.extract_strided_slice %93 {offsets = [0, 0], sizes = [2, 32], strides = [1, 1]} : vector<2x128xf32> to vector<2x32xf32>
    %95 = arith.negf %94 : vector<2x32xf32>
    %96 = math.exp %95 : vector<2x32xf32>
    %cst_41 = arith.constant 1.000000e+00 : f32
    %97 = vector.broadcast %cst_41 : f32 to vector<2x32xf32>
    %98 = arith.addf %97, %96 : vector<2x32xf32>
    %99 = arith.divf %97, %98 : vector<2x32xf32>
    %100 = vector.extract_strided_slice %93 {offsets = [0, 32], sizes = [2, 32], strides = [1, 1]} : vector<2x128xf32> to vector<2x32xf32>
    %101 = arith.negf %100 : vector<2x32xf32>
    %102 = math.exp %101 : vector<2x32xf32>
    %cst_42 = arith.constant 1.000000e+00 : f32
    %103 = vector.broadcast %cst_42 : f32 to vector<2x32xf32>
    %104 = arith.addf %103, %102 : vector<2x32xf32>
    %105 = arith.divf %103, %104 : vector<2x32xf32>
    %106 = vector.extract_strided_slice %93 {offsets = [0, 64], sizes = [2, 32], strides = [1, 1]} : vector<2x128xf32> to vector<2x32xf32>
    %107 = math.tanh %106 : vector<2x32xf32>
    %108 = vector.extract_strided_slice %93 {offsets = [0, 96], sizes = [2, 32], strides = [1, 1]} : vector<2x128xf32> to vector<2x32xf32>
    %109 = arith.negf %108 : vector<2x32xf32>
    %110 = math.exp %109 : vector<2x32xf32>
    %cst_43 = arith.constant 1.000000e+00 : f32
    %111 = vector.broadcast %cst_43 : f32 to vector<2x32xf32>
    %112 = arith.addf %111, %110 : vector<2x32xf32>
    %113 = arith.divf %111, %112 : vector<2x32xf32>
    %c0_44 = arith.constant 0 : index
    %c0_45 = arith.constant 0 : index
    %114 = vector.load %arg7[%c0_44, %c0_45] : memref<2x32xf32, #tpu.memory_space<vmem>>, vector<2x32xf32>
    %115 = arith.mulf %105, %114 : vector<2x32xf32>
    %116 = arith.mulf %99, %107 : vector<2x32xf32>
    %117 = arith.addf %115, %116 : vector<2x32xf32>
    %118 = math.tanh %117 : vector<2x32xf32>
    %119 = arith.mulf %113, %118 : vector<2x32xf32>
    %c0_46 = arith.constant 0 : index
    %c0_47 = arith.constant 0 : index
    %120 = vector.load %arg7[%c0_46, %c0_47] : memref<2x32xf32, #tpu.memory_space<vmem>>, vector<2x32xf32>
    tpu.vector_store %arg7[%c0_46, %c0_47], %117 {strides = array<i32>} : memref<2x32xf32, #tpu.memory_space<vmem>>, vector<2x32xf32>,
    %c0_48 = arith.constant 0 : index
    %c0_49 = arith.constant 0 : index
    %121 = vector.load %arg6[%c0_48, %c0_49] : memref<2x32xf32, #tpu.memory_space<vmem>>, vector<2x32xf32>
    tpu.vector_store %arg6[%c0_48, %c0_49], %119 {strides = array<i32>} : memref<2x32xf32, #tpu.memory_space<vmem>>, vector<2x32xf32>,
    %c0_50 = arith.constant 0 : index
    %c2 = arith.constant 2 : index
    %c0_51 = arith.constant 0 : index
    %122 = vector.load %arg5[%c0_50, %c2, %c0_51] : memref<2x8x32xf32, #tpu.memory_space<vmem>>, vector<2x1x32xf32>
    %123 = vector.shape_cast %122 : vector<2x1x32xf32> to vector<2x32xf32>
    %124 = vector.shape_cast %119 : vector<2x32xf32> to vector<2x1x32xf32>
    tpu.vector_store %arg5[%c0_50, %c2, %c0_51], %124 {strides = array<i32>} : memref<2x8x32xf32, #tpu.memory_space<vmem>>, vector<2x1x32xf32>,
    %125 = vector.extract_strided_slice %12 {offsets = [0, 3, 0], sizes = [2, 1, 128], strides = [1, 1, 1]} : vector<2x8x128xf32> to vector<2x1x128xf32>
    %126 = vector.shape_cast %125 : vector<2x1x128xf32> to vector<2x128xf32>
    %c0_52 = arith.constant 0 : index
    %c0_53 = arith.constant 0 : index
    %127 = vector.load %arg6[%c0_52, %c0_53] : memref<2x32xf32, #tpu.memory_space<vmem>>, vector<2x32xf32>
    %128 = arith.truncf %127 : vector<2x32xf32> to vector<2x32xbf16>
    %cst_54 = arith.constant dense<0.000000e+00> : vector<2x128xf32>
    %129 = tpu.matmul %128, %13, %cst_54 {dimension_numbers = #tpu.dot_dimension_numbers<[1], [0], [0], [1], [0, 0, 1, 1], [], []>} : vector<2x32xbf16>, vector<32x128xbf16>, vector<2x128xf32> -> vector<2x128xf32>
    %130 = arith.addf %126, %129 : vector<2x128xf32>
    %131 = vector.extract_strided_slice %130 {offsets = [0, 0], sizes = [2, 32], strides = [1, 1]} : vector<2x128xf32> to vector<2x32xf32>
    %132 = arith.negf %131 : vector<2x32xf32>
    %133 = math.exp %132 : vector<2x32xf32>
    %cst_55 = arith.constant 1.000000e+00 : f32
    %134 = vector.broadcast %cst_55 : f32 to vector<2x32xf32>
    %135 = arith.addf %134, %133 : vector<2x32xf32>
    %136 = arith.divf %134, %135 : vector<2x32xf32>
    %137 = vector.extract_strided_slice %130 {offsets = [0, 32], sizes = [2, 32], strides = [1, 1]} : vector<2x128xf32> to vector<2x32xf32>
    %138 = arith.negf %137 : vector<2x32xf32>
    %139 = math.exp %138 : vector<2x32xf32>
    %cst_56 = arith.constant 1.000000e+00 : f32
    %140 = vector.broadcast %cst_56 : f32 to vector<2x32xf32>
    %141 = arith.addf %140, %139 : vector<2x32xf32>
    %142 = arith.divf %140, %141 : vector<2x32xf32>
    %143 = vector.extract_strided_slice %130 {offsets = [0, 64], sizes = [2, 32], strides = [1, 1]} : vector<2x128xf32> to vector<2x32xf32>
    %144 = math.tanh %143 : vector<2x32xf32>
    %145 = vector.extract_strided_slice %130 {offsets = [0, 96], sizes = [2, 32], strides = [1, 1]} : vector<2x128xf32> to vector<2x32xf32>
    %146 = arith.negf %145 : vector<2x32xf32>
    %147 = math.exp %146 : vector<2x32xf32>
    %cst_57 = arith.constant 1.000000e+00 : f32
    %148 = vector.broadcast %cst_57 : f32 to vector<2x32xf32>
    %149 = arith.addf %148, %147 : vector<2x32xf32>
    %150 = arith.divf %148, %149 : vector<2x32xf32>
    %c0_58 = arith.constant 0 : index
    %c0_59 = arith.constant 0 : index
    %151 = vector.load %arg7[%c0_58, %c0_59] : memref<2x32xf32, #tpu.memory_space<vmem>>, vector<2x32xf32>
    %152 = arith.mulf %142, %151 : vector<2x32xf32>
    %153 = arith.mulf %136, %144 : vector<2x32xf32>
    %154 = arith.addf %152, %153 : vector<2x32xf32>
    %155 = math.tanh %154 : vector<2x32xf32>
    %156 = arith.mulf %150, %155 : vector<2x32xf32>
    %c0_60 = arith.constant 0 : index
    %c0_61 = arith.constant 0 : index
    %157 = vector.load %arg7[%c0_60, %c0_61] : memref<2x32xf32, #tpu.memory_space<vmem>>, vector<2x32xf32>
    tpu.vector_store %arg7[%c0_60, %c0_61], %154 {strides = array<i32>} : memref<2x32xf32, #tpu.memory_space<vmem>>, vector<2x32xf32>,
    %c0_62 = arith.constant 0 : index
    %c0_63 = arith.constant 0 : index
    %158 = vector.load %arg6[%c0_62, %c0_63] : memref<2x32xf32, #tpu.memory_space<vmem>>, vector<2x32xf32>
    tpu.vector_store %arg6[%c0_62, %c0_63], %156 {strides = array<i32>} : memref<2x32xf32, #tpu.memory_space<vmem>>, vector<2x32xf32>,
    %c0_64 = arith.constant 0 : index
    %c3 = arith.constant 3 : index
    %c0_65 = arith.constant 0 : index
    %159 = vector.load %arg5[%c0_64, %c3, %c0_65] : memref<2x8x32xf32, #tpu.memory_space<vmem>>, vector<2x1x32xf32>
    %160 = vector.shape_cast %159 : vector<2x1x32xf32> to vector<2x32xf32>
    %161 = vector.shape_cast %156 : vector<2x32xf32> to vector<2x1x32xf32>
    tpu.vector_store %arg5[%c0_64, %c3, %c0_65], %161 {strides = array<i32>} : memref<2x8x32xf32, #tpu.memory_space<vmem>>, vector<2x1x32xf32>,
    %162 = vector.extract_strided_slice %12 {offsets = [0, 4, 0], sizes = [2, 1, 128], strides = [1, 1, 1]} : vector<2x8x128xf32> to vector<2x1x128xf32>
    %163 = vector.shape_cast %162 : vector<2x1x128xf32> to vector<2x128xf32>
    %c0_66 = arith.constant 0 : index
    %c0_67 = arith.constant 0 : index
    %164 = vector.load %arg6[%c0_66, %c0_67] : memref<2x32xf32, #tpu.memory_space<vmem>>, vector<2x32xf32>
    %165 = arith.truncf %164 : vector<2x32xf32> to vector<2x32xbf16>
    %cst_68 = arith.constant dense<0.000000e+00> : vector<2x128xf32>
    %166 = tpu.matmul %165, %13, %cst_68 {dimension_numbers = #tpu.dot_dimension_numbers<[1], [0], [0], [1], [0, 0, 1, 1], [], []>} : vector<2x32xbf16>, vector<32x128xbf16>, vector<2x128xf32> -> vector<2x128xf32>
    %167 = arith.addf %163, %166 : vector<2x128xf32>
    %168 = vector.extract_strided_slice %167 {offsets = [0, 0], sizes = [2, 32], strides = [1, 1]} : vector<2x128xf32> to vector<2x32xf32>
    %169 = arith.negf %168 : vector<2x32xf32>
    %170 = math.exp %169 : vector<2x32xf32>
    %cst_69 = arith.constant 1.000000e+00 : f32
    %171 = vector.broadcast %cst_69 : f32 to vector<2x32xf32>
    %172 = arith.addf %171, %170 : vector<2x32xf32>
    %173 = arith.divf %171, %172 : vector<2x32xf32>
    %174 = vector.extract_strided_slice %167 {offsets = [0, 32], sizes = [2, 32], strides = [1, 1]} : vector<2x128xf32> to vector<2x32xf32>
    %175 = arith.negf %174 : vector<2x32xf32>
    %176 = math.exp %175 : vector<2x32xf32>
    %cst_70 = arith.constant 1.000000e+00 : f32
    %177 = vector.broadcast %cst_70 : f32 to vector<2x32xf32>
    %178 = arith.addf %177, %176 : vector<2x32xf32>
    %179 = arith.divf %177, %178 : vector<2x32xf32>
    %180 = vector.extract_strided_slice %167 {offsets = [0, 64], sizes = [2, 32], strides = [1, 1]} : vector<2x128xf32> to vector<2x32xf32>
    %181 = math.tanh %180 : vector<2x32xf32>
    %182 = vector.extract_strided_slice %167 {offsets = [0, 96], sizes = [2, 32], strides = [1, 1]} : vector<2x128xf32> to vector<2x32xf32>
    %183 = arith.negf %182 : vector<2x32xf32>
    %184 = math.exp %183 : vector<2x32xf32>
    %cst_71 = arith.constant 1.000000e+00 : f32
    %185 = vector.broadcast %cst_71 : f32 to vector<2x32xf32>
    %186 = arith.addf %185, %184 : vector<2x32xf32>
    %187 = arith.divf %185, %186 : vector<2x32xf32>
    %c0_72 = arith.constant 0 : index
    %c0_73 = arith.constant 0 : index
    %188 = vector.load %arg7[%c0_72, %c0_73] : memref<2x32xf32, #tpu.memory_space<vmem>>, vector<2x32xf32>
    %189 = arith.mulf %179, %188 : vector<2x32xf32>
    %190 = arith.mulf %173, %181 : vector<2x32xf32>
    %191 = arith.addf %189, %190 : vector<2x32xf32>
    %192 = math.tanh %191 : vector<2x32xf32>
    %193 = arith.mulf %187, %192 : vector<2x32xf32>
    %c0_74 = arith.constant 0 : index
    %c0_75 = arith.constant 0 : index
    %194 = vector.load %arg7[%c0_74, %c0_75] : memref<2x32xf32, #tpu.memory_space<vmem>>, vector<2x32xf32>
    tpu.vector_store %arg7[%c0_74, %c0_75], %191 {strides = array<i32>} : memref<2x32xf32, #tpu.memory_space<vmem>>, vector<2x32xf32>,
    %c0_76 = arith.constant 0 : index
    %c0_77 = arith.constant 0 : index
    %195 = vector.load %arg6[%c0_76, %c0_77] : memref<2x32xf32, #tpu.memory_space<vmem>>, vector<2x32xf32>
    tpu.vector_store %arg6[%c0_76, %c0_77], %193 {strides = array<i32>} : memref<2x32xf32, #tpu.memory_space<vmem>>, vector<2x32xf32>,
    %c0_78 = arith.constant 0 : index
    %c4 = arith.constant 4 : index
    %c0_79 = arith.constant 0 : index
    %196 = vector.load %arg5[%c0_78, %c4, %c0_79] : memref<2x8x32xf32, #tpu.memory_space<vmem>>, vector<2x1x32xf32>
    %197 = vector.shape_cast %196 : vector<2x1x32xf32> to vector<2x32xf32>
    %198 = vector.shape_cast %193 : vector<2x32xf32> to vector<2x1x32xf32>
    tpu.vector_store %arg5[%c0_78, %c4, %c0_79], %198 {strides = array<i32>} : memref<2x8x32xf32, #tpu.memory_space<vmem>>, vector<2x1x32xf32>,
    %199 = vector.extract_strided_slice %12 {offsets = [0, 5, 0], sizes = [2, 1, 128], strides = [1, 1, 1]} : vector<2x8x128xf32> to vector<2x1x128xf32>
    %200 = vector.shape_cast %199 : vector<2x1x128xf32> to vector<2x128xf32>
    %c0_80 = arith.constant 0 : index
    %c0_81 = arith.constant 0 : index
    %201 = vector.load %arg6[%c0_80, %c0_81] : memref<2x32xf32, #tpu.memory_space<vmem>>, vector<2x32xf32>
    %202 = arith.truncf %201 : vector<2x32xf32> to vector<2x32xbf16>
    %cst_82 = arith.constant dense<0.000000e+00> : vector<2x128xf32>
    %203 = tpu.matmul %202, %13, %cst_82 {dimension_numbers = #tpu.dot_dimension_numbers<[1], [0], [0], [1], [0, 0, 1, 1], [], []>} : vector<2x32xbf16>, vector<32x128xbf16>, vector<2x128xf32> -> vector<2x128xf32>
    %204 = arith.addf %200, %203 : vector<2x128xf32>
    %205 = vector.extract_strided_slice %204 {offsets = [0, 0], sizes = [2, 32], strides = [1, 1]} : vector<2x128xf32> to vector<2x32xf32>
    %206 = arith.negf %205 : vector<2x32xf32>
    %207 = math.exp %206 : vector<2x32xf32>
    %cst_83 = arith.constant 1.000000e+00 : f32
    %208 = vector.broadcast %cst_83 : f32 to vector<2x32xf32>
    %209 = arith.addf %208, %207 : vector<2x32xf32>
    %210 = arith.divf %208, %209 : vector<2x32xf32>
    %211 = vector.extract_strided_slice %204 {offsets = [0, 32], sizes = [2, 32], strides = [1, 1]} : vector<2x128xf32> to vector<2x32xf32>
    %212 = arith.negf %211 : vector<2x32xf32>
    %213 = math.exp %212 : vector<2x32xf32>
    %cst_84 = arith.constant 1.000000e+00 : f32
    %214 = vector.broadcast %cst_84 : f32 to vector<2x32xf32>
    %215 = arith.addf %214, %213 : vector<2x32xf32>
    %216 = arith.divf %214, %215 : vector<2x32xf32>
    %217 = vector.extract_strided_slice %204 {offsets = [0, 64], sizes = [2, 32], strides = [1, 1]} : vector<2x128xf32> to vector<2x32xf32>
    %218 = math.tanh %217 : vector<2x32xf32>
    %219 = vector.extract_strided_slice %204 {offsets = [0, 96], sizes = [2, 32], strides = [1, 1]} : vector<2x128xf32> to vector<2x32xf32>
    %220 = arith.negf %219 : vector<2x32xf32>
    %221 = math.exp %220 : vector<2x32xf32>
    %cst_85 = arith.constant 1.000000e+00 : f32
    %222 = vector.broadcast %cst_85 : f32 to vector<2x32xf32>
    %223 = arith.addf %222, %221 : vector<2x32xf32>
    %224 = arith.divf %222, %223 : vector<2x32xf32>
    %c0_86 = arith.constant 0 : index
    %c0_87 = arith.constant 0 : index
    %225 = vector.load %arg7[%c0_86, %c0_87] : memref<2x32xf32, #tpu.memory_space<vmem>>, vector<2x32xf32>
    %226 = arith.mulf %216, %225 : vector<2x32xf32>
    %227 = arith.mulf %210, %218 : vector<2x32xf32>
    %228 = arith.addf %226, %227 : vector<2x32xf32>
    %229 = math.tanh %228 : vector<2x32xf32>
    %230 = arith.mulf %224, %229 : vector<2x32xf32>
    %c0_88 = arith.constant 0 : index
    %c0_89 = arith.constant 0 : index
    %231 = vector.load %arg7[%c0_88, %c0_89] : memref<2x32xf32, #tpu.memory_space<vmem>>, vector<2x32xf32>
    tpu.vector_store %arg7[%c0_88, %c0_89], %228 {strides = array<i32>} : memref<2x32xf32, #tpu.memory_space<vmem>>, vector<2x32xf32>,
    %c0_90 = arith.constant 0 : index
    %c0_91 = arith.constant 0 : index
    %232 = vector.load %arg6[%c0_90, %c0_91] : memref<2x32xf32, #tpu.memory_space<vmem>>, vector<2x32xf32>
    tpu.vector_store %arg6[%c0_90, %c0_91], %230 {strides = array<i32>} : memref<2x32xf32, #tpu.memory_space<vmem>>, vector<2x32xf32>,
    %c0_92 = arith.constant 0 : index
    %c5 = arith.constant 5 : index
    %c0_93 = arith.constant 0 : index
    %233 = vector.load %arg5[%c0_92, %c5, %c0_93] : memref<2x8x32xf32, #tpu.memory_space<vmem>>, vector<2x1x32xf32>
    %234 = vector.shape_cast %233 : vector<2x1x32xf32> to vector<2x32xf32>
    %235 = vector.shape_cast %230 : vector<2x32xf32> to vector<2x1x32xf32>
    tpu.vector_store %arg5[%c0_92, %c5, %c0_93], %235 {strides = array<i32>} : memref<2x8x32xf32, #tpu.memory_space<vmem>>, vector<2x1x32xf32>,
    %236 = vector.extract_strided_slice %12 {offsets = [0, 6, 0], sizes = [2, 1, 128], strides = [1, 1, 1]} : vector<2x8x128xf32> to vector<2x1x128xf32>
    %237 = vector.shape_cast %236 : vector<2x1x128xf32> to vector<2x128xf32>
    %c0_94 = arith.constant 0 : index
    %c0_95 = arith.constant 0 : index
    %238 = vector.load %arg6[%c0_94, %c0_95] : memref<2x32xf32, #tpu.memory_space<vmem>>, vector<2x32xf32>
    %239 = arith.truncf %238 : vector<2x32xf32> to vector<2x32xbf16>
    %cst_96 = arith.constant dense<0.000000e+00> : vector<2x128xf32>
    %240 = tpu.matmul %239, %13, %cst_96 {dimension_numbers = #tpu.dot_dimension_numbers<[1], [0], [0], [1], [0, 0, 1, 1], [], []>} : vector<2x32xbf16>, vector<32x128xbf16>, vector<2x128xf32> -> vector<2x128xf32>
    %241 = arith.addf %237, %240 : vector<2x128xf32>
    %242 = vector.extract_strided_slice %241 {offsets = [0, 0], sizes = [2, 32], strides = [1, 1]} : vector<2x128xf32> to vector<2x32xf32>
    %243 = arith.negf %242 : vector<2x32xf32>
    %244 = math.exp %243 : vector<2x32xf32>
    %cst_97 = arith.constant 1.000000e+00 : f32
    %245 = vector.broadcast %cst_97 : f32 to vector<2x32xf32>
    %246 = arith.addf %245, %244 : vector<2x32xf32>
    %247 = arith.divf %245, %246 : vector<2x32xf32>
    %248 = vector.extract_strided_slice %241 {offsets = [0, 32], sizes = [2, 32], strides = [1, 1]} : vector<2x128xf32> to vector<2x32xf32>
    %249 = arith.negf %248 : vector<2x32xf32>
    %250 = math.exp %249 : vector<2x32xf32>
    %cst_98 = arith.constant 1.000000e+00 : f32
    %251 = vector.broadcast %cst_98 : f32 to vector<2x32xf32>
    %252 = arith.addf %251, %250 : vector<2x32xf32>
    %253 = arith.divf %251, %252 : vector<2x32xf32>
    %254 = vector.extract_strided_slice %241 {offsets = [0, 64], sizes = [2, 32], strides = [1, 1]} : vector<2x128xf32> to vector<2x32xf32>
    %255 = math.tanh %254 : vector<2x32xf32>
    %256 = vector.extract_strided_slice %241 {offsets = [0, 96], sizes = [2, 32], strides = [1, 1]} : vector<2x128xf32> to vector<2x32xf32>
    %257 = arith.negf %256 : vector<2x32xf32>
    %258 = math.exp %257 : vector<2x32xf32>
    %cst_99 = arith.constant 1.000000e+00 : f32
    %259 = vector.broadcast %cst_99 : f32 to vector<2x32xf32>
    %260 = arith.addf %259, %258 : vector<2x32xf32>
    %261 = arith.divf %259, %260 : vector<2x32xf32>
    %c0_100 = arith.constant 0 : index
    %c0_101 = arith.constant 0 : index
    %262 = vector.load %arg7[%c0_100, %c0_101] : memref<2x32xf32, #tpu.memory_space<vmem>>, vector<2x32xf32>
    %263 = arith.mulf %253, %262 : vector<2x32xf32>
    %264 = arith.mulf %247, %255 : vector<2x32xf32>
    %265 = arith.addf %263, %264 : vector<2x32xf32>
    %266 = math.tanh %265 : vector<2x32xf32>
    %267 = arith.mulf %261, %266 : vector<2x32xf32>
    %c0_102 = arith.constant 0 : index
    %c0_103 = arith.constant 0 : index
    %268 = vector.load %arg7[%c0_102, %c0_103] : memref<2x32xf32, #tpu.memory_space<vmem>>, vector<2x32xf32>
    tpu.vector_store %arg7[%c0_102, %c0_103], %265 {strides = array<i32>} : memref<2x32xf32, #tpu.memory_space<vmem>>, vector<2x32xf32>,
    %c0_104 = arith.constant 0 : index
    %c0_105 = arith.constant 0 : index
    %269 = vector.load %arg6[%c0_104, %c0_105] : memref<2x32xf32, #tpu.memory_space<vmem>>, vector<2x32xf32>
    tpu.vector_store %arg6[%c0_104, %c0_105], %267 {strides = array<i32>} : memref<2x32xf32, #tpu.memory_space<vmem>>, vector<2x32xf32>,
    %c0_106 = arith.constant 0 : index
    %c6 = arith.constant 6 : index
    %c0_107 = arith.constant 0 : index
    %270 = vector.load %arg5[%c0_106, %c6, %c0_107] : memref<2x8x32xf32, #tpu.memory_space<vmem>>, vector<2x1x32xf32>
    %271 = vector.shape_cast %270 : vector<2x1x32xf32> to vector<2x32xf32>
    %272 = vector.shape_cast %267 : vector<2x32xf32> to vector<2x1x32xf32>
    tpu.vector_store %arg5[%c0_106, %c6, %c0_107], %272 {strides = array<i32>} : memref<2x8x32xf32, #tpu.memory_space<vmem>>, vector<2x1x32xf32>,
    %273 = vector.extract_strided_slice %12 {offsets = [0, 7, 0], sizes = [2, 1, 128], strides = [1, 1, 1]} : vector<2x8x128xf32> to vector<2x1x128xf32>
    %274 = vector.shape_cast %273 : vector<2x1x128xf32> to vector<2x128xf32>
    %c0_108 = arith.constant 0 : index
    %c0_109 = arith.constant 0 : index
    %275 = vector.load %arg6[%c0_108, %c0_109] : memref<2x32xf32, #tpu.memory_space<vmem>>, vector<2x32xf32>
    %276 = arith.truncf %275 : vector<2x32xf32> to vector<2x32xbf16>
    %cst_110 = arith.constant dense<0.000000e+00> : vector<2x128xf32>
    %277 = tpu.matmul %276, %13, %cst_110 {dimension_numbers = #tpu.dot_dimension_numbers<[1], [0], [0], [1], [0, 0, 1, 1], [], []>} : vector<2x32xbf16>, vector<32x128xbf16>, vector<2x128xf32> -> vector<2x128xf32>
    %278 = arith.addf %274, %277 : vector<2x128xf32>
    %279 = vector.extract_strided_slice %278 {offsets = [0, 0], sizes = [2, 32], strides = [1, 1]} : vector<2x128xf32> to vector<2x32xf32>
    %280 = arith.negf %279 : vector<2x32xf32>
    %281 = math.exp %280 : vector<2x32xf32>
    %cst_111 = arith.constant 1.000000e+00 : f32
    %282 = vector.broadcast %cst_111 : f32 to vector<2x32xf32>
    %283 = arith.addf %282, %281 : vector<2x32xf32>
    %284 = arith.divf %282, %283 : vector<2x32xf32>
    %285 = vector.extract_strided_slice %278 {offsets = [0, 32], sizes = [2, 32], strides = [1, 1]} : vector<2x128xf32> to vector<2x32xf32>
    %286 = arith.negf %285 : vector<2x32xf32>
    %287 = math.exp %286 : vector<2x32xf32>
    %cst_112 = arith.constant 1.000000e+00 : f32
    %288 = vector.broadcast %cst_112 : f32 to vector<2x32xf32>
    %289 = arith.addf %288, %287 : vector<2x32xf32>
    %290 = arith.divf %288, %289 : vector<2x32xf32>
    %291 = vector.extract_strided_slice %278 {offsets = [0, 64], sizes = [2, 32], strides = [1, 1]} : vector<2x128xf32> to vector<2x32xf32>
    %292 = math.tanh %291 : vector<2x32xf32>
    %293 = vector.extract_strided_slice %278 {offsets = [0, 96], sizes = [2, 32], strides = [1, 1]} : vector<2x128xf32> to vector<2x32xf32>
    %294 = arith.negf %293 : vector<2x32xf32>
    %295 = math.exp %294 : vector<2x32xf32>
    %cst_113 = arith.constant 1.000000e+00 : f32
    %296 = vector.broadcast %cst_113 : f32 to vector<2x32xf32>
    %297 = arith.addf %296, %295 : vector<2x32xf32>
    %298 = arith.divf %296, %297 : vector<2x32xf32>
    %c0_114 = arith.constant 0 : index
    %c0_115 = arith.constant 0 : index
    %299 = vector.load %arg7[%c0_114, %c0_115] : memref<2x32xf32, #tpu.memory_space<vmem>>, vector<2x32xf32>
    %300 = arith.mulf %290, %299 : vector<2x32xf32>
    %301 = arith.mulf %284, %292 : vector<2x32xf32>
    %302 = arith.addf %300, %301 : vector<2x32xf32>
    %303 = math.tanh %302 : vector<2x32xf32>
    %304 = arith.mulf %298, %303 : vector<2x32xf32>
    %c0_116 = arith.constant 0 : index
    %c0_117 = arith.constant 0 : index
    %305 = vector.load %arg7[%c0_116, %c0_117] : memref<2x32xf32, #tpu.memory_space<vmem>>, vector<2x32xf32>
    tpu.vector_store %arg7[%c0_116, %c0_117], %302 {strides = array<i32>} : memref<2x32xf32, #tpu.memory_space<vmem>>, vector<2x32xf32>,
    %c0_118 = arith.constant 0 : index
    %c0_119 = arith.constant 0 : index
    %306 = vector.load %arg6[%c0_118, %c0_119] : memref<2x32xf32, #tpu.memory_space<vmem>>, vector<2x32xf32>
    tpu.vector_store %arg6[%c0_118, %c0_119], %304 {strides = array<i32>} : memref<2x32xf32, #tpu.memory_space<vmem>>, vector<2x32xf32>,
    %c0_120 = arith.constant 0 : index
    %c7 = arith.constant 7 : index
    %c0_121 = arith.constant 0 : index
    %307 = vector.load %arg5[%c0_120, %c7, %c0_121] : memref<2x8x32xf32, #tpu.memory_space<vmem>>, vector<2x1x32xf32>
    %308 = vector.shape_cast %307 : vector<2x1x32xf32> to vector<2x32xf32>
    %309 = vector.shape_cast %304 : vector<2x32xf32> to vector<2x1x32xf32>
    tpu.vector_store %arg5[%c0_120, %c7, %c0_121], %309 {strides = array<i32>} : memref<2x8x32xf32, #tpu.memory_space<vmem>>, vector<2x1x32xf32>,
    return
  }
  func.func @transform_0(%arg0: i32) -> (i32, i32, i32) {
    %c0_i32 = arith.constant 0 : i32
    %c0_i32_0 = arith.constant 0 : i32
    %c0_i32_1 = arith.constant 0 : i32
    return %c0_i32, %arg0, %c0_i32_0 : i32, i32, i32
  }
  func.func @transform_1(%arg0: i32) -> (i32, i32) {
    %c0_i32 = arith.constant 0 : i32
    %c0_i32_0 = arith.constant 0 : i32
    %c0_i32_1 = arith.constant 0 : i32
    return %c0_i32, %c0_i32_0 : i32, i32
  }
  func.func @transform_2(%arg0: i32) -> (i32, i32) {
    %c0_i32 = arith.constant 0 : i32
    %c0_i32_0 = arith.constant 0 : i32
    %c0_i32_1 = arith.constant 0 : i32
    return %c0_i32, %c0_i32_0 : i32, i32
  }
  func.func @transform_3(%arg0: i32) -> (i32, i32) {
    %c0_i32 = arith.constant 0 : i32
    %c0_i32_0 = arith.constant 0 : i32
    %c0_i32_1 = arith.constant 0 : i32
    return %c0_i32, %c0_i32_0 : i32, i32
  }
  func.func @transform_4(%arg0: i32) -> (i32, i32, i32) {
    %c0_i32 = arith.constant 0 : i32
    %c0_i32_0 = arith.constant 0 : i32
    %c0_i32_1 = arith.constant 0 : i32
    return %c0_i32, %arg0, %c0_i32_0 : i32, i32, i32
  }
}

</mosaic_0001>

<llo_original>
// kernel: lstm_forward.3
$region0: #{lstm_forward.3}
  #allocation0 [shape = 'u32[]', space=smem, size = 0x4, offset = 0x4, fixed_abs, tag = 'smem constant byte address 0x4 - core index']
  #allocation1 [shape = 'u32[144,128]{1,0:T(1,128)}', space=vmem, size = 0x12000, scoped, tag = 'internal scratch']
  #allocation2 [shape = 'f32[2,32]{1,0:T(2,128)}', space=vmem, size = 0x400, scoped, tag = 'scratch operand']
  #allocation3 [shape = 'f32[2,32]{1,0:T(2,128)}', space=vmem, size = 0x400, scoped, tag = 'scratch operand']
  %s0 = inlined_call_operand.vmem [shape: f32[2,8,32], index: 0, kind: input, shape index: {}]
  %s1 = inlined_call_operand.vmem [shape: bf16[32,128], index: 1, kind: input, shape index: {}]
  %s2 = inlined_call_operand.vmem [shape: bf16[32,128], index: 2, kind: input, shape index: {}]
  %s3 = inlined_call_operand.vmem [shape: f32[1,128], index: 3, kind: input, shape index: {}]
  %s4 = inlined_call_operand.vmem [shape: bf16[32,32], index: 4, kind: input, shape index: {}]
  %s5 = inlined_call_operand.vmem [shape: f32[1,32], index: 5, kind: input, shape index: {}]
  %s6 = inlined_call_operand.vmem [shape: bf16[32,128], index: 6, kind: input, shape index: {}]
  %s7 = inlined_call_operand.vmem [shape: f32[1,128], index: 7, kind: input, shape index: {}]
  %s8 = inlined_call_operand.hbm [shape: f32[2,128], index: 8, kind: output, shape index: {}]
  %s9 = sld [smem:[#allocation0]]
  $region50: #{lstm_forward.3} parent=0
    _
  %s11 = ssub.s32 1, %s9
  %s12 = scalar_select 0, %s11, %s9
  $region1: #{lstm_forward.3} parent=0
    #allocation4 [shape = 'u8[1024]{0}', space=vmem, size = 0x400, scoped, tag = 'output window, operand 0, single buffered']
    #allocation5 [shape = 's32[1]{0}', space=sflag, size = 0x4, scoped, tag = 'scoped memory for lstm_forward.3']
    %13 = vsyncpa [#allocation5], 0
    // Predicated region
    $region2: #{lstm_forward.3} parent=1 // pred_check
      _
    $region3: #{lstm_forward.3} parent=1 // pred_check_branch
      %15 = sbr.rel (0) target = $region5
    $region4: #{lstm_forward.3} parent=1 // pred_region
      _
    $region5: #{lstm_forward.3} parent=1 // pred_fallthru
      _
    // Predicated region
    $region6: #{lstm_forward.3} parent=1 // pred_check
      _
    $region7: #{lstm_forward.3} parent=1 // pred_check_branch
      %17 = sbr.rel (0) target = $region9
    $region8: #{lstm_forward.3} parent=1 // pred_region
      _
    $region9: #{lstm_forward.3} parent=1 // pred_fallthru
      _
    // Predicated region
    $region10: #{lstm_forward.3} parent=1 // pred_check
      _
    $region11: #{lstm_forward.3} parent=1 // pred_check_branch
      %19 = sbr.rel (0) target = $region13
    $region12: #{lstm_forward.3} parent=1 // pred_region
      _
    $region13: #{lstm_forward.3} parent=1 // pred_fallthru
      _
    // Predicated region
    $region14: #{lstm_forward.3} parent=1 // pred_check
      _
    $region15: #{lstm_forward.3} parent=1 // pred_check_branch
      %21 = sbr.rel (0) target = $region17
    $region16: #{lstm_forward.3} parent=1 // pred_region
      _
    $region17: #{lstm_forward.3} parent=1 // pred_fallthru
      _
    // Predicated region
    $region18: #{lstm_forward.3} parent=1 // pred_check
      _
    $region19: #{lstm_forward.3} parent=1 // pred_check_branch
      %23 = sbr.rel (0) target = $region21
    $region20: #{lstm_forward.3} parent=1 // pred_region
      _
    $region21: #{lstm_forward.3} parent=1 // pred_fallthru
      _
    // Predicated region
    $region22: #{lstm_forward.3} parent=1 // pred_check
      _
    $region23: #{lstm_forward.3} parent=1 // pred_check_branch
      %25 = sbr.rel (0) target = $region25
    $region24: #{lstm_forward.3} parent=1 // pred_region
      _
    $region25: #{lstm_forward.3} parent=1 // pred_fallthru
      _
    // Predicated region
    $region26: #{lstm_forward.3} parent=1 // pred_check
      _
    $region27: #{lstm_forward.3} parent=1 // pred_check_branch
      %27 = sbr.rel (0) target = $region29
    $region28: #{lstm_forward.3} parent=1 // pred_region
      _
    $region29: #{lstm_forward.3} parent=1 // pred_fallthru
      _
    // Predicated region
    $region30: #{lstm_forward.3} parent=1 // pred_check
      _
    $region31: #{lstm_forward.3} parent=1 // pred_check_branch
      %29 = sbr.rel (0) target = $region33
    $region32: #{lstm_forward.3} parent=1 // pred_region
      _
    $region33: #{lstm_forward.3} parent=1 // pred_fallthru
      _
    %p31 = scmp.eq.s32.totalorder 0, 0
    // Predicated region
    $region34: #{lstm_forward.3} parent=1 // pred_check
      %p32 = pneg %p31
    $region35: #{lstm_forward.3} parent=1 // pred_check_branch
      %34 = sbr.rel (%p32) target = $region37
    $region36: #{lstm_forward.3} parent=1 // pred_region
      %vm35 = vcmask 254976
      %36 = vst.msk [vmem:[#allocation2] sm:$0x3] %vm35, 0.0
      %37 = vst.msk [vmem:[#allocation3] sm:$0x3] %vm35, 0.0
    $region37: #{lstm_forward.3} parent=1 // pred_fallthru
      _
    %v38 = vld [vmem:[%s0] sm:$0xff]
    %v39 = vld [vmem:[%s0 + $0x8] sm:$0xff]
    %v40 = vpack.c.bf16 %v39, %v38
    %v41 = vld [vmem:[%s1] sm:$0xf]
    %v42 = vld [vmem:[%s1 + $0x4] sm:$0xf]
    %v43 = vld [vmem:[%s1 + $0x8] sm:$0xf]
    %v44 = vld [vmem:[%s1 + $0xc] sm:$0xf]
    %v49 = vunpack.c.l.b16 %v41
    %v50 = vunpack.c.l.b16 %v42
    %v51 = vunpack.c.l.b16 %v43
    %v52 = vunpack.c.l.b16 %v44
    %v53 = vpack.c.b16 %v50, %v49
    %v54 = vpack.c.b16 %v52, %v51
    %vm57 = vcmask 261120
    %v59 = vsel %vm57, %v40, 0
    %61 = vmatprep.subr.bf16.mxu0 0
    %62 = vmatpush1.bf16.msra.mxu0 0
    %63 = vmatprep.subr.bf16.mxu0 0
    %64 = vmatpush1.bf16.msra.mxu0 0
    %65 = vmatprep.subr.bf16.mxu0 0
    %66 = vmatpush1.bf16.msra.mxu0 0
    %67 = vmatprep.subr.bf16.mxu0 0
    %68 = vmatpush1.bf16.msra.mxu0 0
    %69 = vmatprep.subr.bf16.mxu0 0
    %70 = vmatpush1.bf16.msra.mxu0 0
    %71 = vmatprep.subr.bf16.mxu0 0
    %72 = vmatpush1.bf16.msra.mxu0 0
    %73 = vmatprep.subr.bf16.mxu0 0
    %74 = vmatpush1.bf16.msra.mxu0 %v54
    %75 = vmatprep.subr.bf16.mxu0 0
    %76 = vmatpush1.bf16.msra.mxu0 %v53
    %77 = vmatprep.subr.bf16.mxu0 0
    %78 = vmatpush2.bf16.msra.mxu0 0
    %79 = vmatprep.subr.bf16.mxu0 0
    %80 = vmatpush2.bf16.msra.mxu0 0
    %81 = vmatprep.subr.bf16.mxu0 0
    %82 = vmatpush2.bf16.msra.mxu0 0
    %83 = vmatprep.subr.bf16.mxu0 0
    %84 = vmatpush2.bf16.msra.mxu0 0
    %85 = vmatprep.subr.bf16.mxu0 0
    %86 = vmatpush2.bf16.msra.mxu0 0
    %87 = vmatprep.subr.bf16.mxu0 0
    %88 = vmatpush2.bf16.msra.mxu0 0
    %89 = vmatprep.subr.bf16.mxu0 0
    %90 = vmatpush2.bf16.msra.mxu0 0
    %91 = vmatprep.subr.bf16.mxu0 0
    %92 = vmatpush2.bf16.msra.mxu0 0
    %93 = vmatprep.mubr.bf16.mxu0 0
    %94 = vmatmul.mubr.bf16.gmra.mxu0 %v59
    %v95 = vpop.f32.mrf.mxu0
    %v96 = vadd.f32 0.0, %v95
    %v97 = vpop.f32.mrf.mxu0
    %v98 = vpop.f32.mrf.mxu0
    %v99 = vadd.f32 0.0, %v98
    %v100 = vpop.f32.mrf.mxu0
    %101 = vdwg.mxu0
    %v102 = vld [vmem:[%s3] sm:$0x1]
    %v104 = vlaneseq
    %v105 = vshrl.u32 %v104, 7
    %v106 = vsub.s32 0, %v105
    %v107 = vrot.slane %v102, %v106
    %v109 = vadd.f32 %v96, %v107
    %v110 = vadd.f32 %v99, %v107
    %v111 = vld [vmem:[%s2] sm:$0xf]
    %v112 = vld [vmem:[%s2 + $0x4] sm:$0xf]
    %v113 = vld [vmem:[%s2 + $0x8] sm:$0xf]
    %v114 = vld [vmem:[%s2 + $0xc] sm:$0xf]
    %v115 = vld [vmem:[#allocation2] sm:$0x3]
    %v116 = vpack.c.bf16 %v115, %v115
    %v121 = vunpack.c.l.b16 %v111
    %v122 = vunpack.c.l.b16 %v112
    %v123 = vunpack.c.l.b16 %v113
    %v124 = vunpack.c.l.b16 %v114
    %v125 = vpack.c.b16 %v122, %v121
    %v126 = vpack.c.b16 %v124, %v123
    %v130 = vsel %vm57, %v116, 0
    %132 = vmatprep.subr.bf16.mxu0 0
    %133 = vmatpush1.bf16.msra.mxu0 0
    %134 = vmatprep.subr.bf16.mxu0 0
    %135 = vmatpush1.bf16.msra.mxu0 0
    %136 = vmatprep.subr.bf16.mxu0 0
    %137 = vmatpush1.bf16.msra.mxu0 0
    %138 = vmatprep.subr.bf16.mxu0 0
    %139 = vmatpush1.bf16.msra.mxu0 0
    %140 = vmatprep.subr.bf16.mxu0 0
    %141 = vmatpush1.bf16.msra.mxu0 0
    %142 = vmatprep.subr.bf16.mxu0 0
    %143 = vmatpush1.bf16.msra.mxu0 0
    %144 = vmatprep.subr.bf16.mxu0 0
    %145 = vmatpush1.bf16.msra.mxu0 %v126
    %146 = vmatprep.subr.bf16.mxu0 0
    %147 = vmatpush1.bf16.msra.mxu0 %v125
    %148 = vmatprep.subr.bf16.mxu0 0
    %149 = vmatpush2.bf16.msra.mxu0 0
    %150 = vmatprep.subr.bf16.mxu0 0
    %151 = vmatpush2.bf16.msra.mxu0 0
    %152 = vmatprep.subr.bf16.mxu0 0
    %153 = vmatpush2.bf16.msra.mxu0 0
    %154 = vmatprep.subr.bf16.mxu0 0
    %155 = vmatpush2.bf16.msra.mxu0 0
    %156 = vmatprep.subr.bf16.mxu0 0
    %157 = vmatpush2.bf16.msra.mxu0 0
    %158 = vmatprep.subr.bf16.mxu0 0
    %159 = vmatpush2.bf16.msra.mxu0 0
    %160 = vmatprep.subr.bf16.mxu0 0
    %161 = vmatpush2.bf16.msra.mxu0 0
    %162 = vmatprep.subr.bf16.mxu0 0
    %163 = vmatpush2.bf16.msra.mxu0 0
    %164 = vmatprep.mubr.bf16.mxu0 0
    %165 = vmatmul.mubr.bf16.gmra.mxu0 %v130
    %v166 = vpop.f32.mrf.mxu0
    %v167 = vadd.f32 0.0, %v166
    %v168 = vpop.f32.mrf.mxu0
    %v169 = vpop.f32.mrf.mxu0
    %v170 = vpop.f32.mrf.mxu0
    %171 = vdwg.mxu0
    %v173 = vrot.slane %v167, 1
    %v176 = vadd.f32 %v109, %v167
    %v177 = vadd.f32 %v110, %v173
    %v178 = vxor.u32 %v176, 2147483648
    %v179 = vxor.u32 %v177, 2147483648
    %v180 = vmul.f32 %v178, 1.442695
    %v181 = vpow.pop %v180
    %v182 = vmul.f32 %v179, 1.442695
    %v183 = vpow.pop %v182
    %v184 = vadd.f32 %v181, 1.0
    %v185 = vadd.f32 %v183, 1.0
    %v186 = vrcp.pop %v184
    %v187 = vmul.f32 1.0, %v186
    %v188 = vrcp.pop %v185
    %v189 = vmul.f32 1.0, %v188
    %v190 = vtanh.pop %v176
    %v191 = vtanh.pop %v177
    %v192 = vld [vmem:[#allocation3] sm:$0x3]
    %v194 = vrot.slane %v192, 1
    %195 = vrot.lane.b32.xlu0 %v192, 32
    %v196 = vpop.permute.xlu0 %195
    %197 = vrot.lane.b32.xlu0 %v194, 32
    %v198 = vpop.permute.xlu0 %197
    %v201 = vmul.f32 %v187, %v196
    %v202 = vmul.f32 %v189, %v198
    %205 = vrot.lane.b32.xlu0 %v190, 64
    %v206 = vpop.permute.xlu0 %205
    %207 = vrot.lane.b32.xlu0 %v191, 64
    %v208 = vpop.permute.xlu0 %207
    %v211 = vmul.f32 %v187, %v206
    %v212 = vmul.f32 %v189, %v208
    %215 = vrot.lane.b32.xlu0 %v211, 32
    %v216 = vpop.permute.xlu0 %215
    %217 = vrot.lane.b32.xlu0 %v212, 32
    %v218 = vpop.permute.xlu0 %217
    %v221 = vadd.f32 %v201, %v216
    %v222 = vadd.f32 %v202, %v218
    %v223 = vtanh.pop %v221
    %v224 = vtanh.pop %v222
    %227 = vrot.lane.b32.xlu0 %v223, 64
    %v228 = vpop.permute.xlu0 %227
    %229 = vrot.lane.b32.xlu0 %v224, 64
    %v230 = vpop.permute.xlu0 %229
    %v233 = vmul.f32 %v187, %v228
    %v234 = vmul.f32 %v189, %v230
    %v237 = vrot.slane %v222, 7
    %vm238 = vcmask 1041409
    %v239 = vsel %vm238, %v237, %v221
    %240 = vrot.lane.b32.xlu0 %v239, 96
    %v241 = vpop.permute.xlu0 %240
    %vm243 = vcmask 254976
    %244 = vst.msk [vmem:[#allocation3] sm:$0x3] %vm243, %v241
    %v247 = vrot.slane %v234, 7
    %v248 = vsel %vm238, %v247, %v233
    %249 = vrot.lane.b32.xlu0 %v248, 32
    %v250 = vpop.permute.xlu0 %249
    %252 = vst.msk [vmem:[#allocation2] sm:$0x3] %vm243, %v250
    %v253 = vld [vmem:[#allocation2] sm:$0x3]
    %v254 = vpack.c.bf16 %v253, %v253
    %v256 = vsel %vm57, %v254, 0
    %258 = vmatprep.subr.bf16.mxu0 0
    %259 = vmatpush1.bf16.msra.mxu0 0
    %260 = vmatprep.subr.bf16.mxu0 0
    %261 = vmatpush1.bf16.msra.mxu0 0
    %262 = vmatprep.subr.bf16.mxu0 0
    %263 = vmatpush1.bf16.msra.mxu0 0
    %264 = vmatprep.subr.bf16.mxu0 0
    %265 = vmatpush1.bf16.msra.mxu0 0
    %266 = vmatprep.subr.bf16.mxu0 0
    %267 = vmatpush1.bf16.msra.mxu0 0
    %268 = vmatprep.subr.bf16.mxu0 0
    %269 = vmatpush1.bf16.msra.mxu0 0
    %270 = vmatprep.subr.bf16.mxu0 0
    %271 = vmatpush1.bf16.msra.mxu0 %v126
    %272 = vmatprep.subr.bf16.mxu0 0
    %273 = vmatpush1.bf16.msra.mxu0 %v125
    %274 = vmatprep.subr.bf16.mxu0 0
    %275 = vmatpush2.bf16.msra.mxu0 0
    %276 = vmatprep.subr.bf16.mxu0 0
    %277 = vmatpush2.bf16.msra.mxu0 0
    %278 = vmatprep.subr.bf16.mxu0 0
    %279 = vmatpush2.bf16.msra.mxu0 0
    %280 = vmatprep.subr.bf16.mxu0 0
    %281 = vmatpush2.bf16.msra.mxu0 0
    %282 = vmatprep.subr.bf16.mxu0 0
    %283 = vmatpush2.bf16.msra.mxu0 0
    %284 = vmatprep.subr.bf16.mxu0 0
    %285 = vmatpush2.bf16.msra.mxu0 0
    %286 = vmatprep.subr.bf16.mxu0 0
    %287 = vmatpush2.bf16.msra.mxu0 0
    %288 = vmatprep.subr.bf16.mxu0 0
    %289 = vmatpush2.bf16.msra.mxu0 0
    %290 = vmatprep.mubr.bf16.mxu0 0
    %291 = vmatmul.mubr.bf16.gmra.mxu0 %v256
    %v292 = vpop.f32.mrf.mxu0
    %v293 = vadd.f32 0.0, %v292
    %v294 = vpop.f32.mrf.mxu0
    %v295 = vpop.f32.mrf.mxu0
    %v296 = vpop.f32.mrf.mxu0
    %297 = vdwg.mxu0
    %v299 = vrot.slane %v293, 7
    %v302 = vadd.f32 %v109, %v299
    %v303 = vadd.f32 %v110, %v293
    %v304 = vxor.u32 %v302, 2147483648
    %v305 = vxor.u32 %v303, 2147483648
    %v306 = vmul.f32 %v304, 1.442695
    %v307 = vpow.pop %v306
    %v308 = vmul.f32 %v305, 1.442695
    %v309 = vpow.pop %v308
    %v310 = vadd.f32 %v307, 1.0
    %v311 = vadd.f32 %v309, 1.0
    %v312 = vrcp.pop %v310
    %v313 = vmul.f32 1.0, %v312
    %v314 = vrcp.pop %v311
    %v315 = vmul.f32 1.0, %v314
    %v316 = vtanh.pop %v302
    %v317 = vtanh.pop %v303
    %v318 = vld [vmem:[#allocation3] sm:$0x3]
    %v320 = vrot.slane %v318, 7
    %321 = vrot.lane.b32.xlu0 %v320, 32
    %v322 = vpop.permute.xlu0 %321
    %323 = vrot.lane.b32.xlu0 %v318, 32
    %v324 = vpop.permute.xlu0 %323
    %v327 = vmul.f32 %v313, %v322
    %v328 = vmul.f32 %v315, %v324
    %331 = vrot.lane.b32.xlu0 %v316, 64
    %v332 = vpop.permute.xlu0 %331
    %333 = vrot.lane.b32.xlu0 %v317, 64
    %v334 = vpop.permute.xlu0 %333
    %v337 = vmul.f32 %v313, %v332
    %v338 = vmul.f32 %v315, %v334
    %341 = vrot.lane.b32.xlu0 %v337, 32
    %v342 = vpop.permute.xlu0 %341
    %343 = vrot.lane.b32.xlu0 %v338, 32
    %v344 = vpop.permute.xlu0 %343
    %v347 = vadd.f32 %v327, %v342
    %v348 = vadd.f32 %v328, %v344
    %v349 = vtanh.pop %v347
    %v350 = vtanh.pop %v348
    %353 = vrot.lane.b32.xlu0 %v349, 64
    %v354 = vpop.permute.xlu0 %353
    %355 = vrot.lane.b32.xlu0 %v350, 64
    %v356 = vpop.permute.xlu0 %355
    %v359 = vmul.f32 %v313, %v354
    %v360 = vmul.f32 %v315, %v356
    %v363 = vrot.slane %v348, 7
    %vm364 = vcmask 1042434
    %v365 = vsel %vm364, %v363, %v347
    %366 = vrot.lane.b32.xlu0 %v365, 96
    %v367 = vpop.permute.xlu0 %366
    %vm369 = vcmask 256001
    %370 = vst.msk [vmem:[#allocation3 - $0x1] sm:$0x6] %vm369, %v367
    %v373 = vrot.slane %v360, 7
    %v374 = vsel %vm364, %v373, %v359
    %375 = vrot.lane.b32.xlu0 %v374, 32
    %v376 = vpop.permute.xlu0 %375
    %378 = vst.msk [vmem:[#allocation2 - $0x1] sm:$0x6] %vm369, %v376
    %v379 = vld [vmem:[#allocation2] sm:$0x3]
    %v380 = vpack.c.bf16 %v379, %v379
    %v382 = vsel %vm57, %v380, 0
    %384 = vmatprep.subr.bf16.mxu0 0
    %385 = vmatpush1.bf16.msra.mxu0 0
    %386 = vmatprep.subr.bf16.mxu0 0
    %387 = vmatpush1.bf16.msra.mxu0 0
    %388 = vmatprep.subr.bf16.mxu0 0
    %389 = vmatpush1.bf16.msra.mxu0 0
    %390 = vmatprep.subr.bf16.mxu0 0
    %391 = vmatpush1.bf16.msra.mxu0 0
    %392 = vmatprep.subr.bf16.mxu0 0
    %393 = vmatpush1.bf16.msra.mxu0 0
    %394 = vmatprep.subr.bf16.mxu0 0
    %395 = vmatpush1.bf16.msra.mxu0 0
    %396 = vmatprep.subr.bf16.mxu0 0
    %397 = vmatpush1.bf16.msra.mxu0 %v126
    %398 = vmatprep.subr.bf16.mxu0 0
    %399 = vmatpush1.bf16.msra.mxu0 %v125
    %400 = vmatprep.subr.bf16.mxu0 0
    %401 = vmatpush2.bf16.msra.mxu0 0
    %402 = vmatprep.subr.bf16.mxu0 0
    %403 = vmatpush2.bf16.msra.mxu0 0
    %404 = vmatprep.subr.bf16.mxu0 0
    %405 = vmatpush2.bf16.msra.mxu0 0
    %406 = vmatprep.subr.bf16.mxu0 0
    %407 = vmatpush2.bf16.msra.mxu0 0
    %408 = vmatprep.subr.bf16.mxu0 0
    %409 = vmatpush2.bf16.msra.mxu0 0
    %410 = vmatprep.subr.bf16.mxu0 0
    %411 = vmatpush2.bf16.msra.mxu0 0
    %412 = vmatprep.subr.bf16.mxu0 0
    %413 = vmatpush2.bf16.msra.mxu0 0
    %414 = vmatprep.subr.bf16.mxu0 0
    %415 = vmatpush2.bf16.msra.mxu0 0
    %416 = vmatprep.mubr.bf16.mxu0 0
    %417 = vmatmul.mubr.bf16.gmra.mxu0 %v382
    %v418 = vpop.f32.mrf.mxu0
    %v419 = vadd.f32 0.0, %v418
    %v420 = vpop.f32.mrf.mxu0
    %v421 = vpop.f32.mrf.mxu0
    %v422 = vpop.f32.mrf.mxu0
    %423 = vdwg.mxu0
    %v425 = vrot.slane %v419, 6
    %v426 = vrot.slane %v419, 7
    %v429 = vadd.f32 %v109, %v425
    %v430 = vadd.f32 %v110, %v426
    %v431 = vxor.u32 %v429, 2147483648
    %v432 = vxor.u32 %v430, 2147483648
    %v433 = vmul.f32 %v431, 1.442695
    %v434 = vpow.pop %v433
    %v435 = vmul.f32 %v432, 1.442695
    %v436 = vpow.pop %v435
    %v437 = vadd.f32 %v434, 1.0
    %v438 = vadd.f32 %v436, 1.0
    %v439 = vrcp.pop %v437
    %v440 = vmul.f32 1.0, %v439
    %v441 = vrcp.pop %v438
    %v442 = vmul.f32 1.0, %v441
    %v443 = vtanh.pop %v429
    %v444 = vtanh.pop %v430
    %v445 = vld [vmem:[#allocation3] sm:$0x3]
    %v447 = vrot.slane %v445, 6
    %v448 = vrot.slane %v445, 7
    %449 = vrot.lane.b32.xlu0 %v447, 32
    %v450 = vpop.permute.xlu0 %449
    %451 = vrot.lane.b32.xlu0 %v448, 32
    %v452 = vpop.permute.xlu0 %451
    %v455 = vmul.f32 %v440, %v450
    %v456 = vmul.f32 %v442, %v452
    %459 = vrot.lane.b32.xlu0 %v443, 64
    %v460 = vpop.permute.xlu0 %459
    %461 = vrot.lane.b32.xlu0 %v444, 64
    %v462 = vpop.permute.xlu0 %461
    %v465 = vmul.f32 %v440, %v460
    %v466 = vmul.f32 %v442, %v462
    %469 = vrot.lane.b32.xlu0 %v465, 32
    %v470 = vpop.permute.xlu0 %469
    %471 = vrot.lane.b32.xlu0 %v466, 32
    %v472 = vpop.permute.xlu0 %471
    %v475 = vadd.f32 %v455, %v470
    %v476 = vadd.f32 %v456, %v472
    %v477 = vtanh.pop %v475
    %v478 = vtanh.pop %v476
    %481 = vrot.lane.b32.xlu0 %v477, 64
    %v482 = vpop.permute.xlu0 %481
    %483 = vrot.lane.b32.xlu0 %v478, 64
    %v484 = vpop.permute.xlu0 %483
    %v487 = vmul.f32 %v440, %v482
    %v488 = vmul.f32 %v442, %v484
    %v491 = vrot.slane %v476, 7
    %vm492 = vcmask 1043459
    %v493 = vsel %vm492, %v491, %v475
    %494 = vrot.lane.b32.xlu0 %v493, 96
    %v495 = vpop.permute.xlu0 %494
    %vm497 = vcmask 257026
    %498 = vst.msk [vmem:[#allocation3 - $0x2] sm:$0xc] %vm497, %v495
    %v501 = vrot.slane %v488, 7
    %v502 = vsel %vm492, %v501, %v487
    %503 = vrot.lane.b32.xlu0 %v502, 32
    %v504 = vpop.permute.xlu0 %503
    %506 = vst.msk [vmem:[#allocation2 - $0x2] sm:$0xc] %vm497, %v504
    %v507 = vld [vmem:[#allocation2] sm:$0x3]
    %v508 = vpack.c.bf16 %v507, %v507
    %v510 = vsel %vm57, %v508, 0
    %512 = vmatprep.subr.bf16.mxu0 0
    %513 = vmatpush1.bf16.msra.mxu0 0
    %514 = vmatprep.subr.bf16.mxu0 0
    %515 = vmatpush1.bf16.msra.mxu0 0
    %516 = vmatprep.subr.bf16.mxu0 0
    %517 = vmatpush1.bf16.msra.mxu0 0
    %518 = vmatprep.subr.bf16.mxu0 0
    %519 = vmatpush1.bf16.msra.mxu0 0
    %520 = vmatprep.subr.bf16.mxu0 0
    %521 = vmatpush1.bf16.msra.mxu0 0
    %522 = vmatprep.subr.bf16.mxu0 0
    %523 = vmatpush1.bf16.msra.mxu0 0
    %524 = vmatprep.subr.bf16.mxu0 0
    %525 = vmatpush1.bf16.msra.mxu0 %v126
    %526 = vmatprep.subr.bf16.mxu0 0
    %527 = vmatpush1.bf16.msra.mxu0 %v125
    %528 = vmatprep.subr.bf16.mxu0 0
    %529 = vmatpush2.bf16.msra.mxu0 0
    %530 = vmatprep.subr.bf16.mxu0 0
    %531 = vmatpush2.bf16.msra.mxu0 0
    %532 = vmatprep.subr.bf16.mxu0 0
    %533 = vmatpush2.bf16.msra.mxu0 0
    %534 = vmatprep.subr.bf16.mxu0 0
    %535 = vmatpush2.bf16.msra.mxu0 0
    %536 = vmatprep.subr.bf16.mxu0 0
    %537 = vmatpush2.bf16.msra.mxu0 0
    %538 = vmatprep.subr.bf16.mxu0 0
    %539 = vmatpush2.bf16.msra.mxu0 0
    %540 = vmatprep.subr.bf16.mxu0 0
    %541 = vmatpush2.bf16.msra.mxu0 0
    %542 = vmatprep.subr.bf16.mxu0 0
    %543 = vmatpush2.bf16.msra.mxu0 0
    %544 = vmatprep.mubr.bf16.mxu0 0
    %545 = vmatmul.mubr.bf16.gmra.mxu0 %v510
    %v546 = vpop.f32.mrf.mxu0
    %v547 = vadd.f32 0.0, %v546
    %v548 = vpop.f32.mrf.mxu0
    %v549 = vpop.f32.mrf.mxu0
    %v550 = vpop.f32.mrf.mxu0
    %551 = vdwg.mxu0
    %v553 = vrot.slane %v547, 5
    %v554 = vrot.slane %v547, 6
    %v557 = vadd.f32 %v109, %v553
    %v558 = vadd.f32 %v110, %v554
    %v559 = vxor.u32 %v557, 2147483648
    %v560 = vxor.u32 %v558, 2147483648
    %v561 = vmul.f32 %v559, 1.442695
    %v562 = vpow.pop %v561
    %v563 = vmul.f32 %v560, 1.442695
    %v564 = vpow.pop %v563
    %v565 = vadd.f32 %v562, 1.0
    %v566 = vadd.f32 %v564, 1.0
    %v567 = vrcp.pop %v565
    %v568 = vmul.f32 1.0, %v567
    %v569 = vrcp.pop %v566
    %v570 = vmul.f32 1.0, %v569
    %v571 = vtanh.pop %v557
    %v572 = vtanh.pop %v558
    %v573 = vld [vmem:[#allocation3] sm:$0x3]
    %v575 = vrot.slane %v573, 5
    %v576 = vrot.slane %v573, 6
    %577 = vrot.lane.b32.xlu0 %v575, 32
    %v578 = vpop.permute.xlu0 %577
    %579 = vrot.lane.b32.xlu0 %v576, 32
    %v580 = vpop.permute.xlu0 %579
    %v583 = vmul.f32 %v568, %v578
    %v584 = vmul.f32 %v570, %v580
    %587 = vrot.lane.b32.xlu0 %v571, 64
    %v588 = vpop.permute.xlu0 %587
    %589 = vrot.lane.b32.xlu0 %v572, 64
    %v590 = vpop.permute.xlu0 %589
    %v593 = vmul.f32 %v568, %v588
    %v594 = vmul.f32 %v570, %v590
    %597 = vrot.lane.b32.xlu0 %v593, 32
    %v598 = vpop.permute.xlu0 %597
    %599 = vrot.lane.b32.xlu0 %v594, 32
    %v600 = vpop.permute.xlu0 %599
    %v603 = vadd.f32 %v583, %v598
    %v604 = vadd.f32 %v584, %v600
    %v605 = vtanh.pop %v603
    %v606 = vtanh.pop %v604
    %609 = vrot.lane.b32.xlu0 %v605, 64
    %v610 = vpop.permute.xlu0 %609
    %611 = vrot.lane.b32.xlu0 %v606, 64
    %v612 = vpop.permute.xlu0 %611
    %v615 = vmul.f32 %v568, %v610
    %v616 = vmul.f32 %v570, %v612
    %v619 = vrot.slane %v604, 7
    %vm620 = vcmask 1044484
    %v621 = vsel %vm620, %v619, %v603
    %622 = vrot.lane.b32.xlu0 %v621, 96
    %v623 = vpop.permute.xlu0 %622
    %vm625 = vcmask 258051
    %626 = vst.msk [vmem:[#allocation3 - $0x3] sm:$0x18] %vm625, %v623
    %v629 = vrot.slane %v616, 7
    %v630 = vsel %vm620, %v629, %v615
    %631 = vrot.lane.b32.xlu0 %v630, 32
    %v632 = vpop.permute.xlu0 %631
    %634 = vst.msk [vmem:[#allocation2 - $0x3] sm:$0x18] %vm625, %v632
    %v635 = vld [vmem:[#allocation2] sm:$0x3]
    %v636 = vpack.c.bf16 %v635, %v635
    %v638 = vsel %vm57, %v636, 0
    %640 = vmatprep.subr.bf16.mxu0 0
    %641 = vmatpush1.bf16.msra.mxu0 0
    %642 = vmatprep.subr.bf16.mxu0 0
    %643 = vmatpush1.bf16.msra.mxu0 0
    %644 = vmatprep.subr.bf16.mxu0 0
    %645 = vmatpush1.bf16.msra.mxu0 0
    %646 = vmatprep.subr.bf16.mxu0 0
    %647 = vmatpush1.bf16.msra.mxu0 0
    %648 = vmatprep.subr.bf16.mxu0 0
    %649 = vmatpush1.bf16.msra.mxu0 0
    %650 = vmatprep.subr.bf16.mxu0 0
    %651 = vmatpush1.bf16.msra.mxu0 0
    %652 = vmatprep.subr.bf16.mxu0 0
    %653 = vmatpush1.bf16.msra.mxu0 %v126
    %654 = vmatprep.subr.bf16.mxu0 0
    %655 = vmatpush1.bf16.msra.mxu0 %v125
    %656 = vmatprep.subr.bf16.mxu0 0
    %657 = vmatpush2.bf16.msra.mxu0 0
    %658 = vmatprep.subr.bf16.mxu0 0
    %659 = vmatpush2.bf16.msra.mxu0 0
    %660 = vmatprep.subr.bf16.mxu0 0
    %661 = vmatpush2.bf16.msra.mxu0 0
    %662 = vmatprep.subr.bf16.mxu0 0
    %663 = vmatpush2.bf16.msra.mxu0 0
    %664 = vmatprep.subr.bf16.mxu0 0
    %665 = vmatpush2.bf16.msra.mxu0 0
    %666 = vmatprep.subr.bf16.mxu0 0
    %667 = vmatpush2.bf16.msra.mxu0 0
    %668 = vmatprep.subr.bf16.mxu0 0
    %669 = vmatpush2.bf16.msra.mxu0 0
    %670 = vmatprep.subr.bf16.mxu0 0
    %671 = vmatpush2.bf16.msra.mxu0 0
    %672 = vmatprep.mubr.bf16.mxu0 0
    %673 = vmatmul.mubr.bf16.gmra.mxu0 %v638
    %v674 = vpop.f32.mrf.mxu0
    %v675 = vadd.f32 0.0, %v674
    %v676 = vpop.f32.mrf.mxu0
    %v677 = vpop.f32.mrf.mxu0
    %v678 = vpop.f32.mrf.mxu0
    %679 = vdwg.mxu0
    %v681 = vrot.slane %v675, 4
    %v682 = vrot.slane %v675, 5
    %v685 = vadd.f32 %v109, %v681
    %v686 = vadd.f32 %v110, %v682
    %v687 = vxor.u32 %v685, 2147483648
    %v688 = vxor.u32 %v686, 2147483648
    %v689 = vmul.f32 %v687, 1.442695
    %v690 = vpow.pop %v689
    %v691 = vmul.f32 %v688, 1.442695
    %v692 = vpow.pop %v691
    %v693 = vadd.f32 %v690, 1.0
    %v694 = vadd.f32 %v692, 1.0
    %v695 = vrcp.pop %v693
    %v696 = vmul.f32 1.0, %v695
    %v697 = vrcp.pop %v694
    %v698 = vmul.f32 1.0, %v697
    %v699 = vtanh.pop %v685
    %v700 = vtanh.pop %v686
    %v701 = vld [vmem:[#allocation3] sm:$0x3]
    %v703 = vrot.slane %v701, 4
    %v704 = vrot.slane %v701, 5
    %705 = vrot.lane.b32.xlu0 %v703, 32
    %v706 = vpop.permute.xlu0 %705
    %707 = vrot.lane.b32.xlu0 %v704, 32
    %v708 = vpop.permute.xlu0 %707
    %v711 = vmul.f32 %v696, %v706
    %v712 = vmul.f32 %v698, %v708
    %715 = vrot.lane.b32.xlu0 %v699, 64
    %v716 = vpop.permute.xlu0 %715
    %717 = vrot.lane.b32.xlu0 %v700, 64
    %v718 = vpop.permute.xlu0 %717
    %v721 = vmul.f32 %v696, %v716
    %v722 = vmul.f32 %v698, %v718
    %725 = vrot.lane.b32.xlu0 %v721, 32
    %v726 = vpop.permute.xlu0 %725
    %727 = vrot.lane.b32.xlu0 %v722, 32
    %v728 = vpop.permute.xlu0 %727
    %v731 = vadd.f32 %v711, %v726
    %v732 = vadd.f32 %v712, %v728
    %v733 = vtanh.pop %v731
    %v734 = vtanh.pop %v732
    %737 = vrot.lane.b32.xlu0 %v733, 64
    %v738 = vpop.permute.xlu0 %737
    %739 = vrot.lane.b32.xlu0 %v734, 64
    %v740 = vpop.permute.xlu0 %739
    %v743 = vmul.f32 %v696, %v738
    %v744 = vmul.f32 %v698, %v740
    %v747 = vrot.slane %v732, 7
    %vm748 = vcmask 1045509
    %v749 = vsel %vm748, %v747, %v731
    %750 = vrot.lane.b32.xlu0 %v749, 96
    %v751 = vpop.permute.xlu0 %750
    %vm753 = vcmask 259076
    %754 = vst.msk [vmem:[#allocation3 - $0x4] sm:$0x30] %vm753, %v751
    %v757 = vrot.slane %v744, 7
    %v758 = vsel %vm748, %v757, %v743
    %759 = vrot.lane.b32.xlu0 %v758, 32
    %v760 = vpop.permute.xlu0 %759
    %762 = vst.msk [vmem:[#allocation2 - $0x4] sm:$0x30] %vm753, %v760
    %v763 = vld [vmem:[#allocation2] sm:$0x3]
    %v764 = vpack.c.bf16 %v763, %v763
    %v766 = vsel %vm57, %v764, 0
    %768 = vmatprep.subr.bf16.mxu0 0
    %769 = vmatpush1.bf16.msra.mxu0 0
    %770 = vmatprep.subr.bf16.mxu0 0
    %771 = vmatpush1.bf16.msra.mxu0 0
    %772 = vmatprep.subr.bf16.mxu0 0
    %773 = vmatpush1.bf16.msra.mxu0 0
    %774 = vmatprep.subr.bf16.mxu0 0
    %775 = vmatpush1.bf16.msra.mxu0 0
    %776 = vmatprep.subr.bf16.mxu0 0
    %777 = vmatpush1.bf16.msra.mxu0 0
    %778 = vmatprep.subr.bf16.mxu0 0
    %779 = vmatpush1.bf16.msra.mxu0 0
    %780 = vmatprep.subr.bf16.mxu0 0
    %781 = vmatpush1.bf16.msra.mxu0 %v126
    %782 = vmatprep.subr.bf16.mxu0 0
    %783 = vmatpush1.bf16.msra.mxu0 %v125
    %784 = vmatprep.subr.bf16.mxu0 0
    %785 = vmatpush2.bf16.msra.mxu0 0
    %786 = vmatprep.subr.bf16.mxu0 0
    %787 = vmatpush2.bf16.msra.mxu0 0
    %788 = vmatprep.subr.bf16.mxu0 0
    %789 = vmatpush2.bf16.msra.mxu0 0
    %790 = vmatprep.subr.bf16.mxu0 0
    %791 = vmatpush2.bf16.msra.mxu0 0
    %792 = vmatprep.subr.bf16.mxu0 0
    %793 = vmatpush2.bf16.msra.mxu0 0
    %794 = vmatprep.subr.bf16.mxu0 0
    %795 = vmatpush2.bf16.msra.mxu0 0
    %796 = vmatprep.subr.bf16.mxu0 0
    %797 = vmatpush2.bf16.msra.mxu0 0
    %798 = vmatprep.subr.bf16.mxu0 0
    %799 = vmatpush2.bf16.msra.mxu0 0
    %800 = vmatprep.mubr.bf16.mxu0 0
    %801 = vmatmul.mubr.bf16.gmra.mxu0 %v766
    %v802 = vpop.f32.mrf.mxu0
    %v803 = vadd.f32 0.0, %v802
    %v804 = vpop.f32.mrf.mxu0
    %v805 = vpop.f32.mrf.mxu0
    %v806 = vpop.f32.mrf.mxu0
    %807 = vdwg.mxu0
    %v809 = vrot.slane %v803, 3
    %v810 = vrot.slane %v803, 4
    %v813 = vadd.f32 %v109, %v809
    %v814 = vadd.f32 %v110, %v810
    %v815 = vxor.u32 %v813, 2147483648
    %v816 = vxor.u32 %v814, 2147483648
    %v817 = vmul.f32 %v815, 1.442695
    %v818 = vpow.pop %v817
    %v819 = vmul.f32 %v816, 1.442695
    %v820 = vpow.pop %v819
    %v821 = vadd.f32 %v818, 1.0
    %v822 = vadd.f32 %v820, 1.0
    %v823 = vrcp.pop %v821
    %v824 = vmul.f32 1.0, %v823
    %v825 = vrcp.pop %v822
    %v826 = vmul.f32 1.0, %v825
    %v827 = vtanh.pop %v813
    %v828 = vtanh.pop %v814
    %v829 = vld [vmem:[#allocation3] sm:$0x3]
    %v831 = vrot.slane %v829, 3
    %v832 = vrot.slane %v829, 4
    %833 = vrot.lane.b32.xlu0 %v831, 32
    %v834 = vpop.permute.xlu0 %833
    %835 = vrot.lane.b32.xlu0 %v832, 32
    %v836 = vpop.permute.xlu0 %835
    %v839 = vmul.f32 %v824, %v834
    %v840 = vmul.f32 %v826, %v836
    %843 = vrot.lane.b32.xlu0 %v827, 64
    %v844 = vpop.permute.xlu0 %843
    %845 = vrot.lane.b32.xlu0 %v828, 64
    %v846 = vpop.permute.xlu0 %845
    %v849 = vmul.f32 %v824, %v844
    %v850 = vmul.f32 %v826, %v846
    %853 = vrot.lane.b32.xlu0 %v849, 32
    %v854 = vpop.permute.xlu0 %853
    %855 = vrot.lane.b32.xlu0 %v850, 32
    %v856 = vpop.permute.xlu0 %855
    %v859 = vadd.f32 %v839, %v854
    %v860 = vadd.f32 %v840, %v856
    %v861 = vtanh.pop %v859
    %v862 = vtanh.pop %v860
    %865 = vrot.lane.b32.xlu0 %v861, 64
    %v866 = vpop.permute.xlu0 %865
    %867 = vrot.lane.b32.xlu0 %v862, 64
    %v868 = vpop.permute.xlu0 %867
    %v871 = vmul.f32 %v824, %v866
    %v872 = vmul.f32 %v826, %v868
    %v875 = vrot.slane %v860, 7
    %vm876 = vcmask 1046534
    %v877 = vsel %vm876, %v875, %v859
    %878 = vrot.lane.b32.xlu0 %v877, 96
    %v879 = vpop.permute.xlu0 %878
    %vm881 = vcmask 260101
    %882 = vst.msk [vmem:[#allocation3 - $0x5] sm:$0x60] %vm881, %v879
    %v885 = vrot.slane %v872, 7
    %v886 = vsel %vm876, %v885, %v871
    %887 = vrot.lane.b32.xlu0 %v886, 32
    %v888 = vpop.permute.xlu0 %887
    %890 = vst.msk [vmem:[#allocation2 - $0x5] sm:$0x60] %vm881, %v888
    %v891 = vld [vmem:[#allocation2] sm:$0x3]
    %v892 = vpack.c.bf16 %v891, %v891
    %v894 = vsel %vm57, %v892, 0
    %896 = vmatprep.subr.bf16.mxu0 0
    %897 = vmatpush1.bf16.msra.mxu0 0
    %898 = vmatprep.subr.bf16.mxu0 0
    %899 = vmatpush1.bf16.msra.mxu0 0
    %900 = vmatprep.subr.bf16.mxu0 0
    %901 = vmatpush1.bf16.msra.mxu0 0
    %902 = vmatprep.subr.bf16.mxu0 0
    %903 = vmatpush1.bf16.msra.mxu0 0
    %904 = vmatprep.subr.bf16.mxu0 0
    %905 = vmatpush1.bf16.msra.mxu0 0
    %906 = vmatprep.subr.bf16.mxu0 0
    %907 = vmatpush1.bf16.msra.mxu0 0
    %908 = vmatprep.subr.bf16.mxu0 0
    %909 = vmatpush1.bf16.msra.mxu0 %v126
    %910 = vmatprep.subr.bf16.mxu0 0
    %911 = vmatpush1.bf16.msra.mxu0 %v125
    %912 = vmatprep.subr.bf16.mxu0 0
    %913 = vmatpush2.bf16.msra.mxu0 0
    %914 = vmatprep.subr.bf16.mxu0 0
    %915 = vmatpush2.bf16.msra.mxu0 0
    %916 = vmatprep.subr.bf16.mxu0 0
    %917 = vmatpush2.bf16.msra.mxu0 0
    %918 = vmatprep.subr.bf16.mxu0 0
    %919 = vmatpush2.bf16.msra.mxu0 0
    %920 = vmatprep.subr.bf16.mxu0 0
    %921 = vmatpush2.bf16.msra.mxu0 0
    %922 = vmatprep.subr.bf16.mxu0 0
    %923 = vmatpush2.bf16.msra.mxu0 0
    %924 = vmatprep.subr.bf16.mxu0 0
    %925 = vmatpush2.bf16.msra.mxu0 0
    %926 = vmatprep.subr.bf16.mxu0 0
    %927 = vmatpush2.bf16.msra.mxu0 0
    %928 = vmatprep.mubr.bf16.mxu0 0
    %929 = vmatmul.mubr.bf16.gmra.mxu0 %v894
    %v930 = vpop.f32.mrf.mxu0
    %v931 = vadd.f32 0.0, %v930
    %v932 = vpop.f32.mrf.mxu0
    %v933 = vpop.f32.mrf.mxu0
    %v934 = vpop.f32.mrf.mxu0
    %935 = vdwg.mxu0
    %v937 = vrot.slane %v931, 2
    %v938 = vrot.slane %v931, 3
    %v941 = vadd.f32 %v109, %v937
    %v942 = vadd.f32 %v110, %v938
    %v943 = vxor.u32 %v941, 2147483648
    %v944 = vxor.u32 %v942, 2147483648
    %v945 = vmul.f32 %v943, 1.442695
    %v946 = vpow.pop %v945
    %v947 = vmul.f32 %v944, 1.442695
    %v948 = vpow.pop %v947
    %v949 = vadd.f32 %v946, 1.0
    %v950 = vadd.f32 %v948, 1.0
    %v951 = vrcp.pop %v949
    %v952 = vmul.f32 1.0, %v951
    %v953 = vrcp.pop %v950
    %v954 = vmul.f32 1.0, %v953
    %v955 = vtanh.pop %v941
    %v956 = vtanh.pop %v942
    %v957 = vld [vmem:[#allocation3] sm:$0x3]
    %v959 = vrot.slane %v957, 2
    %v960 = vrot.slane %v957, 3
    %961 = vrot.lane.b32.xlu0 %v959, 32
    %v962 = vpop.permute.xlu0 %961
    %963 = vrot.lane.b32.xlu0 %v960, 32
    %v964 = vpop.permute.xlu0 %963
    %v967 = vmul.f32 %v952, %v962
    %v968 = vmul.f32 %v954, %v964
    %971 = vrot.lane.b32.xlu0 %v955, 64
    %v972 = vpop.permute.xlu0 %971
    %973 = vrot.lane.b32.xlu0 %v956, 64
    %v974 = vpop.permute.xlu0 %973
    %v977 = vmul.f32 %v952, %v972
    %v978 = vmul.f32 %v954, %v974
    %981 = vrot.lane.b32.xlu0 %v977, 32
    %v982 = vpop.permute.xlu0 %981
    %983 = vrot.lane.b32.xlu0 %v978, 32
    %v984 = vpop.permute.xlu0 %983
    %v987 = vadd.f32 %v967, %v982
    %v988 = vadd.f32 %v968, %v984
    %v989 = vtanh.pop %v987
    %v990 = vtanh.pop %v988
    %993 = vrot.lane.b32.xlu0 %v989, 64
    %v994 = vpop.permute.xlu0 %993
    %995 = vrot.lane.b32.xlu0 %v990, 64
    %v996 = vpop.permute.xlu0 %995
    %v999 = vmul.f32 %v952, %v994
    %v1000 = vmul.f32 %v954, %v996
    %v1003 = vrot.slane %v988, 7
    %vm1004 = vcmask 1047559
    %v1005 = vsel %vm1004, %v1003, %v987
    %1006 = vrot.lane.b32.xlu0 %v1005, 96
    %v1007 = vpop.permute.xlu0 %1006
    %vm1009 = vcmask 261126
    %1010 = vst.msk [vmem:[#allocation3 - $0x6] sm:$0xc0] %vm1009, %v1007
    %v1013 = vrot.slane %v1000, 7
    %v1014 = vsel %vm1004, %v1013, %v999
    %1015 = vrot.lane.b32.xlu0 %v1014, 32
    %v1016 = vpop.permute.xlu0 %1015
    %1018 = vst.msk [vmem:[#allocation2 - $0x6] sm:$0xc0] %vm1009, %v1016
    %v1019 = vld [vmem:[#allocation2] sm:$0x3]
    %v1020 = vpack.c.bf16 %v1019, %v1019
    %v1022 = vsel %vm57, %v1020, 0
    %1024 = vmatprep.subr.bf16.mxu0 0
    %1025 = vmatpush1.bf16.msra.mxu0 0
    %1026 = vmatprep.subr.bf16.mxu0 0
    %1027 = vmatpush1.bf16.msra.mxu0 0
    %1028 = vmatprep.subr.bf16.mxu0 0
    %1029 = vmatpush1.bf16.msra.mxu0 0
    %1030 = vmatprep.subr.bf16.mxu0 0
    %1031 = vmatpush1.bf16.msra.mxu0 0
    %1032 = vmatprep.subr.bf16.mxu0 0
    %1033 = vmatpush1.bf16.msra.mxu0 0
    %1034 = vmatprep.subr.bf16.mxu0 0
    %1035 = vmatpush1.bf16.msra.mxu0 0
    %1036 = vmatprep.subr.bf16.mxu0 0
    %1037 = vmatpush1.bf16.msra.mxu0 %v126
    %1038 = vmatprep.subr.bf16.mxu0 0
    %1039 = vmatpush1.bf16.msra.mxu0 %v125
    %1040 = vmatprep.subr.bf16.mxu0 0
    %1041 = vmatpush2.bf16.msra.mxu0 0
    %1042 = vmatprep.subr.bf16.mxu0 0
    %1043 = vmatpush2.bf16.msra.mxu0 0
    %1044 = vmatprep.subr.bf16.mxu0 0
    %1045 = vmatpush2.bf16.msra.mxu0 0
    %1046 = vmatprep.subr.bf16.mxu0 0
    %1047 = vmatpush2.bf16.msra.mxu0 0
    %1048 = vmatprep.subr.bf16.mxu0 0
    %1049 = vmatpush2.bf16.msra.mxu0 0
    %1050 = vmatprep.subr.bf16.mxu0 0
    %1051 = vmatpush2.bf16.msra.mxu0 0
    %1052 = vmatprep.subr.bf16.mxu0 0
    %1053 = vmatpush2.bf16.msra.mxu0 0
    %1054 = vmatprep.subr.bf16.mxu0 0
    %1055 = vmatpush2.bf16.msra.mxu0 0
    %1056 = vmatprep.mubr.bf16.mxu0 0
    %1057 = vmatmul.mubr.bf16.gmra.mxu0 %v1022
    %v1058 = vpop.f32.mrf.mxu0
    %v1059 = vadd.f32 0.0, %v1058
    %v1060 = vpop.f32.mrf.mxu0
    %v1061 = vpop.f32.mrf.mxu0
    %v1062 = vpop.f32.mrf.mxu0
    %1063 = vdwg.mxu0
    %v1065 = vrot.slane %v1059, 1
    %v1066 = vrot.slane %v1059, 2
    %v1069 = vadd.f32 %v109, %v1065
    %v1070 = vadd.f32 %v110, %v1066
    %v1071 = vxor.u32 %v1069, 2147483648
    %v1072 = vxor.u32 %v1070, 2147483648
    %v1073 = vmul.f32 %v1071, 1.442695
    %v1074 = vpow.pop %v1073
    %v1075 = vmul.f32 %v1072, 1.442695
    %v1076 = vpow.pop %v1075
    %v1077 = vadd.f32 %v1074, 1.0
    %v1078 = vadd.f32 %v1076, 1.0
    %v1079 = vrcp.pop %v1077
    %v1080 = vmul.f32 1.0, %v1079
    %v1081 = vrcp.pop %v1078
    %v1082 = vmul.f32 1.0, %v1081
    %v1083 = vtanh.pop %v1069
    %v1084 = vtanh.pop %v1070
    %v1085 = vld [vmem:[#allocation3] sm:$0x3]
    %v1087 = vrot.slane %v1085, 1
    %v1088 = vrot.slane %v1085, 2
    %1089 = vrot.lane.b32.xlu0 %v1087, 32
    %v1090 = vpop.permute.xlu0 %1089
    %1091 = vrot.lane.b32.xlu0 %v1088, 32
    %v1092 = vpop.permute.xlu0 %1091
    %v1095 = vmul.f32 %v1080, %v1090
    %v1096 = vmul.f32 %v1082, %v1092
    %1099 = vrot.lane.b32.xlu0 %v1083, 64
    %v1100 = vpop.permute.xlu0 %1099
    %1101 = vrot.lane.b32.xlu0 %v1084, 64
    %v1102 = vpop.permute.xlu0 %1101
    %v1105 = vmul.f32 %v1080, %v1100
    %v1106 = vmul.f32 %v1082, %v1102
    %1109 = vrot.lane.b32.xlu0 %v1105, 32
    %v1110 = vpop.permute.xlu0 %1109
    %1111 = vrot.lane.b32.xlu0 %v1106, 32
    %v1112 = vpop.permute.xlu0 %1111
    %v1115 = vadd.f32 %v1095, %v1110
    %v1116 = vadd.f32 %v1096, %v1112
    %v1117 = vtanh.pop %v1115
    %v1118 = vtanh.pop %v1116
    %1121 = vrot.lane.b32.xlu0 %v1117, 64
    %v1122 = vpop.permute.xlu0 %1121
    %1123 = vrot.lane.b32.xlu0 %v1118, 64
    %v1124 = vpop.permute.xlu0 %1123
    %v1127 = vmul.f32 %v1080, %v1122
    %v1128 = vmul.f32 %v1082, %v1124
    %v1131 = vrot.slane %v1116, 7
    %1132 = vrot.lane.b32.xlu0 %v1115, 96
    %v1133 = vpop.permute.xlu0 %1132
    %1134 = vrot.lane.b32.xlu0 %v1131, 96
    %v1135 = vpop.permute.xlu0 %1134
    %vm1138 = vcmask 261127
    %1139 = vst.msk [vmem:[#allocation3 - $0x7] sm:$0x80] %vm1138, %v1133
    %vm1140 = vcmask 253952
    %1141 = vst.msk [vmem:[#allocation3 + $0x1] sm:$0x1] %vm1140, %v1135
    %v1144 = vrot.slane %v1128, 7
    %1145 = vrot.lane.b32.xlu0 %v1127, 32
    %v1146 = vpop.permute.xlu0 %1145
    %1147 = vrot.lane.b32.xlu0 %v1144, 32
    %v1148 = vpop.permute.xlu0 %1147
    %1151 = vst.msk [vmem:[#allocation2 - $0x7] sm:$0x80] %vm1138, %v1146
    %1152 = vst.msk [vmem:[#allocation2 + $0x1] sm:$0x1] %vm1140, %v1148
    // Predicated region
    $region38: #{lstm_forward.3} parent=1 // pred_check
      %p1153 = pneg %p31
    $region39: #{lstm_forward.3} parent=1 // pred_check_branch
      %1155 = sbr.rel (%p1153) target = $region41
    $region40: #{lstm_forward.3} parent=1 // pred_region
      %v1156 = vld [vmem:[#allocation2] sm:$0x3]
      %v1157 = vpack.c.bf16 %v1156, %v1156
      %v1158 = vld [vmem:[%s4] sm:$0xf]
      %v1159 = vld [vmem:[%s4 + $0x4] sm:$0xf]
      %v1160 = vld [vmem:[%s4 + $0x8] sm:$0xf]
      %v1161 = vld [vmem:[%s4 + $0xc] sm:$0xf]
      %v1162 = vld [vmem:[%s5] sm:$0x1]
      %v1164 = vlaneseq
      %v1165 = vshrl.u32 %v1164, 7
      %v1166 = vsub.s32 0, %v1165
      %v1167 = vrot.slane %v1162, %v1166
      %v1173 = vunpack.c.l.b16 %v1158
      %v1174 = vunpack.c.l.b16 %v1159
      %v1175 = vunpack.c.l.b16 %v1160
      %v1176 = vunpack.c.l.b16 %v1161
      %v1177 = vpack.c.b16 %v1174, %v1173
      %v1178 = vpack.c.b16 %v1176, %v1175
      %v1182 = vsel %vm57, %v1157, 0
      %1184 = vmatprep.subr.bf16.mxu0 0
      %1185 = vmatpush1.bf16.msra.mxu0 0
      %1186 = vmatprep.subr.bf16.mxu0 0
      %1187 = vmatpush1.bf16.msra.mxu0 0
      %1188 = vmatprep.subr.bf16.mxu0 0
      %1189 = vmatpush1.bf16.msra.mxu0 0
      %1190 = vmatprep.subr.bf16.mxu0 0
      %1191 = vmatpush1.bf16.msra.mxu0 0
      %1192 = vmatprep.subr.bf16.mxu0 0
      %1193 = vmatpush1.bf16.msra.mxu0 0
      %1194 = vmatprep.subr.bf16.mxu0 0
      %1195 = vmatpush1.bf16.msra.mxu0 0
      %1196 = vmatprep.subr.bf16.mxu0 0
      %1197 = vmatpush1.bf16.msra.mxu0 %v1178
      %1198 = vmatprep.subr.bf16.mxu0 0
      %1199 = vmatpush1.bf16.msra.mxu0 %v1177
      %1200 = vmatprep.subr.bf16.mxu0 0
      %1201 = vmatpush2.bf16.msra.mxu0 0
      %1202 = vmatprep.subr.bf16.mxu0 0
      %1203 = vmatpush2.bf16.msra.mxu0 0
      %1204 = vmatprep.subr.bf16.mxu0 0
      %1205 = vmatpush2.bf16.msra.mxu0 0
      %1206 = vmatprep.subr.bf16.mxu0 0
      %1207 = vmatpush2.bf16.msra.mxu0 0
      %1208 = vmatprep.subr.bf16.mxu0 0
      %1209 = vmatpush2.bf16.msra.mxu0 0
      %1210 = vmatprep.subr.bf16.mxu0 0
      %1211 = vmatpush2.bf16.msra.mxu0 0
      %1212 = vmatprep.subr.bf16.mxu0 0
      %1213 = vmatpush2.bf16.msra.mxu0 0
      %1214 = vmatprep.subr.bf16.mxu0 0
      %1215 = vmatpush2.bf16.msra.mxu0 0
      %1216 = vmatprep.mubr.bf16.mxu0 0
      %1217 = vmatmul.mubr.bf16.gmra.mxu0 %v1182
      %v1218 = vpop.f32.mrf.mxu0
      %v1219 = vadd.f32 %v1167, %v1218
      %v1220 = vpop.f32.mrf.mxu0
      %v1221 = vpop.f32.mrf.mxu0
      %v1222 = vpop.f32.mrf.mxu0
      %1223 = vdwg.mxu0
      %v1224 = vpack.c.bf16 %v1219, %v1219
      %v1225 = vld [vmem:[%s6] sm:$0xf]
      %v1226 = vld [vmem:[%s6 + $0x4] sm:$0xf]
      %v1227 = vld [vmem:[%s6 + $0x8] sm:$0xf]
      %v1228 = vld [vmem:[%s6 + $0xc] sm:$0xf]
      %v1229 = vld [vmem:[%s7] sm:$0x1]
      %v1231 = vlaneseq
      %v1232 = vshrl.u32 %v1231, 7
      %v1233 = vsub.s32 0, %v1232
      %v1234 = vrot.slane %v1229, %v1233
      %v1240 = vunpack.c.l.b16 %v1225
      %v1241 = vunpack.c.l.b16 %v1226
      %v1242 = vunpack.c.l.b16 %v1227
      %v1243 = vunpack.c.l.b16 %v1228
      %v1244 = vpack.c.b16 %v1241, %v1240
      %v1245 = vpack.c.b16 %v1243, %v1242
      %v1249 = vsel %vm57, %v1224, 0
      %1251 = vmatprep.subr.bf16.mxu0 0
      %1252 = vmatpush1.bf16.msra.mxu0 0
      %1253 = vmatprep.subr.bf16.mxu0 0
      %1254 = vmatpush1.bf16.msra.mxu0 0
      %1255 = vmatprep.subr.bf16.mxu0 0
      %1256 = vmatpush1.bf16.msra.mxu0 0
      %1257 = vmatprep.subr.bf16.mxu0 0
      %1258 = vmatpush1.bf16.msra.mxu0 0
      %1259 = vmatprep.subr.bf16.mxu0 0
      %1260 = vmatpush1.bf16.msra.mxu0 0
      %1261 = vmatprep.subr.bf16.mxu0 0
      %1262 = vmatpush1.bf16.msra.mxu0 0
      %1263 = vmatprep.subr.bf16.mxu0 0
      %1264 = vmatpush1.bf16.msra.mxu0 %v1245
      %1265 = vmatprep.subr.bf16.mxu0 0
      %1266 = vmatpush1.bf16.msra.mxu0 %v1244
      %1267 = vmatprep.subr.bf16.mxu0 0
      %1268 = vmatpush2.bf16.msra.mxu0 0
      %1269 = vmatprep.subr.bf16.mxu0 0
      %1270 = vmatpush2.bf16.msra.mxu0 0
      %1271 = vmatprep.subr.bf16.mxu0 0
      %1272 = vmatpush2.bf16.msra.mxu0 0
      %1273 = vmatprep.subr.bf16.mxu0 0
      %1274 = vmatpush2.bf16.msra.mxu0 0
      %1275 = vmatprep.subr.bf16.mxu0 0
      %1276 = vmatpush2.bf16.msra.mxu0 0
      %1277 = vmatprep.subr.bf16.mxu0 0
      %1278 = vmatpush2.bf16.msra.mxu0 0
      %1279 = vmatprep.subr.bf16.mxu0 0
      %1280 = vmatpush2.bf16.msra.mxu0 0
      %1281 = vmatprep.subr.bf16.mxu0 0
      %1282 = vmatpush2.bf16.msra.mxu0 0
      %1283 = vmatprep.mubr.bf16.mxu0 0
      %1284 = vmatmul.mubr.bf16.gmra.mxu0 %v1249
      %v1285 = vpop.f32.mrf.mxu0
      %v1286 = vadd.f32 %v1234, %v1285
      %v1287 = vpop.f32.mrf.mxu0
      %v1288 = vpop.f32.mrf.mxu0
      %v1289 = vpop.f32.mrf.mxu0
      %1290 = vdwg.mxu0
      %1291 = vst [vmem:[#allocation4] sm:$0x3] %v1286
    $region41: #{lstm_forward.3} parent=1 // pred_fallthru
      _
    // Predicated region
    $region42: #{lstm_forward.3} parent=1 // pred_check
      _
    $region43: #{lstm_forward.3} parent=1 // pred_check_branch
      %1293 = sbr.rel (0) target = $region45
    $region44: #{lstm_forward.3} parent=1 // pred_region
      %s1295 = ssub.s32 32, 32
      %1296 = vsyncadd [#allocation5], %s1295
      %s1298 = sshll.u32 [#allocation4], 4
      %s1299 = int_to_ptr.vmem [resolvable:$true] %s1298
      %1301 = dma.vmem_to_hbm [thread:$0]  %s1299, 32, %s8, [#allocation5]
    $region45: #{lstm_forward.3} parent=1 // pred_fallthru
      _
    // Predicated region
    $region46: #{lstm_forward.3} parent=1 // pred_check
      _
    $region47: #{lstm_forward.3} parent=1 // pred_check_branch
      %1303 = sbr.rel (0) target = $region49
    $region48: #{lstm_forward.3} parent=1 // pred_region
      %1304 = dma.done [#allocation5], 32
    $region49: #{lstm_forward.3} parent=1 // pred_fallthru
      _
    %1305 = vsyncpa [#allocation5], 1

// kernel: lstm_forward.2
$region0: #{lstm_forward.2}
  #allocation0 [shape = 'u32[]', space=smem, size = 0x4, offset = 0x4, fixed_abs, tag = 'smem constant byte address 0x4 - core index']
  #allocation1 [shape = 'u32[144,128]{1,0:T(1,128)}', space=vmem, size = 0x12000, scoped, tag = 'internal scratch']
  #allocation2 [shape = 'f32[2,32]{1,0:T(2,128)}', space=vmem, size = 0x400, scoped, tag = 'scratch operand']
  #allocation3 [shape = 'f32[2,32]{1,0:T(2,128)}', space=vmem, size = 0x400, scoped, tag = 'scratch operand']
  %s0 = inlined_call_operand.hbm [shape: f32[2,8,48], index: 0, kind: input, shape index: {}]
  %s1 = inlined_call_operand.hbm [shape: bf16[48,128], index: 1, kind: input, shape index: {}]
  %s2 = inlined_call_operand.hbm [shape: bf16[32,128], index: 2, kind: input, shape index: {}]
  %s3 = inlined_call_operand.vmem [shape: f32[1,128], index: 3, kind: input, shape index: {}]
  %s4 = inlined_call_operand.vmem [shape: f32[2,8,32], index: 4, kind: output, shape index: {}]
  %s5 = sld [smem:[#allocation0]]
  $region42: #{lstm_forward.2} parent=0
    _
  %s7 = ssub.s32 1, %s5
  %s8 = scalar_select 0, %s7, %s5
  $region1: #{lstm_forward.2} parent=0
    #allocation4 [shape = 'u8[8192]{0}', space=vmem, size = 0x2000, scoped, tag = 'input window, operand 0, single buffered']
    #allocation5 [shape = 's32[1]{0}', space=sflag, size = 0x4, scoped, tag = 'scoped memory for lstm_forward.2']
    #allocation6 [shape = 'u8[12288]{0}', space=vmem, size = 0x3000, scoped, tag = 'input window, operand 1, single buffered']
    #allocation7 [shape = 's32[1]{0}', space=sflag, size = 0x4, scoped, tag = 'scoped memory for lstm_forward.2']
    #allocation8 [shape = 'u8[8192]{0}', space=vmem, size = 0x2000, scoped, tag = 'input window, operand 2, single buffered']
    %9 = vsyncpa [#allocation5], 0
    %10 = vsyncpa [#allocation7], 0
    // Predicated region
    $region2: #{lstm_forward.2} parent=1 // pred_check
      _
    $region3: #{lstm_forward.2} parent=1 // pred_check_branch
      %12 = sbr.rel (0) target = $region5
    $region4: #{lstm_forward.2} parent=1 // pred_region
      %s14 = ssub.s32 256, 256
      %15 = vsyncadd [#allocation5], %s14
      %s16 = sshll.u32 [#allocation4], 4
      %s17 = int_to_ptr.vmem [resolvable:$true] %s16
      %22 = dma.hbm_to_vmem [thread:$0]  %s0, 256, %s17, [#allocation5], 128, 128, 8
    $region5: #{lstm_forward.2} parent=1 // pred_fallthru
      _
    // Predicated region
    $region6: #{lstm_forward.2} parent=1 // pred_check
      _
    $region7: #{lstm_forward.2} parent=1 // pred_check_branch
      %24 = sbr.rel (0) target = $region9
    $region8: #{lstm_forward.2} parent=1 // pred_region
      %s26 = ssub.s32 384, 384
      %27 = vsyncadd [#allocation7], %s26
      %s28 = sshll.u32 [#allocation6], 4
      %s29 = int_to_ptr.vmem [resolvable:$true] %s28
      %34 = dma.hbm_to_vmem [thread:$0]  %s1, 384, %s29, [#allocation7], 64, 64, 4
    $region9: #{lstm_forward.2} parent=1 // pred_fallthru
      _
    // Predicated region
    $region10: #{lstm_forward.2} parent=1 // pred_check
      _
    $region11: #{lstm_forward.2} parent=1 // pred_check_branch
      %36 = sbr.rel (0) target = $region13
    $region12: #{lstm_forward.2} parent=1 // pred_region
      %s38 = ssub.s32 256, 256
      %39 = vsyncadd [#allocation7], %s38
      %s40 = sshll.u32 [#allocation8], 4
      %s41 = int_to_ptr.vmem [resolvable:$true] %s40
      %46 = dma.hbm_to_vmem [thread:$0]  %s2, 256, %s41, [#allocation7], 64, 64, 4
    $region13: #{lstm_forward.2} parent=1 // pred_fallthru
      _
    // Predicated region
    $region14: #{lstm_forward.2} parent=1 // pred_check
      _
    $region15: #{lstm_forward.2} parent=1 // pred_check_branch
      %48 = sbr.rel (0) target = $region17
    $region16: #{lstm_forward.2} parent=1 // pred_region
      _
    $region17: #{lstm_forward.2} parent=1 // pred_fallthru
      _
    // Predicated region
    $region18: #{lstm_forward.2} parent=1 // pred_check
      _
    $region19: #{lstm_forward.2} parent=1 // pred_check_branch
      %50 = sbr.rel (0) target = $region21
    $region20: #{lstm_forward.2} parent=1 // pred_region
      %51 = dma.done [#allocation5], 256
    $region21: #{lstm_forward.2} parent=1 // pred_fallthru
      _
    // Predicated region
    $region22: #{lstm_forward.2} parent=1 // pred_check
      _
    $region23: #{lstm_forward.2} parent=1 // pred_check_branch
      %53 = sbr.rel (0) target = $region25
    $region24: #{lstm_forward.2} parent=1 // pred_region
      %54 = dma.done [#allocation7], 384
    $region25: #{lstm_forward.2} parent=1 // pred_fallthru
      _
    // Predicated region
    $region26: #{lstm_forward.2} parent=1 // pred_check
      _
    $region27: #{lstm_forward.2} parent=1 // pred_check_branch
      %56 = sbr.rel (0) target = $region29
    $region28: #{lstm_forward.2} parent=1 // pred_region
      %57 = dma.done [#allocation7], 256
    $region29: #{lstm_forward.2} parent=1 // pred_fallthru
      _
    %p59 = scmp.eq.s32.totalorder 0, 0
    // Predicated region
    $region30: #{lstm_forward.2} parent=1 // pred_check
      %p60 = pneg %p59
    $region31: #{lstm_forward.2} parent=1 // pred_check_branch
      %62 = sbr.rel (%p60) target = $region33
    $region32: #{lstm_forward.2} parent=1 // pred_region
      %vm63 = vcmask 254976
      %64 = vst.msk [vmem:[#allocation2] sm:$0x3] %vm63, 0.0
      %65 = vst.msk [vmem:[#allocation3] sm:$0x3] %vm63, 0.0
    $region33: #{lstm_forward.2} parent=1 // pred_fallthru
      _
    %v66 = vld [vmem:[#allocation4] sm:$0xff]
    %v67 = vld [vmem:[#allocation4 + $0x8] sm:$0xff]
    %v68 = vpack.c.bf16 %v67, %v66
    %v69 = vld [vmem:[#allocation6] sm:$0xf]
    %v70 = vld [vmem:[#allocation6 + $0x4] sm:$0xf]
    %v71 = vld [vmem:[#allocation6 + $0x8] sm:$0xf]
    %v72 = vld [vmem:[#allocation6 + $0xc] sm:$0xf]
    %v73 = vld [vmem:[#allocation6 + $0x10] sm:$0xf]
    %v74 = vld [vmem:[#allocation6 + $0x14] sm:$0xf]
    %v81 = vunpack.c.l.b16 %v69
    %v82 = vunpack.c.l.b16 %v70
    %v83 = vunpack.c.l.b16 %v71
    %v84 = vunpack.c.l.b16 %v72
    %v85 = vunpack.c.l.b16 %v73
    %v86 = vunpack.c.l.b16 %v74
    %v87 = vpack.c.b16 %v82, %v81
    %v88 = vpack.c.b16 %v84, %v83
    %v89 = vpack.c.b16 %v86, %v85
    %vm93 = vcmask 392192
    %v95 = vsel %vm93, %v68, 0
    %97 = vmatprep.subr.bf16.mxu0 0
    %98 = vmatpush1.bf16.msra.mxu0 0
    %99 = vmatprep.subr.bf16.mxu0 0
    %100 = vmatpush1.bf16.msra.mxu0 0
    %101 = vmatprep.subr.bf16.mxu0 0
    %102 = vmatpush1.bf16.msra.mxu0 0
    %103 = vmatprep.subr.bf16.mxu0 0
    %104 = vmatpush1.bf16.msra.mxu0 0
    %105 = vmatprep.subr.bf16.mxu0 0
    %106 = vmatpush1.bf16.msra.mxu0 0
    %107 = vmatprep.subr.bf16.mxu0 0
    %108 = vmatpush1.bf16.msra.mxu0 %v89
    %109 = vmatprep.subr.bf16.mxu0 0
    %110 = vmatpush1.bf16.msra.mxu0 %v88
    %111 = vmatprep.subr.bf16.mxu0 0
    %112 = vmatpush1.bf16.msra.mxu0 %v87
    %113 = vmatprep.subr.bf16.mxu0 0
    %114 = vmatpush2.bf16.msra.mxu0 0
    %115 = vmatprep.subr.bf16.mxu0 0
    %116 = vmatpush2.bf16.msra.mxu0 0
    %117 = vmatprep.subr.bf16.mxu0 0
    %118 = vmatpush2.bf16.msra.mxu0 0
    %119 = vmatprep.subr.bf16.mxu0 0
    %120 = vmatpush2.bf16.msra.mxu0 0
    %121 = vmatprep.subr.bf16.mxu0 0
    %122 = vmatpush2.bf16.msra.mxu0 0
    %123 = vmatprep.subr.bf16.mxu0 0
    %124 = vmatpush2.bf16.msra.mxu0 0
    %125 = vmatprep.subr.bf16.mxu0 0
    %126 = vmatpush2.bf16.msra.mxu0 0
    %127 = vmatprep.subr.bf16.mxu0 0
    %128 = vmatpush2.bf16.msra.mxu0 0
    %129 = vmatprep.mubr.bf16.mxu0 0
    %130 = vmatmul.mubr.bf16.gmra.mxu0 %v95
    %v131 = vpop.f32.mrf.mxu0
    %v132 = vadd.f32 0.0, %v131
    %v133 = vpop.f32.mrf.mxu0
    %v134 = vpop.f32.mrf.mxu0
    %v135 = vadd.f32 0.0, %v134
    %v136 = vpop.f32.mrf.mxu0
    %137 = vdwg.mxu0
    %v138 = vld [vmem:[%s3] sm:$0x1]
    %v140 = vlaneseq
    %v141 = vshrl.u32 %v140, 7
    %v142 = vsub.s32 0, %v141
    %v143 = vrot.slane %v138, %v142
    %v145 = vadd.f32 %v132, %v143
    %v146 = vadd.f32 %v135, %v143
    %v147 = vld [vmem:[#allocation8] sm:$0xf]
    %v148 = vld [vmem:[#allocation8 + $0x4] sm:$0xf]
    %v149 = vld [vmem:[#allocation8 + $0x8] sm:$0xf]
    %v150 = vld [vmem:[#allocation8 + $0xc] sm:$0xf]
    %v151 = vld [vmem:[#allocation2] sm:$0x3]
    %v152 = vpack.c.bf16 %v151, %v151
    %v157 = vunpack.c.l.b16 %v147
    %v158 = vunpack.c.l.b16 %v148
    %v159 = vunpack.c.l.b16 %v149
    %v160 = vunpack.c.l.b16 %v150
    %v161 = vpack.c.b16 %v158, %v157
    %v162 = vpack.c.b16 %v160, %v159
    %vm165 = vcmask 261120
    %v167 = vsel %vm165, %v152, 0
    %169 = vmatprep.subr.bf16.mxu0 0
    %170 = vmatpush1.bf16.msra.mxu0 0
    %171 = vmatprep.subr.bf16.mxu0 0
    %172 = vmatpush1.bf16.msra.mxu0 0
    %173 = vmatprep.subr.bf16.mxu0 0
    %174 = vmatpush1.bf16.msra.mxu0 0
    %175 = vmatprep.subr.bf16.mxu0 0
    %176 = vmatpush1.bf16.msra.mxu0 0
    %177 = vmatprep.subr.bf16.mxu0 0
    %178 = vmatpush1.bf16.msra.mxu0 0
    %179 = vmatprep.subr.bf16.mxu0 0
    %180 = vmatpush1.bf16.msra.mxu0 0
    %181 = vmatprep.subr.bf16.mxu0 0
    %182 = vmatpush1.bf16.msra.mxu0 %v162
    %183 = vmatprep.subr.bf16.mxu0 0
    %184 = vmatpush1.bf16.msra.mxu0 %v161
    %185 = vmatprep.subr.bf16.mxu0 0
    %186 = vmatpush2.bf16.msra.mxu0 0
    %187 = vmatprep.subr.bf16.mxu0 0
    %188 = vmatpush2.bf16.msra.mxu0 0
    %189 = vmatprep.subr.bf16.mxu0 0
    %190 = vmatpush2.bf16.msra.mxu0 0
    %191 = vmatprep.subr.bf16.mxu0 0
    %192 = vmatpush2.bf16.msra.mxu0 0
    %193 = vmatprep.subr.bf16.mxu0 0
    %194 = vmatpush2.bf16.msra.mxu0 0
    %195 = vmatprep.subr.bf16.mxu0 0
    %196 = vmatpush2.bf16.msra.mxu0 0
    %197 = vmatprep.subr.bf16.mxu0 0
    %198 = vmatpush2.bf16.msra.mxu0 0
    %199 = vmatprep.subr.bf16.mxu0 0
    %200 = vmatpush2.bf16.msra.mxu0 0
    %201 = vmatprep.mubr.bf16.mxu0 0
    %202 = vmatmul.mubr.bf16.gmra.mxu0 %v167
    %v203 = vpop.f32.mrf.mxu0
    %v204 = vadd.f32 0.0, %v203
    %v205 = vpop.f32.mrf.mxu0
    %v206 = vpop.f32.mrf.mxu0
    %v207 = vpop.f32.mrf.mxu0
    %208 = vdwg.mxu0
    %v210 = vrot.slane %v204, 1
    %v213 = vadd.f32 %v145, %v204
    %v214 = vadd.f32 %v146, %v210
    %v215 = vxor.u32 %v213, 2147483648
    %v216 = vxor.u32 %v214, 2147483648
    %v217 = vmul.f32 %v215, 1.442695
    %v218 = vpow.pop %v217
    %v219 = vmul.f32 %v216, 1.442695
    %v220 = vpow.pop %v219
    %v221 = vadd.f32 %v218, 1.0
    %v222 = vadd.f32 %v220, 1.0
    %v223 = vrcp.pop %v221
    %v224 = vmul.f32 1.0, %v223
    %v225 = vrcp.pop %v222
    %v226 = vmul.f32 1.0, %v225
    %v227 = vtanh.pop %v213
    %v228 = vtanh.pop %v214
    %v229 = vld [vmem:[#allocation3] sm:$0x3]
    %v231 = vrot.slane %v229, 1
    %232 = vrot.lane.b32.xlu0 %v229, 32
    %v233 = vpop.permute.xlu0 %232
    %234 = vrot.lane.b32.xlu0 %v231, 32
    %v235 = vpop.permute.xlu0 %234
    %v238 = vmul.f32 %v224, %v233
    %v239 = vmul.f32 %v226, %v235
    %242 = vrot.lane.b32.xlu0 %v227, 64
    %v243 = vpop.permute.xlu0 %242
    %244 = vrot.lane.b32.xlu0 %v228, 64
    %v245 = vpop.permute.xlu0 %244
    %v248 = vmul.f32 %v224, %v243
    %v249 = vmul.f32 %v226, %v245
    %252 = vrot.lane.b32.xlu0 %v248, 32
    %v253 = vpop.permute.xlu0 %252
    %254 = vrot.lane.b32.xlu0 %v249, 32
    %v255 = vpop.permute.xlu0 %254
    %v258 = vadd.f32 %v238, %v253
    %v259 = vadd.f32 %v239, %v255
    %v260 = vtanh.pop %v258
    %v261 = vtanh.pop %v259
    %264 = vrot.lane.b32.xlu0 %v260, 64
    %v265 = vpop.permute.xlu0 %264
    %266 = vrot.lane.b32.xlu0 %v261, 64
    %v267 = vpop.permute.xlu0 %266
    %v270 = vmul.f32 %v224, %v265
    %v271 = vmul.f32 %v226, %v267
    %v274 = vrot.slane %v259, 7
    %vm275 = vcmask 1041409
    %v276 = vsel %vm275, %v274, %v258
    %277 = vrot.lane.b32.xlu0 %v276, 96
    %v278 = vpop.permute.xlu0 %277
    %vm280 = vcmask 254976
    %281 = vst.msk [vmem:[#allocation3] sm:$0x3] %vm280, %v278
    %v284 = vrot.slane %v271, 7
    %v285 = vsel %vm275, %v284, %v270
    %286 = vrot.lane.b32.xlu0 %v285, 32
    %v287 = vpop.permute.xlu0 %286
    %289 = vst.msk [vmem:[#allocation2] sm:$0x3] %vm280, %v287
    %290 = vrot.lane.b32.xlu0 %v270, 32
    %v291 = vpop.permute.xlu0 %290
    %292 = vrot.lane.b32.xlu0 %v271, 32
    %v293 = vpop.permute.xlu0 %292
    %vm296 = vcmask 253952
    %297 = vst.msk [vmem:[%s4] sm:$0x1] %vm296, %v291
    %298 = vst.msk [vmem:[%s4 + $0x8] sm:$0x1] %vm296, %v293
    %v299 = vld [vmem:[#allocation2] sm:$0x3]
    %v300 = vpack.c.bf16 %v299, %v299
    %v302 = vsel %vm165, %v300, 0
    %304 = vmatprep.subr.bf16.mxu0 0
    %305 = vmatpush1.bf16.msra.mxu0 0
    %306 = vmatprep.subr.bf16.mxu0 0
    %307 = vmatpush1.bf16.msra.mxu0 0
    %308 = vmatprep.subr.bf16.mxu0 0
    %309 = vmatpush1.bf16.msra.mxu0 0
    %310 = vmatprep.subr.bf16.mxu0 0
    %311 = vmatpush1.bf16.msra.mxu0 0
    %312 = vmatprep.subr.bf16.mxu0 0
    %313 = vmatpush1.bf16.msra.mxu0 0
    %314 = vmatprep.subr.bf16.mxu0 0
    %315 = vmatpush1.bf16.msra.mxu0 0
    %316 = vmatprep.subr.bf16.mxu0 0
    %317 = vmatpush1.bf16.msra.mxu0 %v162
    %318 = vmatprep.subr.bf16.mxu0 0
    %319 = vmatpush1.bf16.msra.mxu0 %v161
    %320 = vmatprep.subr.bf16.mxu0 0
    %321 = vmatpush2.bf16.msra.mxu0 0
    %322 = vmatprep.subr.bf16.mxu0 0
    %323 = vmatpush2.bf16.msra.mxu0 0
    %324 = vmatprep.subr.bf16.mxu0 0
    %325 = vmatpush2.bf16.msra.mxu0 0
    %326 = vmatprep.subr.bf16.mxu0 0
    %327 = vmatpush2.bf16.msra.mxu0 0
    %328 = vmatprep.subr.bf16.mxu0 0
    %329 = vmatpush2.bf16.msra.mxu0 0
    %330 = vmatprep.subr.bf16.mxu0 0
    %331 = vmatpush2.bf16.msra.mxu0 0
    %332 = vmatprep.subr.bf16.mxu0 0
    %333 = vmatpush2.bf16.msra.mxu0 0
    %334 = vmatprep.subr.bf16.mxu0 0
    %335 = vmatpush2.bf16.msra.mxu0 0
    %336 = vmatprep.mubr.bf16.mxu0 0
    %337 = vmatmul.mubr.bf16.gmra.mxu0 %v302
    %v338 = vpop.f32.mrf.mxu0
    %v339 = vadd.f32 0.0, %v338
    %v340 = vpop.f32.mrf.mxu0
    %v341 = vpop.f32.mrf.mxu0
    %v342 = vpop.f32.mrf.mxu0
    %343 = vdwg.mxu0
    %v345 = vrot.slane %v339, 7
    %v348 = vadd.f32 %v145, %v345
    %v349 = vadd.f32 %v146, %v339
    %v350 = vxor.u32 %v348, 2147483648
    %v351 = vxor.u32 %v349, 2147483648
    %v352 = vmul.f32 %v350, 1.442695
    %v353 = vpow.pop %v352
    %v354 = vmul.f32 %v351, 1.442695
    %v355 = vpow.pop %v354
    %v356 = vadd.f32 %v353, 1.0
    %v357 = vadd.f32 %v355, 1.0
    %v358 = vrcp.pop %v356
    %v359 = vmul.f32 1.0, %v358
    %v360 = vrcp.pop %v357
    %v361 = vmul.f32 1.0, %v360
    %v362 = vtanh.pop %v348
    %v363 = vtanh.pop %v349
    %v364 = vld [vmem:[#allocation3] sm:$0x3]
    %v366 = vrot.slane %v364, 7
    %367 = vrot.lane.b32.xlu0 %v366, 32
    %v368 = vpop.permute.xlu0 %367
    %369 = vrot.lane.b32.xlu0 %v364, 32
    %v370 = vpop.permute.xlu0 %369
    %v373 = vmul.f32 %v359, %v368
    %v374 = vmul.f32 %v361, %v370
    %377 = vrot.lane.b32.xlu0 %v362, 64
    %v378 = vpop.permute.xlu0 %377
    %379 = vrot.lane.b32.xlu0 %v363, 64
    %v380 = vpop.permute.xlu0 %379
    %v383 = vmul.f32 %v359, %v378
    %v384 = vmul.f32 %v361, %v380
    %387 = vrot.lane.b32.xlu0 %v383, 32
    %v388 = vpop.permute.xlu0 %387
    %389 = vrot.lane.b32.xlu0 %v384, 32
    %v390 = vpop.permute.xlu0 %389
    %v393 = vadd.f32 %v373, %v388
    %v394 = vadd.f32 %v374, %v390
    %v395 = vtanh.pop %v393
    %v396 = vtanh.pop %v394
    %399 = vrot.lane.b32.xlu0 %v395, 64
    %v400 = vpop.permute.xlu0 %399
    %401 = vrot.lane.b32.xlu0 %v396, 64
    %v402 = vpop.permute.xlu0 %401
    %v405 = vmul.f32 %v359, %v400
    %v406 = vmul.f32 %v361, %v402
    %v409 = vrot.slane %v394, 7
    %vm410 = vcmask 1042434
    %v411 = vsel %vm410, %v409, %v393
    %412 = vrot.lane.b32.xlu0 %v411, 96
    %v413 = vpop.permute.xlu0 %412
    %vm415 = vcmask 256001
    %416 = vst.msk [vmem:[#allocation3 - $0x1] sm:$0x6] %vm415, %v413
    %v419 = vrot.slane %v406, 7
    %v420 = vsel %vm410, %v419, %v405
    %421 = vrot.lane.b32.xlu0 %v420, 32
    %v422 = vpop.permute.xlu0 %421
    %424 = vst.msk [vmem:[#allocation2 - $0x1] sm:$0x6] %vm415, %v422
    %425 = vrot.lane.b32.xlu0 %v405, 32
    %v426 = vpop.permute.xlu0 %425
    %427 = vrot.lane.b32.xlu0 %v406, 32
    %v428 = vpop.permute.xlu0 %427
    %vm431 = vcmask 254977
    %432 = vst.msk [vmem:[%s4] sm:$0x2] %vm431, %v426
    %433 = vst.msk [vmem:[%s4 + $0x8] sm:$0x2] %vm431, %v428
    %v434 = vld [vmem:[#allocation2] sm:$0x3]
    %v435 = vpack.c.bf16 %v434, %v434
    %v437 = vsel %vm165, %v435, 0
    %439 = vmatprep.subr.bf16.mxu0 0
    %440 = vmatpush1.bf16.msra.mxu0 0
    %441 = vmatprep.subr.bf16.mxu0 0
    %442 = vmatpush1.bf16.msra.mxu0 0
    %443 = vmatprep.subr.bf16.mxu0 0
    %444 = vmatpush1.bf16.msra.mxu0 0
    %445 = vmatprep.subr.bf16.mxu0 0
    %446 = vmatpush1.bf16.msra.mxu0 0
    %447 = vmatprep.subr.bf16.mxu0 0
    %448 = vmatpush1.bf16.msra.mxu0 0
    %449 = vmatprep.subr.bf16.mxu0 0
    %450 = vmatpush1.bf16.msra.mxu0 0
    %451 = vmatprep.subr.bf16.mxu0 0
    %452 = vmatpush1.bf16.msra.mxu0 %v162
    %453 = vmatprep.subr.bf16.mxu0 0
    %454 = vmatpush1.bf16.msra.mxu0 %v161
    %455 = vmatprep.subr.bf16.mxu0 0
    %456 = vmatpush2.bf16.msra.mxu0 0
    %457 = vmatprep.subr.bf16.mxu0 0
    %458 = vmatpush2.bf16.msra.mxu0 0
    %459 = vmatprep.subr.bf16.mxu0 0
    %460 = vmatpush2.bf16.msra.mxu0 0
    %461 = vmatprep.subr.bf16.mxu0 0
    %462 = vmatpush2.bf16.msra.mxu0 0
    %463 = vmatprep.subr.bf16.mxu0 0
    %464 = vmatpush2.bf16.msra.mxu0 0
    %465 = vmatprep.subr.bf16.mxu0 0
    %466 = vmatpush2.bf16.msra.mxu0 0
    %467 = vmatprep.subr.bf16.mxu0 0
    %468 = vmatpush2.bf16.msra.mxu0 0
    %469 = vmatprep.subr.bf16.mxu0 0
    %470 = vmatpush2.bf16.msra.mxu0 0
    %471 = vmatprep.mubr.bf16.mxu0 0
    %472 = vmatmul.mubr.bf16.gmra.mxu0 %v437
    %v473 = vpop.f32.mrf.mxu0
    %v474 = vadd.f32 0.0, %v473
    %v475 = vpop.f32.mrf.mxu0
    %v476 = vpop.f32.mrf.mxu0
    %v477 = vpop.f32.mrf.mxu0
    %478 = vdwg.mxu0
    %v480 = vrot.slane %v474, 6
    %v481 = vrot.slane %v474, 7
    %v484 = vadd.f32 %v145, %v480
    %v485 = vadd.f32 %v146, %v481
    %v486 = vxor.u32 %v484, 2147483648
    %v487 = vxor.u32 %v485, 2147483648
    %v488 = vmul.f32 %v486, 1.442695
    %v489 = vpow.pop %v488
    %v490 = vmul.f32 %v487, 1.442695
    %v491 = vpow.pop %v490
    %v492 = vadd.f32 %v489, 1.0
    %v493 = vadd.f32 %v491, 1.0
    %v494 = vrcp.pop %v492
    %v495 = vmul.f32 1.0, %v494
    %v496 = vrcp.pop %v493
    %v497 = vmul.f32 1.0, %v496
    %v498 = vtanh.pop %v484
    %v499 = vtanh.pop %v485
    %v500 = vld [vmem:[#allocation3] sm:$0x3]
    %v502 = vrot.slane %v500, 6
    %v503 = vrot.slane %v500, 7
    %504 = vrot.lane.b32.xlu0 %v502, 32
    %v505 = vpop.permute.xlu0 %504
    %506 = vrot.lane.b32.xlu0 %v503, 32
    %v507 = vpop.permute.xlu0 %506
    %v510 = vmul.f32 %v495, %v505
    %v511 = vmul.f32 %v497, %v507
    %514 = vrot.lane.b32.xlu0 %v498, 64
    %v515 = vpop.permute.xlu0 %514
    %516 = vrot.lane.b32.xlu0 %v499, 64
    %v517 = vpop.permute.xlu0 %516
    %v520 = vmul.f32 %v495, %v515
    %v521 = vmul.f32 %v497, %v517
    %524 = vrot.lane.b32.xlu0 %v520, 32
    %v525 = vpop.permute.xlu0 %524
    %526 = vrot.lane.b32.xlu0 %v521, 32
    %v527 = vpop.permute.xlu0 %526
    %v530 = vadd.f32 %v510, %v525
    %v531 = vadd.f32 %v511, %v527
    %v532 = vtanh.pop %v530
    %v533 = vtanh.pop %v531
    %536 = vrot.lane.b32.xlu0 %v532, 64
    %v537 = vpop.permute.xlu0 %536
    %538 = vrot.lane.b32.xlu0 %v533, 64
    %v539 = vpop.permute.xlu0 %538
    %v542 = vmul.f32 %v495, %v537
    %v543 = vmul.f32 %v497, %v539
    %v546 = vrot.slane %v531, 7
    %vm547 = vcmask 1043459
    %v548 = vsel %vm547, %v546, %v530
    %549 = vrot.lane.b32.xlu0 %v548, 96
    %v550 = vpop.permute.xlu0 %549
    %vm552 = vcmask 257026
    %553 = vst.msk [vmem:[#allocation3 - $0x2] sm:$0xc] %vm552, %v550
    %v556 = vrot.slane %v543, 7
    %v557 = vsel %vm547, %v556, %v542
    %558 = vrot.lane.b32.xlu0 %v557, 32
    %v559 = vpop.permute.xlu0 %558
    %561 = vst.msk [vmem:[#allocation2 - $0x2] sm:$0xc] %vm552, %v559
    %562 = vrot.lane.b32.xlu0 %v542, 32
    %v563 = vpop.permute.xlu0 %562
    %564 = vrot.lane.b32.xlu0 %v543, 32
    %v565 = vpop.permute.xlu0 %564
    %vm568 = vcmask 256002
    %569 = vst.msk [vmem:[%s4] sm:$0x4] %vm568, %v563
    %570 = vst.msk [vmem:[%s4 + $0x8] sm:$0x4] %vm568, %v565
    %v571 = vld [vmem:[#allocation2] sm:$0x3]
    %v572 = vpack.c.bf16 %v571, %v571
    %v574 = vsel %vm165, %v572, 0
    %576 = vmatprep.subr.bf16.mxu0 0
    %577 = vmatpush1.bf16.msra.mxu0 0
    %578 = vmatprep.subr.bf16.mxu0 0
    %579 = vmatpush1.bf16.msra.mxu0 0
    %580 = vmatprep.subr.bf16.mxu0 0
    %581 = vmatpush1.bf16.msra.mxu0 0
    %582 = vmatprep.subr.bf16.mxu0 0
    %583 = vmatpush1.bf16.msra.mxu0 0
    %584 = vmatprep.subr.bf16.mxu0 0
    %585 = vmatpush1.bf16.msra.mxu0 0
    %586 = vmatprep.subr.bf16.mxu0 0
    %587 = vmatpush1.bf16.msra.mxu0 0
    %588 = vmatprep.subr.bf16.mxu0 0
    %589 = vmatpush1.bf16.msra.mxu0 %v162
    %590 = vmatprep.subr.bf16.mxu0 0
    %591 = vmatpush1.bf16.msra.mxu0 %v161
    %592 = vmatprep.subr.bf16.mxu0 0
    %593 = vmatpush2.bf16.msra.mxu0 0
    %594 = vmatprep.subr.bf16.mxu0 0
    %595 = vmatpush2.bf16.msra.mxu0 0
    %596 = vmatprep.subr.bf16.mxu0 0
    %597 = vmatpush2.bf16.msra.mxu0 0
    %598 = vmatprep.subr.bf16.mxu0 0
    %599 = vmatpush2.bf16.msra.mxu0 0
    %600 = vmatprep.subr.bf16.mxu0 0
    %601 = vmatpush2.bf16.msra.mxu0 0
    %602 = vmatprep.subr.bf16.mxu0 0
    %603 = vmatpush2.bf16.msra.mxu0 0
    %604 = vmatprep.subr.bf16.mxu0 0
    %605 = vmatpush2.bf16.msra.mxu0 0
    %606 = vmatprep.subr.bf16.mxu0 0
    %607 = vmatpush2.bf16.msra.mxu0 0
    %608 = vmatprep.mubr.bf16.mxu0 0
    %609 = vmatmul.mubr.bf16.gmra.mxu0 %v574
    %v610 = vpop.f32.mrf.mxu0
    %v611 = vadd.f32 0.0, %v610
    %v612 = vpop.f32.mrf.mxu0
    %v613 = vpop.f32.mrf.mxu0
    %v614 = vpop.f32.mrf.mxu0
    %615 = vdwg.mxu0
    %v617 = vrot.slane %v611, 5
    %v618 = vrot.slane %v611, 6
    %v621 = vadd.f32 %v145, %v617
    %v622 = vadd.f32 %v146, %v618
    %v623 = vxor.u32 %v621, 2147483648
    %v624 = vxor.u32 %v622, 2147483648
    %v625 = vmul.f32 %v623, 1.442695
    %v626 = vpow.pop %v625
    %v627 = vmul.f32 %v624, 1.442695
    %v628 = vpow.pop %v627
    %v629 = vadd.f32 %v626, 1.0
    %v630 = vadd.f32 %v628, 1.0
    %v631 = vrcp.pop %v629
    %v632 = vmul.f32 1.0, %v631
    %v633 = vrcp.pop %v630
    %v634 = vmul.f32 1.0, %v633
    %v635 = vtanh.pop %v621
    %v636 = vtanh.pop %v622
    %v637 = vld [vmem:[#allocation3] sm:$0x3]
    %v639 = vrot.slane %v637, 5
    %v640 = vrot.slane %v637, 6
    %641 = vrot.lane.b32.xlu0 %v639, 32
    %v642 = vpop.permute.xlu0 %641
    %643 = vrot.lane.b32.xlu0 %v640, 32
    %v644 = vpop.permute.xlu0 %643
    %v647 = vmul.f32 %v632, %v642
    %v648 = vmul.f32 %v634, %v644
    %651 = vrot.lane.b32.xlu0 %v635, 64
    %v652 = vpop.permute.xlu0 %651
    %653 = vrot.lane.b32.xlu0 %v636, 64
    %v654 = vpop.permute.xlu0 %653
    %v657 = vmul.f32 %v632, %v652
    %v658 = vmul.f32 %v634, %v654
    %661 = vrot.lane.b32.xlu0 %v657, 32
    %v662 = vpop.permute.xlu0 %661
    %663 = vrot.lane.b32.xlu0 %v658, 32
    %v664 = vpop.permute.xlu0 %663
    %v667 = vadd.f32 %v647, %v662
    %v668 = vadd.f32 %v648, %v664
    %v669 = vtanh.pop %v667
    %v670 = vtanh.pop %v668
    %673 = vrot.lane.b32.xlu0 %v669, 64
    %v674 = vpop.permute.xlu0 %673
    %675 = vrot.lane.b32.xlu0 %v670, 64
    %v676 = vpop.permute.xlu0 %675
    %v679 = vmul.f32 %v632, %v674
    %v680 = vmul.f32 %v634, %v676
    %v683 = vrot.slane %v668, 7
    %vm684 = vcmask 1044484
    %v685 = vsel %vm684, %v683, %v667
    %686 = vrot.lane.b32.xlu0 %v685, 96
    %v687 = vpop.permute.xlu0 %686
    %vm689 = vcmask 258051
    %690 = vst.msk [vmem:[#allocation3 - $0x3] sm:$0x18] %vm689, %v687
    %v693 = vrot.slane %v680, 7
    %v694 = vsel %vm684, %v693, %v679
    %695 = vrot.lane.b32.xlu0 %v694, 32
    %v696 = vpop.permute.xlu0 %695
    %698 = vst.msk [vmem:[#allocation2 - $0x3] sm:$0x18] %vm689, %v696
    %699 = vrot.lane.b32.xlu0 %v679, 32
    %v700 = vpop.permute.xlu0 %699
    %701 = vrot.lane.b32.xlu0 %v680, 32
    %v702 = vpop.permute.xlu0 %701
    %vm705 = vcmask 257027
    %706 = vst.msk [vmem:[%s4] sm:$0x8] %vm705, %v700
    %707 = vst.msk [vmem:[%s4 + $0x8] sm:$0x8] %vm705, %v702
    %v708 = vld [vmem:[#allocation2] sm:$0x3]
    %v709 = vpack.c.bf16 %v708, %v708
    %v711 = vsel %vm165, %v709, 0
    %713 = vmatprep.subr.bf16.mxu0 0
    %714 = vmatpush1.bf16.msra.mxu0 0
    %715 = vmatprep.subr.bf16.mxu0 0
    %716 = vmatpush1.bf16.msra.mxu0 0
    %717 = vmatprep.subr.bf16.mxu0 0
    %718 = vmatpush1.bf16.msra.mxu0 0
    %719 = vmatprep.subr.bf16.mxu0 0
    %720 = vmatpush1.bf16.msra.mxu0 0
    %721 = vmatprep.subr.bf16.mxu0 0
    %722 = vmatpush1.bf16.msra.mxu0 0
    %723 = vmatprep.subr.bf16.mxu0 0
    %724 = vmatpush1.bf16.msra.mxu0 0
    %725 = vmatprep.subr.bf16.mxu0 0
    %726 = vmatpush1.bf16.msra.mxu0 %v162
    %727 = vmatprep.subr.bf16.mxu0 0
    %728 = vmatpush1.bf16.msra.mxu0 %v161
    %729 = vmatprep.subr.bf16.mxu0 0
    %730 = vmatpush2.bf16.msra.mxu0 0
    %731 = vmatprep.subr.bf16.mxu0 0
    %732 = vmatpush2.bf16.msra.mxu0 0
    %733 = vmatprep.subr.bf16.mxu0 0
    %734 = vmatpush2.bf16.msra.mxu0 0
    %735 = vmatprep.subr.bf16.mxu0 0
    %736 = vmatpush2.bf16.msra.mxu0 0
    %737 = vmatprep.subr.bf16.mxu0 0
    %738 = vmatpush2.bf16.msra.mxu0 0
    %739 = vmatprep.subr.bf16.mxu0 0
    %740 = vmatpush2.bf16.msra.mxu0 0
    %741 = vmatprep.subr.bf16.mxu0 0
    %742 = vmatpush2.bf16.msra.mxu0 0
    %743 = vmatprep.subr.bf16.mxu0 0
    %744 = vmatpush2.bf16.msra.mxu0 0
    %745 = vmatprep.mubr.bf16.mxu0 0
    %746 = vmatmul.mubr.bf16.gmra.mxu0 %v711
    %v747 = vpop.f32.mrf.mxu0
    %v748 = vadd.f32 0.0, %v747
    %v749 = vpop.f32.mrf.mxu0
    %v750 = vpop.f32.mrf.mxu0
    %v751 = vpop.f32.mrf.mxu0
    %752 = vdwg.mxu0
    %v754 = vrot.slane %v748, 4
    %v755 = vrot.slane %v748, 5
    %v758 = vadd.f32 %v145, %v754
    %v759 = vadd.f32 %v146, %v755
    %v760 = vxor.u32 %v758, 2147483648
    %v761 = vxor.u32 %v759, 2147483648
    %v762 = vmul.f32 %v760, 1.442695
    %v763 = vpow.pop %v762
    %v764 = vmul.f32 %v761, 1.442695
    %v765 = vpow.pop %v764
    %v766 = vadd.f32 %v763, 1.0
    %v767 = vadd.f32 %v765, 1.0
    %v768 = vrcp.pop %v766
    %v769 = vmul.f32 1.0, %v768
    %v770 = vrcp.pop %v767
    %v771 = vmul.f32 1.0, %v770
    %v772 = vtanh.pop %v758
    %v773 = vtanh.pop %v759
    %v774 = vld [vmem:[#allocation3] sm:$0x3]
    %v776 = vrot.slane %v774, 4
    %v777 = vrot.slane %v774, 5
    %778 = vrot.lane.b32.xlu0 %v776, 32
    %v779 = vpop.permute.xlu0 %778
    %780 = vrot.lane.b32.xlu0 %v777, 32
    %v781 = vpop.permute.xlu0 %780
    %v784 = vmul.f32 %v769, %v779
    %v785 = vmul.f32 %v771, %v781
    %788 = vrot.lane.b32.xlu0 %v772, 64
    %v789 = vpop.permute.xlu0 %788
    %790 = vrot.lane.b32.xlu0 %v773, 64
    %v791 = vpop.permute.xlu0 %790
    %v794 = vmul.f32 %v769, %v789
    %v795 = vmul.f32 %v771, %v791
    %798 = vrot.lane.b32.xlu0 %v794, 32
    %v799 = vpop.permute.xlu0 %798
    %800 = vrot.lane.b32.xlu0 %v795, 32
    %v801 = vpop.permute.xlu0 %800
    %v804 = vadd.f32 %v784, %v799
    %v805 = vadd.f32 %v785, %v801
    %v806 = vtanh.pop %v804
    %v807 = vtanh.pop %v805
    %810 = vrot.lane.b32.xlu0 %v806, 64
    %v811 = vpop.permute.xlu0 %810
    %812 = vrot.lane.b32.xlu0 %v807, 64
    %v813 = vpop.permute.xlu0 %812
    %v816 = vmul.f32 %v769, %v811
    %v817 = vmul.f32 %v771, %v813
    %v820 = vrot.slane %v805, 7
    %vm821 = vcmask 1045509
    %v822 = vsel %vm821, %v820, %v804
    %823 = vrot.lane.b32.xlu0 %v822, 96
    %v824 = vpop.permute.xlu0 %823
    %vm826 = vcmask 259076
    %827 = vst.msk [vmem:[#allocation3 - $0x4] sm:$0x30] %vm826, %v824
    %v830 = vrot.slane %v817, 7
    %v831 = vsel %vm821, %v830, %v816
    %832 = vrot.lane.b32.xlu0 %v831, 32
    %v833 = vpop.permute.xlu0 %832
    %835 = vst.msk [vmem:[#allocation2 - $0x4] sm:$0x30] %vm826, %v833
    %836 = vrot.lane.b32.xlu0 %v816, 32
    %v837 = vpop.permute.xlu0 %836
    %838 = vrot.lane.b32.xlu0 %v817, 32
    %v839 = vpop.permute.xlu0 %838
    %vm842 = vcmask 258052
    %843 = vst.msk [vmem:[%s4] sm:$0x10] %vm842, %v837
    %844 = vst.msk [vmem:[%s4 + $0x8] sm:$0x10] %vm842, %v839
    %v845 = vld [vmem:[#allocation2] sm:$0x3]
    %v846 = vpack.c.bf16 %v845, %v845
    %v848 = vsel %vm165, %v846, 0
    %850 = vmatprep.subr.bf16.mxu0 0
    %851 = vmatpush1.bf16.msra.mxu0 0
    %852 = vmatprep.subr.bf16.mxu0 0
    %853 = vmatpush1.bf16.msra.mxu0 0
    %854 = vmatprep.subr.bf16.mxu0 0
    %855 = vmatpush1.bf16.msra.mxu0 0
    %856 = vmatprep.subr.bf16.mxu0 0
    %857 = vmatpush1.bf16.msra.mxu0 0
    %858 = vmatprep.subr.bf16.mxu0 0
    %859 = vmatpush1.bf16.msra.mxu0 0
    %860 = vmatprep.subr.bf16.mxu0 0
    %861 = vmatpush1.bf16.msra.mxu0 0
    %862 = vmatprep.subr.bf16.mxu0 0
    %863 = vmatpush1.bf16.msra.mxu0 %v162
    %864 = vmatprep.subr.bf16.mxu0 0
    %865 = vmatpush1.bf16.msra.mxu0 %v161
    %866 = vmatprep.subr.bf16.mxu0 0
    %867 = vmatpush2.bf16.msra.mxu0 0
    %868 = vmatprep.subr.bf16.mxu0 0
    %869 = vmatpush2.bf16.msra.mxu0 0
    %870 = vmatprep.subr.bf16.mxu0 0
    %871 = vmatpush2.bf16.msra.mxu0 0
    %872 = vmatprep.subr.bf16.mxu0 0
    %873 = vmatpush2.bf16.msra.mxu0 0
    %874 = vmatprep.subr.bf16.mxu0 0
    %875 = vmatpush2.bf16.msra.mxu0 0
    %876 = vmatprep.subr.bf16.mxu0 0
    %877 = vmatpush2.bf16.msra.mxu0 0
    %878 = vmatprep.subr.bf16.mxu0 0
    %879 = vmatpush2.bf16.msra.mxu0 0
    %880 = vmatprep.subr.bf16.mxu0 0
    %881 = vmatpush2.bf16.msra.mxu0 0
    %882 = vmatprep.mubr.bf16.mxu0 0
    %883 = vmatmul.mubr.bf16.gmra.mxu0 %v848
    %v884 = vpop.f32.mrf.mxu0
    %v885 = vadd.f32 0.0, %v884
    %v886 = vpop.f32.mrf.mxu0
    %v887 = vpop.f32.mrf.mxu0
    %v888 = vpop.f32.mrf.mxu0
    %889 = vdwg.mxu0
    %v891 = vrot.slane %v885, 3
    %v892 = vrot.slane %v885, 4
    %v895 = vadd.f32 %v145, %v891
    %v896 = vadd.f32 %v146, %v892
    %v897 = vxor.u32 %v895, 2147483648
    %v898 = vxor.u32 %v896, 2147483648
    %v899 = vmul.f32 %v897, 1.442695
    %v900 = vpow.pop %v899
    %v901 = vmul.f32 %v898, 1.442695
    %v902 = vpow.pop %v901
    %v903 = vadd.f32 %v900, 1.0
    %v904 = vadd.f32 %v902, 1.0
    %v905 = vrcp.pop %v903
    %v906 = vmul.f32 1.0, %v905
    %v907 = vrcp.pop %v904
    %v908 = vmul.f32 1.0, %v907
    %v909 = vtanh.pop %v895
    %v910 = vtanh.pop %v896
    %v911 = vld [vmem:[#allocation3] sm:$0x3]
    %v913 = vrot.slane %v911, 3
    %v914 = vrot.slane %v911, 4
    %915 = vrot.lane.b32.xlu0 %v913, 32
    %v916 = vpop.permute.xlu0 %915
    %917 = vrot.lane.b32.xlu0 %v914, 32
    %v918 = vpop.permute.xlu0 %917
    %v921 = vmul.f32 %v906, %v916
    %v922 = vmul.f32 %v908, %v918
    %925 = vrot.lane.b32.xlu0 %v909, 64
    %v926 = vpop.permute.xlu0 %925
    %927 = vrot.lane.b32.xlu0 %v910, 64
    %v928 = vpop.permute.xlu0 %927
    %v931 = vmul.f32 %v906, %v926
    %v932 = vmul.f32 %v908, %v928
    %935 = vrot.lane.b32.xlu0 %v931, 32
    %v936 = vpop.permute.xlu0 %935
    %937 = vrot.lane.b32.xlu0 %v932, 32
    %v938 = vpop.permute.xlu0 %937
    %v941 = vadd.f32 %v921, %v936
    %v942 = vadd.f32 %v922, %v938
    %v943 = vtanh.pop %v941
    %v944 = vtanh.pop %v942
    %947 = vrot.lane.b32.xlu0 %v943, 64
    %v948 = vpop.permute.xlu0 %947
    %949 = vrot.lane.b32.xlu0 %v944, 64
    %v950 = vpop.permute.xlu0 %949
    %v953 = vmul.f32 %v906, %v948
    %v954 = vmul.f32 %v908, %v950
    %v957 = vrot.slane %v942, 7
    %vm958 = vcmask 1046534
    %v959 = vsel %vm958, %v957, %v941
    %960 = vrot.lane.b32.xlu0 %v959, 96
    %v961 = vpop.permute.xlu0 %960
    %vm963 = vcmask 260101
    %964 = vst.msk [vmem:[#allocation3 - $0x5] sm:$0x60] %vm963, %v961
    %v967 = vrot.slane %v954, 7
    %v968 = vsel %vm958, %v967, %v953
    %969 = vrot.lane.b32.xlu0 %v968, 32
    %v970 = vpop.permute.xlu0 %969
    %972 = vst.msk [vmem:[#allocation2 - $0x5] sm:$0x60] %vm963, %v970
    %973 = vrot.lane.b32.xlu0 %v953, 32
    %v974 = vpop.permute.xlu0 %973
    %975 = vrot.lane.b32.xlu0 %v954, 32
    %v976 = vpop.permute.xlu0 %975
    %vm979 = vcmask 259077
    %980 = vst.msk [vmem:[%s4] sm:$0x20] %vm979, %v974
    %981 = vst.msk [vmem:[%s4 + $0x8] sm:$0x20] %vm979, %v976
    %v982 = vld [vmem:[#allocation2] sm:$0x3]
    %v983 = vpack.c.bf16 %v982, %v982
    %v985 = vsel %vm165, %v983, 0
    %987 = vmatprep.subr.bf16.mxu0 0
    %988 = vmatpush1.bf16.msra.mxu0 0
    %989 = vmatprep.subr.bf16.mxu0 0
    %990 = vmatpush1.bf16.msra.mxu0 0
    %991 = vmatprep.subr.bf16.mxu0 0
    %992 = vmatpush1.bf16.msra.mxu0 0
    %993 = vmatprep.subr.bf16.mxu0 0
    %994 = vmatpush1.bf16.msra.mxu0 0
    %995 = vmatprep.subr.bf16.mxu0 0
    %996 = vmatpush1.bf16.msra.mxu0 0
    %997 = vmatprep.subr.bf16.mxu0 0
    %998 = vmatpush1.bf16.msra.mxu0 0
    %999 = vmatprep.subr.bf16.mxu0 0
    %1000 = vmatpush1.bf16.msra.mxu0 %v162
    %1001 = vmatprep.subr.bf16.mxu0 0
    %1002 = vmatpush1.bf16.msra.mxu0 %v161
    %1003 = vmatprep.subr.bf16.mxu0 0
    %1004 = vmatpush2.bf16.msra.mxu0 0
    %1005 = vmatprep.subr.bf16.mxu0 0
    %1006 = vmatpush2.bf16.msra.mxu0 0
    %1007 = vmatprep.subr.bf16.mxu0 0
    %1008 = vmatpush2.bf16.msra.mxu0 0
    %1009 = vmatprep.subr.bf16.mxu0 0
    %1010 = vmatpush2.bf16.msra.mxu0 0
    %1011 = vmatprep.subr.bf16.mxu0 0
    %1012 = vmatpush2.bf16.msra.mxu0 0
    %1013 = vmatprep.subr.bf16.mxu0 0
    %1014 = vmatpush2.bf16.msra.mxu0 0
    %1015 = vmatprep.subr.bf16.mxu0 0
    %1016 = vmatpush2.bf16.msra.mxu0 0
    %1017 = vmatprep.subr.bf16.mxu0 0
    %1018 = vmatpush2.bf16.msra.mxu0 0
    %1019 = vmatprep.mubr.bf16.mxu0 0
    %1020 = vmatmul.mubr.bf16.gmra.mxu0 %v985
    %v1021 = vpop.f32.mrf.mxu0
    %v1022 = vadd.f32 0.0, %v1021
    %v1023 = vpop.f32.mrf.mxu0
    %v1024 = vpop.f32.mrf.mxu0
    %v1025 = vpop.f32.mrf.mxu0
    %1026 = vdwg.mxu0
    %v1028 = vrot.slane %v1022, 2
    %v1029 = vrot.slane %v1022, 3
    %v1032 = vadd.f32 %v145, %v1028
    %v1033 = vadd.f32 %v146, %v1029
    %v1034 = vxor.u32 %v1032, 2147483648
    %v1035 = vxor.u32 %v1033, 2147483648
    %v1036 = vmul.f32 %v1034, 1.442695
    %v1037 = vpow.pop %v1036
    %v1038 = vmul.f32 %v1035, 1.442695
    %v1039 = vpow.pop %v1038
    %v1040 = vadd.f32 %v1037, 1.0
    %v1041 = vadd.f32 %v1039, 1.0
    %v1042 = vrcp.pop %v1040
    %v1043 = vmul.f32 1.0, %v1042
    %v1044 = vrcp.pop %v1041
    %v1045 = vmul.f32 1.0, %v1044
    %v1046 = vtanh.pop %v1032
    %v1047 = vtanh.pop %v1033
    %v1048 = vld [vmem:[#allocation3] sm:$0x3]
    %v1050 = vrot.slane %v1048, 2
    %v1051 = vrot.slane %v1048, 3
    %1052 = vrot.lane.b32.xlu0 %v1050, 32
    %v1053 = vpop.permute.xlu0 %1052
    %1054 = vrot.lane.b32.xlu0 %v1051, 32
    %v1055 = vpop.permute.xlu0 %1054
    %v1058 = vmul.f32 %v1043, %v1053
    %v1059 = vmul.f32 %v1045, %v1055
    %1062 = vrot.lane.b32.xlu0 %v1046, 64
    %v1063 = vpop.permute.xlu0 %1062
    %1064 = vrot.lane.b32.xlu0 %v1047, 64
    %v1065 = vpop.permute.xlu0 %1064
    %v1068 = vmul.f32 %v1043, %v1063
    %v1069 = vmul.f32 %v1045, %v1065
    %1072 = vrot.lane.b32.xlu0 %v1068, 32
    %v1073 = vpop.permute.xlu0 %1072
    %1074 = vrot.lane.b32.xlu0 %v1069, 32
    %v1075 = vpop.permute.xlu0 %1074
    %v1078 = vadd.f32 %v1058, %v1073
    %v1079 = vadd.f32 %v1059, %v1075
    %v1080 = vtanh.pop %v1078
    %v1081 = vtanh.pop %v1079
    %1084 = vrot.lane.b32.xlu0 %v1080, 64
    %v1085 = vpop.permute.xlu0 %1084
    %1086 = vrot.lane.b32.xlu0 %v1081, 64
    %v1087 = vpop.permute.xlu0 %1086
    %v1090 = vmul.f32 %v1043, %v1085
    %v1091 = vmul.f32 %v1045, %v1087
    %v1094 = vrot.slane %v1079, 7
    %vm1095 = vcmask 1047559
    %v1096 = vsel %vm1095, %v1094, %v1078
    %1097 = vrot.lane.b32.xlu0 %v1096, 96
    %v1098 = vpop.permute.xlu0 %1097
    %vm1100 = vcmask 261126
    %1101 = vst.msk [vmem:[#allocation3 - $0x6] sm:$0xc0] %vm1100, %v1098
    %v1104 = vrot.slane %v1091, 7
    %v1105 = vsel %vm1095, %v1104, %v1090
    %1106 = vrot.lane.b32.xlu0 %v1105, 32
    %v1107 = vpop.permute.xlu0 %1106
    %1109 = vst.msk [vmem:[#allocation2 - $0x6] sm:$0xc0] %vm1100, %v1107
    %1110 = vrot.lane.b32.xlu0 %v1090, 32
    %v1111 = vpop.permute.xlu0 %1110
    %1112 = vrot.lane.b32.xlu0 %v1091, 32
    %v1113 = vpop.permute.xlu0 %1112
    %vm1116 = vcmask 260102
    %1117 = vst.msk [vmem:[%s4] sm:$0x40] %vm1116, %v1111
    %1118 = vst.msk [vmem:[%s4 + $0x8] sm:$0x40] %vm1116, %v1113
    %v1119 = vld [vmem:[#allocation2] sm:$0x3]
    %v1120 = vpack.c.bf16 %v1119, %v1119
    %v1122 = vsel %vm165, %v1120, 0
    %1124 = vmatprep.subr.bf16.mxu0 0
    %1125 = vmatpush1.bf16.msra.mxu0 0
    %1126 = vmatprep.subr.bf16.mxu0 0
    %1127 = vmatpush1.bf16.msra.mxu0 0
    %1128 = vmatprep.subr.bf16.mxu0 0
    %1129 = vmatpush1.bf16.msra.mxu0 0
    %1130 = vmatprep.subr.bf16.mxu0 0
    %1131 = vmatpush1.bf16.msra.mxu0 0
    %1132 = vmatprep.subr.bf16.mxu0 0
    %1133 = vmatpush1.bf16.msra.mxu0 0
    %1134 = vmatprep.subr.bf16.mxu0 0
    %1135 = vmatpush1.bf16.msra.mxu0 0
    %1136 = vmatprep.subr.bf16.mxu0 0
    %1137 = vmatpush1.bf16.msra.mxu0 %v162
    %1138 = vmatprep.subr.bf16.mxu0 0
    %1139 = vmatpush1.bf16.msra.mxu0 %v161
    %1140 = vmatprep.subr.bf16.mxu0 0
    %1141 = vmatpush2.bf16.msra.mxu0 0
    %1142 = vmatprep.subr.bf16.mxu0 0
    %1143 = vmatpush2.bf16.msra.mxu0 0
    %1144 = vmatprep.subr.bf16.mxu0 0
    %1145 = vmatpush2.bf16.msra.mxu0 0
    %1146 = vmatprep.subr.bf16.mxu0 0
    %1147 = vmatpush2.bf16.msra.mxu0 0
    %1148 = vmatprep.subr.bf16.mxu0 0
    %1149 = vmatpush2.bf16.msra.mxu0 0
    %1150 = vmatprep.subr.bf16.mxu0 0
    %1151 = vmatpush2.bf16.msra.mxu0 0
    %1152 = vmatprep.subr.bf16.mxu0 0
    %1153 = vmatpush2.bf16.msra.mxu0 0
    %1154 = vmatprep.subr.bf16.mxu0 0
    %1155 = vmatpush2.bf16.msra.mxu0 0
    %1156 = vmatprep.mubr.bf16.mxu0 0
    %1157 = vmatmul.mubr.bf16.gmra.mxu0 %v1122
    %v1158 = vpop.f32.mrf.mxu0
    %v1159 = vadd.f32 0.0, %v1158
    %v1160 = vpop.f32.mrf.mxu0
    %v1161 = vpop.f32.mrf.mxu0
    %v1162 = vpop.f32.mrf.mxu0
    %1163 = vdwg.mxu0
    %v1165 = vrot.slane %v1159, 1
    %v1166 = vrot.slane %v1159, 2
    %v1169 = vadd.f32 %v145, %v1165
    %v1170 = vadd.f32 %v146, %v1166
    %v1171 = vxor.u32 %v1169, 2147483648
    %v1172 = vxor.u32 %v1170, 2147483648
    %v1173 = vmul.f32 %v1171, 1.442695
    %v1174 = vpow.pop %v1173
    %v1175 = vmul.f32 %v1172, 1.442695
    %v1176 = vpow.pop %v1175
    %v1177 = vadd.f32 %v1174, 1.0
    %v1178 = vadd.f32 %v1176, 1.0
    %v1179 = vrcp.pop %v1177
    %v1180 = vmul.f32 1.0, %v1179
    %v1181 = vrcp.pop %v1178
    %v1182 = vmul.f32 1.0, %v1181
    %v1183 = vtanh.pop %v1169
    %v1184 = vtanh.pop %v1170
    %v1185 = vld [vmem:[#allocation3] sm:$0x3]
    %v1187 = vrot.slane %v1185, 1
    %v1188 = vrot.slane %v1185, 2
    %1189 = vrot.lane.b32.xlu0 %v1187, 32
    %v1190 = vpop.permute.xlu0 %1189
    %1191 = vrot.lane.b32.xlu0 %v1188, 32
    %v1192 = vpop.permute.xlu0 %1191
    %v1195 = vmul.f32 %v1180, %v1190
    %v1196 = vmul.f32 %v1182, %v1192
    %1199 = vrot.lane.b32.xlu0 %v1183, 64
    %v1200 = vpop.permute.xlu0 %1199
    %1201 = vrot.lane.b32.xlu0 %v1184, 64
    %v1202 = vpop.permute.xlu0 %1201
    %v1205 = vmul.f32 %v1180, %v1200
    %v1206 = vmul.f32 %v1182, %v1202
    %1209 = vrot.lane.b32.xlu0 %v1205, 32
    %v1210 = vpop.permute.xlu0 %1209
    %1211 = vrot.lane.b32.xlu0 %v1206, 32
    %v1212 = vpop.permute.xlu0 %1211
    %v1215 = vadd.f32 %v1195, %v1210
    %v1216 = vadd.f32 %v1196, %v1212
    %v1217 = vtanh.pop %v1215
    %v1218 = vtanh.pop %v1216
    %1221 = vrot.lane.b32.xlu0 %v1217, 64
    %v1222 = vpop.permute.xlu0 %1221
    %1223 = vrot.lane.b32.xlu0 %v1218, 64
    %v1224 = vpop.permute.xlu0 %1223
    %v1227 = vmul.f32 %v1180, %v1222
    %v1228 = vmul.f32 %v1182, %v1224
    %v1231 = vrot.slane %v1216, 7
    %1232 = vrot.lane.b32.xlu0 %v1215, 96
    %v1233 = vpop.permute.xlu0 %1232
    %1234 = vrot.lane.b32.xlu0 %v1231, 96
    %v1235 = vpop.permute.xlu0 %1234
    %vm1238 = vcmask 261127
    %1239 = vst.msk [vmem:[#allocation3 - $0x7] sm:$0x80] %vm1238, %v1233
    %1240 = vst.msk [vmem:[#allocation3 + $0x1] sm:$0x1] %vm296, %v1235
    %v1243 = vrot.slane %v1228, 7
    %1244 = vrot.lane.b32.xlu0 %v1227, 32
    %v1245 = vpop.permute.xlu0 %1244
    %1246 = vrot.lane.b32.xlu0 %v1243, 32
    %v1247 = vpop.permute.xlu0 %1246
    %1250 = vst.msk [vmem:[#allocation2 - $0x7] sm:$0x80] %vm1238, %v1245
    %1251 = vst.msk [vmem:[#allocation2 + $0x1] sm:$0x1] %vm296, %v1247
    %1252 = vrot.lane.b32.xlu0 %v1228, 32
    %v1253 = vpop.permute.xlu0 %1252
    %1255 = vst.msk [vmem:[%s4] sm:$0x80] %vm1238, %v1245
    %1256 = vst.msk [vmem:[%s4 + $0x8] sm:$0x80] %vm1238, %v1253
    // Predicated region
    $region34: #{lstm_forward.2} parent=1 // pred_check
      _
    $region35: #{lstm_forward.2} parent=1 // pred_check_branch
      %1258 = sbr.rel (0) target = $region37
    $region36: #{lstm_forward.2} parent=1 // pred_region
      _
    $region37: #{lstm_forward.2} parent=1 // pred_fallthru
      _
    // Predicated region
    $region38: #{lstm_forward.2} parent=1 // pred_check
      _
    $region39: #{lstm_forward.2} parent=1 // pred_check_branch
      %1260 = sbr.rel (0) target = $region41
    $region40: #{lstm_forward.2} parent=1 // pred_region
      _
    $region41: #{lstm_forward.2} parent=1 // pred_fallthru
      _
    %1261 = vsyncpa [#allocation5], 1
    %1262 = vsyncpa [#allocation7], 1

</llo_original>
